<compile_context>
chip_gen: v7x
topology: tpu7x:2x2x1
jax: 0.10.0
libtpu: 0.0.40
codegen_flags: <defaults>
</compile_context>

<pallas_src>
import functools
import math

import jax
import jax.numpy as jnp
from jax import lax
from jax.experimental import pallas as pl
from jax.experimental.pallas import tpu as pltpu


def _rel_attn_kernel(xq_ref, xkv_ref, wq_ref, wv_ref, rr_ref, rw_ref,
                     pos_ref, mask_ref, out_ref, *,
                     num_head, head_dim, seq_len, block_q):
    L, tq = seq_len, block_q
    Wwin = L + tq                               # width of the pos window
    q0 = pl.program_id(1) * tq                  # first query row of this block
    # pos window start chosen so BD[i, k] = bd_full[i, tq + k - i]  (static shift)
    w0 = pl.multiple_of(L - tq - q0, 128)

    x_q = xq_ref[0]                             # [tq, D]  compute dtype (bf16)
    x_kv = xkv_ref[0]                           # [L,  D]  compute dtype (keys)
    cdt = x_kv.dtype
    rr = rr_ref[...].astype(jnp.float32)        # [H, hd]  r_r_bias
    rw = rw_ref[...].astype(jnp.float32)        # [H, hd]  r_w_bias
    key_pad = mask_ref[0] == 0                  # [1, L]   padded keys

    # Hoisted full-width projections: lane-dense MXU, f32 accumulation.
    q_full = jnp.dot(x_q, wq_ref[...], preferred_element_type=jnp.float32)  # [tq, D]
    v_full = jnp.dot(x_kv, wv_ref[...],
                     preferred_element_type=jnp.float32).astype(cdt)        # [L, D]

    pos_win = pos_ref[pl.ds(w0, Wwin), :]       # [L+tq, hd] relative positions

    neg = jnp.float32(-1e30)                    # finite mask value (no inf/NaN path)
    for h in range(num_head):                   # static unroll; each head is fully
        sl = slice(h * head_dim, (h + 1) * head_dim)   # consumed + stored per iter
        q_h = q_full[:, sl]                     # [tq, hd] f32
        k_h = x_kv[:, sl]                       # [L, hd]
        v_h = v_full[:, sl]                     # [L, hd]

        # AC = (q + r_r_bias) @ k^T
        ac = lax.dot_general((q_h + rr[h:h + 1, :]).astype(cdt), k_h,
                             (((1,), (1,)), ((), ())),
                             preferred_element_type=jnp.float32)            # [tq, L]
        # BD_full = (q + r_w_bias) @ pos_win^T
        bd_full = lax.dot_general((q_h + rw[h:h + 1, :]).astype(cdt), pos_win,
                                  (((1,), (1,)), ((), ())),
                                  preferred_element_type=jnp.float32)       # [tq, L+tq]
        # Transformer-XL relative shift: BD[i, k] = bd_full[i, tq + k - i].
        # Implemented as a strided lane rotate on the XLU (O(tq * L), no gather).
        bd = pltpu.roll(bd_full, shift=L, axis=1, stride=1, stride_axis=0)[:, :L]

        logits = ac + bd
        logits = jnp.where(key_pad, neg, logits)            # mask padded keys
        logits = logits - jnp.max(logits, axis=-1, keepdims=True)
        p = jnp.exp(logits)
        p = p * pl.reciprocal(jnp.sum(p, axis=-1, keepdims=True), approx=True)
        # TODO(synk): attention dropout omitted (inference / dropout p == 0.0).
        out_h = jnp.dot(p.astype(cdt), v_h, preferred_element_type=jnp.float32)
        out_ref[0, :, sl] = out_h.astype(out_ref.dtype)


def relative_multi_head_attn(x, mask, wq, wv, r_r_bias, r_w_bias, pos_embed,
                             *, block_q=128, compute_dtype=jnp.bfloat16,
                             out_dtype=jnp.float32):
    """Pallas TPU forward for RelativeMultiHeadAttn.

    x: [B, L, D], mask: [B, L], wq/wv: [D, D] (x @ wq form), biases: [H, hd],
    pos_embed: [2L, hd].  L must be a multiple of 128 (pad upstream).
    """
    B, L, D = x.shape
    H, hd = r_r_bias.shape
    assert H * hd == D
    assert pos_embed.shape == (2 * L, hd)
    # TODO(synk): general (non-128-aligned) L requires padding upstream.
    assert L % 128 == 0, "sequence length must be a multiple of 128"
    tq = min(block_q, L)
    assert tq % 128 == 0 and L % tq == 0
    nq = L // tq

    xc = x.astype(compute_dtype)                 # bf16 I/O halves HBM read traffic
    wqc = wq.astype(compute_dtype)
    wvc = wv.astype(compute_dtype)
    posc = pos_embed.astype(compute_dtype)
    rr = r_r_bias.astype(jnp.float32)
    rw = r_w_bias.astype(jnp.float32)
    mask3 = mask.reshape(B, 1, L).astype(jnp.int32)

    kernel = functools.partial(_rel_attn_kernel, num_head=H, head_dim=hd,
                               seq_len=L, block_q=tq)
    return pl.pallas_call(
        kernel,
        out_shape=jax.ShapeDtypeStruct((B, L, D), out_dtype),
        grid_spec=pltpu.PrefetchScalarGridSpec(
            num_scalar_prefetch=0,
            grid=(B, nq),
            in_specs=[
                pl.BlockSpec((1, tq, D), lambda b, qi: (b, qi, 0)),   # x (query rows)
                pl.BlockSpec((1, L, D), lambda b, qi: (b, 0, 0)),     # x (key/value rows)
                pl.BlockSpec((D, D), lambda b, qi: (0, 0)),           # wq
                pl.BlockSpec((D, D), lambda b, qi: (0, 0)),           # wv
                pl.BlockSpec((H, hd), lambda b, qi: (0, 0)),          # r_r_bias
                pl.BlockSpec((H, hd), lambda b, qi: (0, 0)),          # r_w_bias
                pl.BlockSpec((2 * L, hd), lambda b, qi: (0, 0)),      # pos_embed
                pl.BlockSpec((1, 1, L), lambda b, qi: (b, 0, 0)),     # mask
            ],
            out_specs=pl.BlockSpec((1, tq, D), lambda b, qi: (b, qi, 0)),
        ),
        compiler_params=pltpu.CompilerParams(
            dimension_semantics=("parallel", "parallel"),
            vmem_limit_bytes=32 * 1024 * 1024),
    )(xc, xc, wqc, wvc, rr, rw, posc, mask3)


# ---------- RelativeEmbedding table (parameter setup, plain JAX) ----------
def get_sinusoid_table(num_embeddings, embedding_dim, padding_idx=None):
    half_dim = embedding_dim // 2
    scale = math.log(10000) / (half_dim - 1)
    freqs = jnp.exp(jnp.arange(half_dim, dtype=jnp.float32) * -scale)
    positions = jnp.arange(-num_embeddings // 2, num_embeddings // 2,
                           dtype=jnp.float32)
    emb = positions[:, None] * freqs[None, :]
    emb = jnp.concatenate([jnp.sin(emb), jnp.cos(emb)],
                          axis=1).reshape(num_embeddings, -1)
    if embedding_dim % 2 == 1:
        emb = jnp.concatenate([emb, jnp.zeros((num_embeddings, 1))], axis=1)
    if padding_idx is not None:
        emb = emb.at[padding_idx].set(0.0)
    return emb


# ---------- pure-JAX reference (mirrors the PyTorch forward exactly) ----------
def reference_forward(x, mask, wq, wv, r_r_bias, r_w_bias, pos_embed):
    B, L, D = x.shape
    H, hd = r_r_bias.shape
    q = (x @ wq).reshape(B, L, H, hd).transpose(0, 2, 1, 3)
    k = x.reshape(B, L, H, hd).transpose(0, 2, 1, 3)
    v = (x @ wv).reshape(B, L, H, hd).transpose(0, 2, 1, 3)
    rw_head_q = q + r_r_bias[None, :, None, :]
    AC = jnp.einsum('bnqd,bnkd->bnqk', rw_head_q, k)
    D_ = jnp.einsum('nd,ld->nl', r_w_bias, pos_embed)[None, :, None, :]
    B_ = jnp.einsum('bnqd,ld->bnql', q, pos_embed)
    BD = B_ + D_
    zero_pad = jnp.zeros((B, H, L, 1), BD.dtype)
    BD = jnp.concatenate([BD, zero_pad], axis=-1).reshape(B, H, -1, L)
    BD = BD[:, :, :-1].reshape(B, H, L, -1)
    BD = BD[:, :, :, L:]
    attn = AC + BD
    attn = jnp.where(mask[:, None, None, :] == 0, -jnp.inf, attn)
    attn = jax.nn.softmax(attn, axis=-1)
    out = jnp.einsum('bnqk,bnkd->bnqd', attn, v)
    return out.transpose(0, 2, 1, 3).reshape(B, L, D)


if __name__ == "__main__":
    B, L, H, hd = 2, 256, 4, 64
    D = H * hd                      # input_size = 256
    max_length = 1024

    key = jax.random.PRNGKey(0)
    kx, kw, kr1, kr2 = jax.random.split(key, 4)

    x = 0.5 * jax.random.normal(kx, (B, L, D), dtype=jnp.float32)
    mask = jnp.ones((B, L), dtype=jnp.int32).at[1, 200:].set(0)  # pad tail of seq 1

    # qv_linear: nn.Linear(D, 2D, bias=False); weight W: [2D, D]; qv = x @ W.T
    qv_w = jax.random.normal(kw, (2 * D, D), dtype=jnp.float32) / math.sqrt(D)
    qv_wt = qv_w.T                              # [D, 2D]
    wq, wv = qv_wt[:, :D], qv_wt[:, D:]

    # xavier_normal_ init for [H, hd] biases
    std = math.sqrt(2.0 / (H + hd))
    r_r_bias = jax.random.normal(kr1, (H, hd), dtype=jnp.float32) * std
    r_w_bias = jax.random.normal(kr2, (H, hd), dtype=jnp.float32) * std

    # RelativeEmbedding(embedding_dim=hd, padding_idx=0, init_size=max_length)
    table = get_sinusoid_table(max_length + 1, hd, padding_idx=0)
    origin_shift = (max_length + 1) // 2 + 1
    positions = jnp.arange(-L, L) + origin_shift
    pos_embed = table[positions]                # [2L, hd]

    out = relative_multi_head_attn(x, mask, wq, wv, r_r_bias, r_w_bias,
                                   pos_embed, block_q=128)
    out = jax.block_until_ready(out)

    ref = reference_forward(x, mask, wq, wv, r_r_bias, r_w_bias, pos_embed)
    assert out.shape == (B, L, D)
    err = float(jnp.max(jnp.abs(out - ref)))
    # bf16 MXU inputs with f32 accumulation vs f32 reference -> loose tolerance.
    assert jnp.allclose(out, ref, atol=5e-2, rtol=5e-2), f"max abs err {err}"
    print("KERNEL_OK")
</pallas_src>

<mosaic_0001>
module attributes {stable_mosaic.version = 11 : i64} {
  func.func @_rel_attn_kernel(%arg0: i32, %arg1: i32, %arg2: memref<1x128x256xbf16, #tpu.memory_space<vmem>>, %arg3: memref<1x256x256xbf16, #tpu.memory_space<vmem>>, %arg4: memref<256x256xbf16, #tpu.memory_space<vmem>>, %arg5: memref<256x256xbf16, #tpu.memory_space<vmem>>, %arg6: memref<4x64xf32, #tpu.memory_space<vmem>>, %arg7: memref<4x64xf32, #tpu.memory_space<vmem>>, %arg8: memref<512x64xbf16, #tpu.memory_space<vmem>>, %arg9: memref<1x1x256xi32, #tpu.memory_space<vmem>>, %arg10: memref<1x128x256xf32, #tpu.memory_space<vmem>>) attributes {dimension_semantics = [#tpu.dimension_semantics<parallel>, #tpu.dimension_semantics<parallel>], iteration_bounds = array<i64: 2, 2>, scalar_prefetch = 0 : i64, scratch_operands = 0 : i64, tpu.core_type = #tpu.core_type<tc>, window_params = [{transform_indices = @transform_0, window_bounds = array<i64: 1, 128, 256>}, {transform_indices = @transform_1, window_bounds = array<i64: 1, 256, 256>}, {pipeline_mode = #tpu.pipeline_mode<synchronous>, transform_indices = @transform_2, window_bounds = array<i64: 256, 256>}, {pipeline_mode = #tpu.pipeline_mode<synchronous>, transform_indices = @transform_3, window_bounds = array<i64: 256, 256>}, {pipeline_mode = #tpu.pipeline_mode<synchronous>, transform_indices = @transform_4, window_bounds = array<i64: 4, 64>}, {pipeline_mode = #tpu.pipeline_mode<synchronous>, transform_indices = @transform_5, window_bounds = array<i64: 4, 64>}, {pipeline_mode = #tpu.pipeline_mode<synchronous>, transform_indices = @transform_6, window_bounds = array<i64: 512, 64>}, {transform_indices = @transform_7, window_bounds = array<i64: 1, 1, 256>}, {transform_indices = @transform_8, window_bounds = array<i64: 1, 128, 256>}]} {
    %c128_i32 = arith.constant 128 : i32
    %0 = arith.muli %arg1, %c128_i32 : i32
    %c128_i32_0 = arith.constant 128 : i32
    %1 = arith.subi %c128_i32_0, %0 : i32
    %2 = tpu.assume_multiple %1, 128 : i32
    %c0 = arith.constant 0 : index
    %c0_1 = arith.constant 0 : index
    %c0_2 = arith.constant 0 : index
    %3 = vector.load %arg2[%c0, %c0_1, %c0_2] : memref<1x128x256xbf16, #tpu.memory_space<vmem>>, vector<1x128x256xbf16>
    %4 = vector.shape_cast %3 : vector<1x128x256xbf16> to vector<128x256xbf16>
    %c0_3 = arith.constant 0 : index
    %c0_4 = arith.constant 0 : index
    %c0_5 = arith.constant 0 : index
    %5 = vector.load %arg3[%c0_3, %c0_4, %c0_5] : memref<1x256x256xbf16, #tpu.memory_space<vmem>>, vector<1x256x256xbf16>
    %6 = vector.shape_cast %5 : vector<1x256x256xbf16> to vector<256x256xbf16>
    %c0_6 = arith.constant 0 : index
    %c0_7 = arith.constant 0 : index
    %7 = vector.load %arg6[%c0_6, %c0_7] : memref<4x64xf32, #tpu.memory_space<vmem>>, vector<4x64xf32>
    %c0_8 = arith.constant 0 : index
    %c0_9 = arith.constant 0 : index
    %8 = vector.load %arg7[%c0_8, %c0_9] : memref<4x64xf32, #tpu.memory_space<vmem>>, vector<4x64xf32>
    %c0_10 = arith.constant 0 : index
    %c0_11 = arith.constant 0 : index
    %c0_12 = arith.constant 0 : index
    %9 = vector.load %arg9[%c0_10, %c0_11, %c0_12] : memref<1x1x256xi32, #tpu.memory_space<vmem>>, vector<1x1x256xi32>
    %10 = vector.shape_cast %9 : vector<1x1x256xi32> to vector<1x256xi32>
    %c0_i32 = arith.constant 0 : i32
    %11 = vector.broadcast %c0_i32 : i32 to vector<1x256xi32>
    %12 = arith.cmpi eq, %10, %11 : vector<1x256xi32>
    %c0_13 = arith.constant 0 : index
    %c0_14 = arith.constant 0 : index
    %13 = vector.load %arg4[%c0_13, %c0_14] : memref<256x256xbf16, #tpu.memory_space<vmem>>, vector<256x256xbf16>
    %cst = arith.constant dense<0.000000e+00> : vector<128x256xf32>
    %14 = tpu.matmul %4, %13, %cst {dimension_numbers = #tpu.dot_dimension_numbers<[1], [0], [0], [1], [0, 0, 1, 1], [], []>} : vector<128x256xbf16>, vector<256x256xbf16>, vector<128x256xf32> -> vector<128x256xf32>
    %c0_15 = arith.constant 0 : index
    %c0_16 = arith.constant 0 : index
    %15 = vector.load %arg5[%c0_15, %c0_16] : memref<256x256xbf16, #tpu.memory_space<vmem>>, vector<256x256xbf16>
    %cst_17 = arith.constant dense<0.000000e+00> : vector<256x256xf32>
    %16 = tpu.matmul %6, %15, %cst_17 {dimension_numbers = #tpu.dot_dimension_numbers<[1], [0], [0], [1], [0, 0, 1, 1], [], []>} : vector<256x256xbf16>, vector<256x256xbf16>, vector<256x256xf32> -> vector<256x256xf32>
    %17 = arith.truncf %16 : vector<256x256xf32> to vector<256x256xbf16>
    %18 = arith.index_cast %2 : i32 to index
    %c0_18 = arith.constant 0 : index
    %19 = vector.load %arg8[%18, %c0_18] : memref<512x64xbf16, #tpu.memory_space<vmem>>, vector<384x64xbf16>
    %20 = vector.extract_strided_slice %14 {offsets = [0, 0], sizes = [128, 64], strides = [1, 1]} : vector<128x256xf32> to vector<128x64xf32>
    %21 = vector.extract_strided_slice %6 {offsets = [0, 0], sizes = [256, 64], strides = [1, 1]} : vector<256x256xbf16> to vector<256x64xbf16>
    %22 = vector.extract_strided_slice %17 {offsets = [0, 0], sizes = [256, 64], strides = [1, 1]} : vector<256x256xbf16> to vector<256x64xbf16>
    %23 = vector.extract_strided_slice %7 {offsets = [0, 0], sizes = [1, 64], strides = [1, 1]} : vector<4x64xf32> to vector<1x64xf32>
    %24 = vector.broadcast %23 : vector<1x64xf32> to vector<128x64xf32>
    %25 = arith.addf %20, %24 : vector<128x64xf32>
    %26 = arith.truncf %25 : vector<128x64xf32> to vector<128x64xbf16>
    %cst_19 = arith.constant dense<0.000000e+00> : vector<128x256xf32>
    %27 = tpu.matmul %26, %21, %cst_19 {dimension_numbers = #tpu.dot_dimension_numbers<[1], [1], [0], [0], [0, 0, 1, 0], [], []>} : vector<128x64xbf16>, vector<256x64xbf16>, vector<128x256xf32> -> vector<128x256xf32>
    %28 = vector.extract_strided_slice %8 {offsets = [0, 0], sizes = [1, 64], strides = [1, 1]} : vector<4x64xf32> to vector<1x64xf32>
    %29 = vector.broadcast %28 : vector<1x64xf32> to vector<128x64xf32>
    %30 = arith.addf %20, %29 : vector<128x64xf32>
    %31 = arith.truncf %30 : vector<128x64xf32> to vector<128x64xbf16>
    %cst_20 = arith.constant dense<0.000000e+00> : vector<128x384xf32>
    %32 = tpu.matmul %31, %19, %cst_20 {dimension_numbers = #tpu.dot_dimension_numbers<[1], [1], [0], [0], [0, 0, 1, 0], [], []>} : vector<128x64xbf16>, vector<384x64xbf16>, vector<128x384xf32> -> vector<128x384xf32>
    %c256_i32 = arith.constant 256 : i32
    %33 = tpu.dynamic_rotate %32 by %c256_i32 dim 1 {stride = 1 : si32, stride_dimension = 0 : si32} : vector<128x384xf32>, i32 -> vector<128x384xf32>
    %34 = vector.extract_strided_slice %33 {offsets = [0, 0], sizes = [128, 256], strides = [1, 1]} : vector<128x384xf32> to vector<128x256xf32>
    %35 = arith.addf %27, %34 : vector<128x256xf32>
    %cst_21 = arith.constant -1.000000e+30 : f32
    %36 = vector.shape_cast %12 : vector<1x256xi1> to vector<1x256xi1>
    %37 = vector.broadcast %36 : vector<1x256xi1> to vector<128x256xi1>
    %38 = vector.broadcast %cst_21 : f32 to vector<128x256xf32>
    %39 = arith.select %37, %38, %35 : vector<128x256xi1>, vector<128x256xf32>
    %cst_22 = arith.constant dense<0xFF800000> : vector<128xf32>
    %40 = vector.multi_reduction <maximumf>, %39, %cst_22 [1] : vector<128x256xf32> to vector<128xf32>
    %41 = vector.shape_cast %40 : vector<128xf32> to vector<128x1xf32>
    %42 = vector.broadcast %41 : vector<128x1xf32> to vector<128x256xf32>
    %43 = arith.subf %39, %42 : vector<128x256xf32>
    %44 = math.exp %43 : vector<128x256xf32>
    %cst_23 = arith.constant dense<0.000000e+00> : vector<128xf32>
    %45 = vector.multi_reduction <add>, %44, %cst_23 [1] : vector<128x256xf32> to vector<128xf32>
    %46 = vector.shape_cast %45 : vector<128xf32> to vector<128x1xf32>
    %47 = tpu.reciprocal %46 {approx = true} : vector<128x1xf32> -> vector<128x1xf32>
    %48 = vector.broadcast %47 : vector<128x1xf32> to vector<128x256xf32>
    %49 = arith.mulf %44, %48 : vector<128x256xf32>
    %50 = arith.truncf %49 : vector<128x256xf32> to vector<128x256xbf16>
    %cst_24 = arith.constant dense<0.000000e+00> : vector<128x64xf32>
    %51 = tpu.matmul %50, %22, %cst_24 {dimension_numbers = #tpu.dot_dimension_numbers<[1], [0], [0], [1], [0, 0, 1, 1], [], []>} : vector<128x256xbf16>, vector<256x64xbf16>, vector<128x64xf32> -> vector<128x64xf32>
    %c0_25 = arith.constant 0 : index
    %c0_26 = arith.constant 0 : index
    %c0_27 = arith.constant 0 : index
    %52 = vector.load %arg10[%c0_25, %c0_26, %c0_27] : memref<1x128x256xf32, #tpu.memory_space<vmem>>, vector<1x128x64xf32>
    %53 = vector.shape_cast %52 : vector<1x128x64xf32> to vector<128x64xf32>
    %54 = vector.shape_cast %51 : vector<128x64xf32> to vector<1x128x64xf32>
    tpu.vector_store %arg10[%c0_25, %c0_26, %c0_27], %54 {strides = array<i32>} : memref<1x128x256xf32, #tpu.memory_space<vmem>>, vector<1x128x64xf32>,
    %55 = vector.extract_strided_slice %14 {offsets = [0, 64], sizes = [128, 64], strides = [1, 1]} : vector<128x256xf32> to vector<128x64xf32>
    %56 = vector.extract_strided_slice %6 {offsets = [0, 64], sizes = [256, 64], strides = [1, 1]} : vector<256x256xbf16> to vector<256x64xbf16>
    %57 = vector.extract_strided_slice %17 {offsets = [0, 64], sizes = [256, 64], strides = [1, 1]} : vector<256x256xbf16> to vector<256x64xbf16>
    %58 = vector.extract_strided_slice %7 {offsets = [1, 0], sizes = [1, 64], strides = [1, 1]} : vector<4x64xf32> to vector<1x64xf32>
    %59 = vector.broadcast %58 : vector<1x64xf32> to vector<128x64xf32>
    %60 = arith.addf %55, %59 : vector<128x64xf32>
    %61 = arith.truncf %60 : vector<128x64xf32> to vector<128x64xbf16>
    %cst_28 = arith.constant dense<0.000000e+00> : vector<128x256xf32>
    %62 = tpu.matmul %61, %56, %cst_28 {dimension_numbers = #tpu.dot_dimension_numbers<[1], [1], [0], [0], [0, 0, 1, 0], [], []>} : vector<128x64xbf16>, vector<256x64xbf16>, vector<128x256xf32> -> vector<128x256xf32>
    %63 = vector.extract_strided_slice %8 {offsets = [1, 0], sizes = [1, 64], strides = [1, 1]} : vector<4x64xf32> to vector<1x64xf32>
    %64 = vector.broadcast %63 : vector<1x64xf32> to vector<128x64xf32>
    %65 = arith.addf %55, %64 : vector<128x64xf32>
    %66 = arith.truncf %65 : vector<128x64xf32> to vector<128x64xbf16>
    %cst_29 = arith.constant dense<0.000000e+00> : vector<128x384xf32>
    %67 = tpu.matmul %66, %19, %cst_29 {dimension_numbers = #tpu.dot_dimension_numbers<[1], [1], [0], [0], [0, 0, 1, 0], [], []>} : vector<128x64xbf16>, vector<384x64xbf16>, vector<128x384xf32> -> vector<128x384xf32>
    %c256_i32_30 = arith.constant 256 : i32
    %68 = tpu.dynamic_rotate %67 by %c256_i32_30 dim 1 {stride = 1 : si32, stride_dimension = 0 : si32} : vector<128x384xf32>, i32 -> vector<128x384xf32>
    %69 = vector.extract_strided_slice %68 {offsets = [0, 0], sizes = [128, 256], strides = [1, 1]} : vector<128x384xf32> to vector<128x256xf32>
    %70 = arith.addf %62, %69 : vector<128x256xf32>
    %cst_31 = arith.constant -1.000000e+30 : f32
    %71 = vector.shape_cast %12 : vector<1x256xi1> to vector<1x256xi1>
    %72 = vector.broadcast %71 : vector<1x256xi1> to vector<128x256xi1>
    %73 = vector.broadcast %cst_31 : f32 to vector<128x256xf32>
    %74 = arith.select %72, %73, %70 : vector<128x256xi1>, vector<128x256xf32>
    %cst_32 = arith.constant dense<0xFF800000> : vector<128xf32>
    %75 = vector.multi_reduction <maximumf>, %74, %cst_32 [1] : vector<128x256xf32> to vector<128xf32>
    %76 = vector.shape_cast %75 : vector<128xf32> to vector<128x1xf32>
    %77 = vector.broadcast %76 : vector<128x1xf32> to vector<128x256xf32>
    %78 = arith.subf %74, %77 : vector<128x256xf32>
    %79 = math.exp %78 : vector<128x256xf32>
    %cst_33 = arith.constant dense<0.000000e+00> : vector<128xf32>
    %80 = vector.multi_reduction <add>, %79, %cst_33 [1] : vector<128x256xf32> to vector<128xf32>
    %81 = vector.shape_cast %80 : vector<128xf32> to vector<128x1xf32>
    %82 = tpu.reciprocal %81 {approx = true} : vector<128x1xf32> -> vector<128x1xf32>
    %83 = vector.broadcast %82 : vector<128x1xf32> to vector<128x256xf32>
    %84 = arith.mulf %79, %83 : vector<128x256xf32>
    %85 = arith.truncf %84 : vector<128x256xf32> to vector<128x256xbf16>
    %cst_34 = arith.constant dense<0.000000e+00> : vector<128x64xf32>
    %86 = tpu.matmul %85, %57, %cst_34 {dimension_numbers = #tpu.dot_dimension_numbers<[1], [0], [0], [1], [0, 0, 1, 1], [], []>} : vector<128x256xbf16>, vector<256x64xbf16>, vector<128x64xf32> -> vector<128x64xf32>
    %c0_35 = arith.constant 0 : index
    %c0_36 = arith.constant 0 : index
    %c64 = arith.constant 64 : index
    %87 = vector.load %arg10[%c0_35, %c0_36, %c64] : memref<1x128x256xf32, #tpu.memory_space<vmem>>, vector<1x128x64xf32>
    %88 = vector.shape_cast %87 : vector<1x128x64xf32> to vector<128x64xf32>
    %89 = vector.shape_cast %86 : vector<128x64xf32> to vector<1x128x64xf32>
    tpu.vector_store %arg10[%c0_35, %c0_36, %c64], %89 {strides = array<i32>} : memref<1x128x256xf32, #tpu.memory_space<vmem>>, vector<1x128x64xf32>,
    %90 = vector.extract_strided_slice %14 {offsets = [0, 128], sizes = [128, 64], strides = [1, 1]} : vector<128x256xf32> to vector<128x64xf32>
    %91 = vector.extract_strided_slice %6 {offsets = [0, 128], sizes = [256, 64], strides = [1, 1]} : vector<256x256xbf16> to vector<256x64xbf16>
    %92 = vector.extract_strided_slice %17 {offsets = [0, 128], sizes = [256, 64], strides = [1, 1]} : vector<256x256xbf16> to vector<256x64xbf16>
    %93 = vector.extract_strided_slice %7 {offsets = [2, 0], sizes = [1, 64], strides = [1, 1]} : vector<4x64xf32> to vector<1x64xf32>
    %94 = vector.broadcast %93 : vector<1x64xf32> to vector<128x64xf32>
    %95 = arith.addf %90, %94 : vector<128x64xf32>
    %96 = arith.truncf %95 : vector<128x64xf32> to vector<128x64xbf16>
    %cst_37 = arith.constant dense<0.000000e+00> : vector<128x256xf32>
    %97 = tpu.matmul %96, %91, %cst_37 {dimension_numbers = #tpu.dot_dimension_numbers<[1], [1], [0], [0], [0, 0, 1, 0], [], []>} : vector<128x64xbf16>, vector<256x64xbf16>, vector<128x256xf32> -> vector<128x256xf32>
    %98 = vector.extract_strided_slice %8 {offsets = [2, 0], sizes = [1, 64], strides = [1, 1]} : vector<4x64xf32> to vector<1x64xf32>
    %99 = vector.broadcast %98 : vector<1x64xf32> to vector<128x64xf32>
    %100 = arith.addf %90, %99 : vector<128x64xf32>
    %101 = arith.truncf %100 : vector<128x64xf32> to vector<128x64xbf16>
    %cst_38 = arith.constant dense<0.000000e+00> : vector<128x384xf32>
    %102 = tpu.matmul %101, %19, %cst_38 {dimension_numbers = #tpu.dot_dimension_numbers<[1], [1], [0], [0], [0, 0, 1, 0], [], []>} : vector<128x64xbf16>, vector<384x64xbf16>, vector<128x384xf32> -> vector<128x384xf32>
    %c256_i32_39 = arith.constant 256 : i32
    %103 = tpu.dynamic_rotate %102 by %c256_i32_39 dim 1 {stride = 1 : si32, stride_dimension = 0 : si32} : vector<128x384xf32>, i32 -> vector<128x384xf32>
    %104 = vector.extract_strided_slice %103 {offsets = [0, 0], sizes = [128, 256], strides = [1, 1]} : vector<128x384xf32> to vector<128x256xf32>
    %105 = arith.addf %97, %104 : vector<128x256xf32>
    %cst_40 = arith.constant -1.000000e+30 : f32
    %106 = vector.shape_cast %12 : vector<1x256xi1> to vector<1x256xi1>
    %107 = vector.broadcast %106 : vector<1x256xi1> to vector<128x256xi1>
    %108 = vector.broadcast %cst_40 : f32 to vector<128x256xf32>
    %109 = arith.select %107, %108, %105 : vector<128x256xi1>, vector<128x256xf32>
    %cst_41 = arith.constant dense<0xFF800000> : vector<128xf32>
    %110 = vector.multi_reduction <maximumf>, %109, %cst_41 [1] : vector<128x256xf32> to vector<128xf32>
    %111 = vector.shape_cast %110 : vector<128xf32> to vector<128x1xf32>
    %112 = vector.broadcast %111 : vector<128x1xf32> to vector<128x256xf32>
    %113 = arith.subf %109, %112 : vector<128x256xf32>
    %114 = math.exp %113 : vector<128x256xf32>
    %cst_42 = arith.constant dense<0.000000e+00> : vector<128xf32>
    %115 = vector.multi_reduction <add>, %114, %cst_42 [1] : vector<128x256xf32> to vector<128xf32>
    %116 = vector.shape_cast %115 : vector<128xf32> to vector<128x1xf32>
    %117 = tpu.reciprocal %116 {approx = true} : vector<128x1xf32> -> vector<128x1xf32>
    %118 = vector.broadcast %117 : vector<128x1xf32> to vector<128x256xf32>
    %119 = arith.mulf %114, %118 : vector<128x256xf32>
    %120 = arith.truncf %119 : vector<128x256xf32> to vector<128x256xbf16>
    %cst_43 = arith.constant dense<0.000000e+00> : vector<128x64xf32>
    %121 = tpu.matmul %120, %92, %cst_43 {dimension_numbers = #tpu.dot_dimension_numbers<[1], [0], [0], [1], [0, 0, 1, 1], [], []>} : vector<128x256xbf16>, vector<256x64xbf16>, vector<128x64xf32> -> vector<128x64xf32>
    %c0_44 = arith.constant 0 : index
    %c0_45 = arith.constant 0 : index
    %c128 = arith.constant 128 : index
    %122 = vector.load %arg10[%c0_44, %c0_45, %c128] : memref<1x128x256xf32, #tpu.memory_space<vmem>>, vector<1x128x64xf32>
    %123 = vector.shape_cast %122 : vector<1x128x64xf32> to vector<128x64xf32>
    %124 = vector.shape_cast %121 : vector<128x64xf32> to vector<1x128x64xf32>
    tpu.vector_store %arg10[%c0_44, %c0_45, %c128], %124 {strides = array<i32>} : memref<1x128x256xf32, #tpu.memory_space<vmem>>, vector<1x128x64xf32>,
    %125 = vector.extract_strided_slice %14 {offsets = [0, 192], sizes = [128, 64], strides = [1, 1]} : vector<128x256xf32> to vector<128x64xf32>
    %126 = vector.extract_strided_slice %6 {offsets = [0, 192], sizes = [256, 64], strides = [1, 1]} : vector<256x256xbf16> to vector<256x64xbf16>
    %127 = vector.extract_strided_slice %17 {offsets = [0, 192], sizes = [256, 64], strides = [1, 1]} : vector<256x256xbf16> to vector<256x64xbf16>
    %128 = vector.extract_strided_slice %7 {offsets = [3, 0], sizes = [1, 64], strides = [1, 1]} : vector<4x64xf32> to vector<1x64xf32>
    %129 = vector.broadcast %128 : vector<1x64xf32> to vector<128x64xf32>
    %130 = arith.addf %125, %129 : vector<128x64xf32>
    %131 = arith.truncf %130 : vector<128x64xf32> to vector<128x64xbf16>
    %cst_46 = arith.constant dense<0.000000e+00> : vector<128x256xf32>
    %132 = tpu.matmul %131, %126, %cst_46 {dimension_numbers = #tpu.dot_dimension_numbers<[1], [1], [0], [0], [0, 0, 1, 0], [], []>} : vector<128x64xbf16>, vector<256x64xbf16>, vector<128x256xf32> -> vector<128x256xf32>
    %133 = vector.extract_strided_slice %8 {offsets = [3, 0], sizes = [1, 64], strides = [1, 1]} : vector<4x64xf32> to vector<1x64xf32>
    %134 = vector.broadcast %133 : vector<1x64xf32> to vector<128x64xf32>
    %135 = arith.addf %125, %134 : vector<128x64xf32>
    %136 = arith.truncf %135 : vector<128x64xf32> to vector<128x64xbf16>
    %cst_47 = arith.constant dense<0.000000e+00> : vector<128x384xf32>
    %137 = tpu.matmul %136, %19, %cst_47 {dimension_numbers = #tpu.dot_dimension_numbers<[1], [1], [0], [0], [0, 0, 1, 0], [], []>} : vector<128x64xbf16>, vector<384x64xbf16>, vector<128x384xf32> -> vector<128x384xf32>
    %c256_i32_48 = arith.constant 256 : i32
    %138 = tpu.dynamic_rotate %137 by %c256_i32_48 dim 1 {stride = 1 : si32, stride_dimension = 0 : si32} : vector<128x384xf32>, i32 -> vector<128x384xf32>
    %139 = vector.extract_strided_slice %138 {offsets = [0, 0], sizes = [128, 256], strides = [1, 1]} : vector<128x384xf32> to vector<128x256xf32>
    %140 = arith.addf %132, %139 : vector<128x256xf32>
    %cst_49 = arith.constant -1.000000e+30 : f32
    %141 = vector.shape_cast %12 : vector<1x256xi1> to vector<1x256xi1>
    %142 = vector.broadcast %141 : vector<1x256xi1> to vector<128x256xi1>
    %143 = vector.broadcast %cst_49 : f32 to vector<128x256xf32>
    %144 = arith.select %142, %143, %140 : vector<128x256xi1>, vector<128x256xf32>
    %cst_50 = arith.constant dense<0xFF800000> : vector<128xf32>
    %145 = vector.multi_reduction <maximumf>, %144, %cst_50 [1] : vector<128x256xf32> to vector<128xf32>
    %146 = vector.shape_cast %145 : vector<128xf32> to vector<128x1xf32>
    %147 = vector.broadcast %146 : vector<128x1xf32> to vector<128x256xf32>
    %148 = arith.subf %144, %147 : vector<128x256xf32>
    %149 = math.exp %148 : vector<128x256xf32>
    %cst_51 = arith.constant dense<0.000000e+00> : vector<128xf32>
    %150 = vector.multi_reduction <add>, %149, %cst_51 [1] : vector<128x256xf32> to vector<128xf32>
    %151 = vector.shape_cast %150 : vector<128xf32> to vector<128x1xf32>
    %152 = tpu.reciprocal %151 {approx = true} : vector<128x1xf32> -> vector<128x1xf32>
    %153 = vector.broadcast %152 : vector<128x1xf32> to vector<128x256xf32>
    %154 = arith.mulf %149, %153 : vector<128x256xf32>
    %155 = arith.truncf %154 : vector<128x256xf32> to vector<128x256xbf16>
    %cst_52 = arith.constant dense<0.000000e+00> : vector<128x64xf32>
    %156 = tpu.matmul %155, %127, %cst_52 {dimension_numbers = #tpu.dot_dimension_numbers<[1], [0], [0], [1], [0, 0, 1, 1], [], []>} : vector<128x256xbf16>, vector<256x64xbf16>, vector<128x64xf32> -> vector<128x64xf32>
    %c0_53 = arith.constant 0 : index
    %c0_54 = arith.constant 0 : index
    %c192 = arith.constant 192 : index
    %157 = vector.load %arg10[%c0_53, %c0_54, %c192] : memref<1x128x256xf32, #tpu.memory_space<vmem>>, vector<1x128x64xf32>
    %158 = vector.shape_cast %157 : vector<1x128x64xf32> to vector<128x64xf32>
    %159 = vector.shape_cast %156 : vector<128x64xf32> to vector<1x128x64xf32>
    tpu.vector_store %arg10[%c0_53, %c0_54, %c192], %159 {strides = array<i32>} : memref<1x128x256xf32, #tpu.memory_space<vmem>>, vector<1x128x64xf32>,
    return
  }
  func.func @transform_0(%arg0: i32, %arg1: i32) -> (i32, i32, i32) {
    %c0_i32 = arith.constant 0 : i32
    %c0_i32_0 = arith.constant 0 : i32
    return %arg0, %arg1, %c0_i32 : i32, i32, i32
  }
  func.func @transform_1(%arg0: i32, %arg1: i32) -> (i32, i32, i32) {
    %c0_i32 = arith.constant 0 : i32
    %c0_i32_0 = arith.constant 0 : i32
    %c0_i32_1 = arith.constant 0 : i32
    return %arg0, %c0_i32, %c0_i32_0 : i32, i32, i32
  }
  func.func @transform_2(%arg0: i32, %arg1: i32) -> (i32, i32) {
    %c0_i32 = arith.constant 0 : i32
    %c0_i32_0 = arith.constant 0 : i32
    %c0_i32_1 = arith.constant 0 : i32
    return %c0_i32, %c0_i32_0 : i32, i32
  }
  func.func @transform_3(%arg0: i32, %arg1: i32) -> (i32, i32) {
    %c0_i32 = arith.constant 0 : i32
    %c0_i32_0 = arith.constant 0 : i32
    %c0_i32_1 = arith.constant 0 : i32
    return %c0_i32, %c0_i32_0 : i32, i32
  }
  func.func @transform_4(%arg0: i32, %arg1: i32) -> (i32, i32) {
    %c0_i32 = arith.constant 0 : i32
    %c0_i32_0 = arith.constant 0 : i32
    %c0_i32_1 = arith.constant 0 : i32
    return %c0_i32, %c0_i32_0 : i32, i32
  }
  func.func @transform_5(%arg0: i32, %arg1: i32) -> (i32, i32) {
    %c0_i32 = arith.constant 0 : i32
    %c0_i32_0 = arith.constant 0 : i32
    %c0_i32_1 = arith.constant 0 : i32
    return %c0_i32, %c0_i32_0 : i32, i32
  }
  func.func @transform_6(%arg0: i32, %arg1: i32) -> (i32, i32) {
    %c0_i32 = arith.constant 0 : i32
    %c0_i32_0 = arith.constant 0 : i32
    %c0_i32_1 = arith.constant 0 : i32
    return %c0_i32, %c0_i32_0 : i32, i32
  }
  func.func @transform_7(%arg0: i32, %arg1: i32) -> (i32, i32, i32) {
    %c0_i32 = arith.constant 0 : i32
    %c0_i32_0 = arith.constant 0 : i32
    %c0_i32_1 = arith.constant 0 : i32
    return %arg0, %c0_i32, %c0_i32_0 : i32, i32, i32
  }
  func.func @transform_8(%arg0: i32, %arg1: i32) -> (i32, i32, i32) {
    %c0_i32 = arith.constant 0 : i32
    %c0_i32_0 = arith.constant 0 : i32
    return %arg0, %arg1, %c0_i32 : i32, i32, i32
  }
}

</mosaic_0001>

<llo_original>
// kernel: tpu_custom_call.1
$region0: #{tpu_custom_call.1}
  #allocation0 [shape = 'u32[]', space=smem, size = 0x4, offset = 0x4, fixed_abs, tag = 'smem constant byte address 0x4 - core index']
  #allocation1 [shape = 'u32[144,128]{1,0:T(1,128)}', space=vmem, size = 0x12000, scoped, tag = 'internal scratch']
  %s0 = inlined_call_operand.hbm [shape: bf16[2,256,256], index: 0, kind: input, shape index: {}]
  %s1 = inlined_call_operand.hbm [shape: bf16[2,256,256], index: 1, kind: input, shape index: {}]
  %s2 = inlined_call_operand.vmem [shape: bf16[256,256], index: 2, kind: input, shape index: {}]
  %s3 = inlined_call_operand.hbm [shape: bf16[256,256], index: 3, kind: input, shape index: {}]
  %s4 = inlined_call_operand.vmem [shape: f32[4,64], index: 4, kind: input, shape index: {}]
  %s5 = inlined_call_operand.vmem [shape: f32[4,64], index: 5, kind: input, shape index: {}]
  %s6 = inlined_call_operand.vmem [shape: bf16[512,64], index: 6, kind: input, shape index: {}]
  %s7 = inlined_call_operand.vmem [shape: s32[2,1,256], index: 7, kind: input, shape index: {}]
  %s8 = inlined_call_operand.hbm [shape: f32[2,256,256], index: 8, kind: output, shape index: {}]
  %s9 = sld [smem:[#allocation0]]
  $region77: #{tpu_custom_call.1} parent=0
    _
  %s11 = ssub.s32 1, %s9
  %s12 = scalar_select 0, %s11, %s9
  $region1: #{tpu_custom_call.1} parent=0
    #allocation2 [shape = 'u8[131072]{0}', space=vmem, size = 0x20000, scoped, tag = 'input window, operand 0']
    #allocation3 [shape = 's32[2]{0}', space=sflag, size = 0x8, scoped, tag = 'scoped memory for tpu_custom_call.1']
    #allocation4 [shape = 's32[2]{0}', space=sflag, size = 0x8, scoped, tag = 'scoped memory for tpu_custom_call.1']
    #allocation5 [shape = 'u8[262144]{0}', space=vmem, size = 0x40000, scoped, tag = 'input window, operand 1']
    #allocation6 [shape = 's32[2]{0}', space=sflag, size = 0x8, scoped, tag = 'scoped memory for tpu_custom_call.1']
    #allocation7 [shape = 'u8[131072]{0}', space=vmem, size = 0x20000, scoped, tag = 'input window, operand 3, single buffered']
    #allocation8 [shape = 'u8[262144]{0}', space=vmem, size = 0x40000, scoped, tag = 'output window, operand 0']
    %13 = vsyncpa [#allocation3], 0
    %s14 = scalar_lea.sflag [#allocation3], 1
    %15 = vsyncpa %s14, 0
    %16 = vsyncpa [#allocation6], 0
    %s17 = scalar_lea.sflag [#allocation6], 1
    %18 = vsyncpa %s17, 0
    %19 = vsyncpa [#allocation4], 0
    %s20 = scalar_lea.sflag [#allocation4], 1
    %21 = vsyncpa %s20, 0
    loop: start=0, step=1, limit=6
    $region2: #{tpu_custom_call.1} parent=1 // loop_pre_header
      _
    $region3: #{tpu_custom_call.1} parent=1 // loop_header
      %s23 = sphi 0, %s27
      %p24 = scmp.ge.s32.totalorder %s23, 6
      %s30 = sphi 0, %s42
      %s31 = sphi 0, %s38
      %s32 = sphi 0, %s30
      %s33 = sphi 0, %s31
      %s34 = sphi 0, %s32
      %s35 = sphi 0, %s33
      %s47 = sphi 0, %s49
      %s50 = sphi 0, %s47
      %s51 = sphi 0, %s50
      %s67 = sphi 0, %s51
      %s73 = sphi 0, %s75
      %s76 = sphi 0, %s73
      %s77 = sphi 0, %s76
      %s93 = sphi 0, %s77
      %s97 = sphi 0, %s97
      %s99 = sphi 0, %s97
      %s100 = sphi 0, %s99
      %s114 = sphi 0, %s100
      %s118 = sphi 0, %s118
      %s120 = sphi 0, %s118
      %s121 = sphi 0, %s120
      %s135 = sphi 0, %s121
      %s139 = sphi 0, %s139
      %s141 = sphi 0, %s139
      %s142 = sphi 0, %s141
      %s156 = sphi 0, %s142
      %s160 = sphi 0, %s160
      %s162 = sphi 0, %s160
      %s163 = sphi 0, %s162
      %s177 = sphi 0, %s163
      %s181 = sphi 0, %s181
      %s183 = sphi 0, %s181
      %s184 = sphi 0, %s183
      %s198 = sphi 0, %s184
      %s204 = sphi 0, %s206
      %s207 = sphi 0, %s204
      %s208 = sphi 0, %s207
      %s224 = sphi 0, %s208
      %s232 = sphi 0, %s234
      %s235 = sphi 0, %s232
      %s236 = sphi 0, %s235
      %s252 = sphi 0, %s236
    $region4: #{tpu_custom_call.1} parent=1 // loop_header_branch
      %26 = sbr.rel (%p24) target = $region8
    $region5: #{tpu_custom_call.1} parent=1 // loop_body
      %s28 = ssub.s32 %s23, 1
      %s29 = ssub.s32 %s23, 2
      %s36 = sadd.s32 1, %s31
      %p37 = scmp.ge.s32.totalorder %s36, 2
      %s38 = scalar_select %p37, 0, %s36
      %s39 = sadd.s32 1, %s30
      %s40 = scalar_select %p37, %s39, %s30
      %p41 = scmp.ge.s32.totalorder %s40, 2
      %s42 = scalar_select %p41, 0, %s40
      %s43 = ssub.s32 %s30, %s42
      %s44 = ssub.s32 %s31, %s38
      %s45 = sor.u32 %s43, %s44
      %p46 = scmp.eq.s32.totalorder %s45, 0
      %s48 = sadd.s32 %s47, 1
      %s49 = scalar_select %p46, %s47, %s48
      %p52 = pneg %p46
      %p53 = scmp.eq.s32.totalorder %s23, 3
      %p54 = por %p52, %p53
      %p55 = scmp.ne.s32.totalorder %s47, %s50
      %p56 = scmp.eq.s32.totalorder %s23, 0
      %p57 = por %p55, %p56
      %p58 = scmp.ne.s32.totalorder %s47, %s50
      %p59 = scmp.eq.s32.totalorder %s28, 3
      %p60 = por %p58, %p59
      %p61 = scmp.ne.s32.totalorder %s50, %s51
      %p62 = scmp.eq.s32.totalorder %s28, 0
      %p63 = por %p61, %p62
      %p64 = scmp.ne.s32.totalorder %s50, %s51
      %p65 = scmp.eq.s32.totalorder %s29, 3
      %p66 = por %p64, %p65
      %p68 = scmp.ne.s32.totalorder %s51, %s67
      %p69 = scmp.eq.s32.totalorder %s29, 0
      %p70 = por %p68, %p69
      %s71 = ssub.s32 %s30, %s42
      %p72 = scmp.eq.s32.totalorder %s71, 0
      %s74 = sadd.s32 %s73, 1
      %s75 = scalar_select %p72, %s73, %s74
      %p78 = pneg %p72
      %p79 = scmp.eq.s32.totalorder %s23, 3
      %p80 = por %p78, %p79
      %p81 = scmp.ne.s32.totalorder %s73, %s76
      %p82 = scmp.eq.s32.totalorder %s23, 0
      %p83 = por %p81, %p82
      %p84 = scmp.ne.s32.totalorder %s73, %s76
      %p85 = scmp.eq.s32.totalorder %s28, 3
      %p86 = por %p84, %p85
      %p87 = scmp.ne.s32.totalorder %s76, %s77
      %p88 = scmp.eq.s32.totalorder %s28, 0
      %p89 = por %p87, %p88
      %p90 = scmp.ne.s32.totalorder %s76, %s77
      %p91 = scmp.eq.s32.totalorder %s29, 3
      %p92 = por %p90, %p91
      %p94 = scmp.ne.s32.totalorder %s77, %s93
      %p95 = scmp.eq.s32.totalorder %s29, 0
      %p96 = por %p94, %p95
      %s98 = sadd.s32 %s97, 1
      %p101 = scmp.eq.s32.totalorder %s23, 3
      %p102 = scmp.ne.s32.totalorder %s97, %s99
      %p103 = scmp.eq.s32.totalorder %s23, 0
      %p104 = por %p102, %p103
      %p105 = scmp.ne.s32.totalorder %s97, %s99
      %p106 = scmp.eq.s32.totalorder %s28, 3
      %p107 = por %p105, %p106
      %p108 = scmp.ne.s32.totalorder %s99, %s100
      %p109 = scmp.eq.s32.totalorder %s28, 0
      %p110 = por %p108, %p109
      %p111 = scmp.ne.s32.totalorder %s99, %s100
      %p112 = scmp.eq.s32.totalorder %s29, 3
      %p113 = por %p111, %p112
      %p115 = scmp.ne.s32.totalorder %s100, %s114
      %p116 = scmp.eq.s32.totalorder %s29, 0
      %p117 = por %p115, %p116
      %s119 = sadd.s32 %s118, 1
      %p122 = scmp.eq.s32.totalorder %s23, 3
      %p123 = scmp.ne.s32.totalorder %s118, %s120
      %p124 = scmp.eq.s32.totalorder %s23, 0
      %p125 = por %p123, %p124
      %p126 = scmp.ne.s32.totalorder %s118, %s120
      %p127 = scmp.eq.s32.totalorder %s28, 3
      %p128 = por %p126, %p127
      %p129 = scmp.ne.s32.totalorder %s120, %s121
      %p130 = scmp.eq.s32.totalorder %s28, 0
      %p131 = por %p129, %p130
      %p132 = scmp.ne.s32.totalorder %s120, %s121
      %p133 = scmp.eq.s32.totalorder %s29, 3
      %p134 = por %p132, %p133
      %p136 = scmp.ne.s32.totalorder %s121, %s135
      %p137 = scmp.eq.s32.totalorder %s29, 0
      %p138 = por %p136, %p137
      %s140 = sadd.s32 %s139, 1
      %p143 = scmp.eq.s32.totalorder %s23, 3
      %p144 = scmp.ne.s32.totalorder %s139, %s141
      %p145 = scmp.eq.s32.totalorder %s23, 0
      %p146 = por %p144, %p145
      %p147 = scmp.ne.s32.totalorder %s139, %s141
      %p148 = scmp.eq.s32.totalorder %s28, 3
      %p149 = por %p147, %p148
      %p150 = scmp.ne.s32.totalorder %s141, %s142
      %p151 = scmp.eq.s32.totalorder %s28, 0
      %p152 = por %p150, %p151
      %p153 = scmp.ne.s32.totalorder %s141, %s142
      %p154 = scmp.eq.s32.totalorder %s29, 3
      %p155 = por %p153, %p154
      %p157 = scmp.ne.s32.totalorder %s142, %s156
      %p158 = scmp.eq.s32.totalorder %s29, 0
      %p159 = por %p157, %p158
      %s161 = sadd.s32 %s160, 1
      %p164 = scmp.eq.s32.totalorder %s23, 3
      %p165 = scmp.ne.s32.totalorder %s160, %s162
      %p166 = scmp.eq.s32.totalorder %s23, 0
      %p167 = por %p165, %p166
      %p168 = scmp.ne.s32.totalorder %s160, %s162
      %p169 = scmp.eq.s32.totalorder %s28, 3
      %p170 = por %p168, %p169
      %p171 = scmp.ne.s32.totalorder %s162, %s163
      %p172 = scmp.eq.s32.totalorder %s28, 0
      %p173 = por %p171, %p172
      %p174 = scmp.ne.s32.totalorder %s162, %s163
      %p175 = scmp.eq.s32.totalorder %s29, 3
      %p176 = por %p174, %p175
      %p178 = scmp.ne.s32.totalorder %s163, %s177
      %p179 = scmp.eq.s32.totalorder %s29, 0
      %p180 = por %p178, %p179
      %s182 = sadd.s32 %s181, 1
      %p185 = scmp.eq.s32.totalorder %s23, 3
      %p186 = scmp.ne.s32.totalorder %s181, %s183
      %p187 = scmp.eq.s32.totalorder %s23, 0
      %p188 = por %p186, %p187
      %p189 = scmp.ne.s32.totalorder %s181, %s183
      %p190 = scmp.eq.s32.totalorder %s28, 3
      %p191 = por %p189, %p190
      %p192 = scmp.ne.s32.totalorder %s183, %s184
      %p193 = scmp.eq.s32.totalorder %s28, 0
      %p194 = por %p192, %p193
      %p195 = scmp.ne.s32.totalorder %s183, %s184
      %p196 = scmp.eq.s32.totalorder %s29, 3
      %p197 = por %p195, %p196
      %p199 = scmp.ne.s32.totalorder %s184, %s198
      %p200 = scmp.eq.s32.totalorder %s29, 0
      %p201 = por %p199, %p200
      %s202 = ssub.s32 %s30, %s42
      %p203 = scmp.eq.s32.totalorder %s202, 0
      %s205 = sadd.s32 %s204, 1
      %s206 = scalar_select %p203, %s204, %s205
      %p209 = pneg %p203
      %p210 = scmp.eq.s32.totalorder %s23, 3
      %p211 = por %p209, %p210
      %p212 = scmp.ne.s32.totalorder %s204, %s207
      %p213 = scmp.eq.s32.totalorder %s23, 0
      %p214 = por %p212, %p213
      %p215 = scmp.ne.s32.totalorder %s204, %s207
      %p216 = scmp.eq.s32.totalorder %s28, 3
      %p217 = por %p215, %p216
      %p218 = scmp.ne.s32.totalorder %s207, %s208
      %p219 = scmp.eq.s32.totalorder %s28, 0
      %p220 = por %p218, %p219
      %p221 = scmp.ne.s32.totalorder %s207, %s208
      %p222 = scmp.eq.s32.totalorder %s29, 3
      %p223 = por %p221, %p222
      %p225 = scmp.ne.s32.totalorder %s208, %s224
      %p226 = scmp.eq.s32.totalorder %s29, 0
      %p227 = por %p225, %p226
      %s228 = ssub.s32 %s30, %s42
      %s229 = ssub.s32 %s31, %s38
      %s230 = sor.u32 %s228, %s229
      %p231 = scmp.eq.s32.totalorder %s230, 0
      %s233 = sadd.s32 %s232, 1
      %s234 = scalar_select %p231, %s232, %s233
      %p237 = pneg %p231
      %p238 = scmp.eq.s32.totalorder %s23, 3
      %p239 = por %p237, %p238
      %p240 = scmp.ne.s32.totalorder %s232, %s235
      %p241 = scmp.eq.s32.totalorder %s23, 0
      %p242 = por %p240, %p241
      %p243 = scmp.ne.s32.totalorder %s232, %s235
      %p244 = scmp.eq.s32.totalorder %s28, 3
      %p245 = por %p243, %p244
      %p246 = scmp.ne.s32.totalorder %s235, %s236
      %p247 = scmp.eq.s32.totalorder %s28, 0
      %p248 = por %p246, %p247
      %p249 = scmp.ne.s32.totalorder %s235, %s236
      %p250 = scmp.eq.s32.totalorder %s29, 3
      %p251 = por %p249, %p250
      %p253 = scmp.ne.s32.totalorder %s236, %s252
      %p254 = scmp.eq.s32.totalorder %s29, 0
      %p255 = por %p253, %p254
      %p256 = scmp.le.s32.totalorder 1, %s23
      %p257 = scmp.lt.s32.totalorder %s23, 5
      %p258 = pnand %p256, %p257
      %p259 = pneg %p258
      // Predicated region
      $region9: #{tpu_custom_call.1} parent=5 // pred_check
        _
      $region10: #{tpu_custom_call.1} parent=5 // pred_check_branch
        %261 = sbr.rel (%p258) target = $region12
      $region11: #{tpu_custom_call.1} parent=5 // pred_region
        %s262 = ssub.s32 %s23, 1
        // Predicated region
        $region13: #{tpu_custom_call.1} parent=11 // pred_check
          %p263 = pneg %p110
        $region14: #{tpu_custom_call.1} parent=11 // pred_check_branch
          %265 = sbr.rel (%p263) target = $region16
        $region15: #{tpu_custom_call.1} parent=11 // pred_region
          _
        $region16: #{tpu_custom_call.1} parent=11 // pred_fallthru
          _
        // Predicated region
        $region17: #{tpu_custom_call.1} parent=11 // pred_check
          %p266 = pneg %p131
        $region18: #{tpu_custom_call.1} parent=11 // pred_check_branch
          %268 = sbr.rel (%p266) target = $region20
        $region19: #{tpu_custom_call.1} parent=11 // pred_region
          %s270 = ssub.s32 4096, 4096
          %271 = vsyncadd [#allocation6], %s270
          %s272 = sshll.u32 [#allocation7], 4
          %s273 = int_to_ptr.vmem [resolvable:$true] %s272
          %278 = dma.hbm_to_vmem [thread:$0]  %s3, 4096, %s273, [#allocation6], 128, 128, 8
        $region20: #{tpu_custom_call.1} parent=11 // pred_fallthru
          _
        // Predicated region
        $region21: #{tpu_custom_call.1} parent=11 // pred_check
          %p279 = pneg %p152
        $region22: #{tpu_custom_call.1} parent=11 // pred_check_branch
          %281 = sbr.rel (%p279) target = $region24
        $region23: #{tpu_custom_call.1} parent=11 // pred_region
          _
        $region24: #{tpu_custom_call.1} parent=11 // pred_fallthru
          _
        // Predicated region
        $region25: #{tpu_custom_call.1} parent=11 // pred_check
          %p282 = pneg %p173
        $region26: #{tpu_custom_call.1} parent=11 // pred_check_branch
          %284 = sbr.rel (%p282) target = $region28
        $region27: #{tpu_custom_call.1} parent=11 // pred_region
          _
        $region28: #{tpu_custom_call.1} parent=11 // pred_fallthru
          _
        // Predicated region
        $region29: #{tpu_custom_call.1} parent=11 // pred_check
          %p285 = pneg %p194
        $region30: #{tpu_custom_call.1} parent=11 // pred_check_branch
          %287 = sbr.rel (%p285) target = $region32
        $region31: #{tpu_custom_call.1} parent=11 // pred_region
          _
        $region32: #{tpu_custom_call.1} parent=11 // pred_fallthru
          _
      $region12: #{tpu_custom_call.1} parent=5 // pred_fallthru
        _
      %p288 = scmp.lt.s32.totalorder %s23, 4
      // Predicated region
      $region33: #{tpu_custom_call.1} parent=5 // pred_check
        %p289 = pneg %p288
      $region34: #{tpu_custom_call.1} parent=5 // pred_check_branch
        %291 = sbr.rel (%p289) target = $region36
      $region35: #{tpu_custom_call.1} parent=5 // pred_region
        // Predicated region
        $region37: #{tpu_custom_call.1} parent=35 // pred_check
          %p292 = pneg %p57
        $region38: #{tpu_custom_call.1} parent=35 // pred_check_branch
          %294 = sbr.rel (%p292) target = $region40
        $region39: #{tpu_custom_call.1} parent=35 // pred_region
          %s295 = sand.u32 %s47, 1
          %s296 = scalar_lea.sflag [#allocation3], %s295
          %s297 = sand.u32 %s47, 1
          %s298 = smul.addr %s297, 128
          %s299 = scalar_lea.vmem [#allocation2], %s298
          %s300 = smul.u32 16, %s31
          %s302 = ssub.s32 2048, 2048
          %303 = vsyncadd %s296, %s302
          %s304 = smul.addr %s300, 2
          %s305 = smul.addr %s30, 64
          %s306 = sadd.s32 %s304, %s305
          %s307 = smul.addr %s306, 64
          %s308 = scalar_lea.hbm %s0, %s307
          %s309 = sshll.u32 %s299, 4
          %s310 = int_to_ptr.vmem [resolvable:$true] %s309
          %315 = dma.hbm_to_vmem [thread:$0]  %s308, 2048, %s310, %s296, 128, 128, 8
        $region40: #{tpu_custom_call.1} parent=35 // pred_fallthru
          _
        // Predicated region
        $region41: #{tpu_custom_call.1} parent=35 // pred_check
          %p316 = pneg %p83
        $region42: #{tpu_custom_call.1} parent=35 // pred_check_branch
          %318 = sbr.rel (%p316) target = $region44
        $region43: #{tpu_custom_call.1} parent=35 // pred_region
          %s319 = sand.u32 %s23, 1
          %s320 = scalar_lea.sflag [#allocation6], %s319
          %s321 = sand.u32 %s73, 1
          %s322 = smul.addr %s321, 256
          %s323 = scalar_lea.vmem [#allocation5], %s322
          %s325 = ssub.s32 4096, 4096
          %326 = vsyncadd %s320, %s325
          %s327 = smul.addr %s30, 64
          %s328 = smul.addr %s327, 64
          %s329 = scalar_lea.hbm %s1, %s328
          %s330 = sshll.u32 %s323, 4
          %s331 = int_to_ptr.vmem [resolvable:$true] %s330
          %336 = dma.hbm_to_vmem [thread:$0]  %s329, 4096, %s331, %s320, 128, 128, 8
        $region44: #{tpu_custom_call.1} parent=35 // pred_fallthru
          _
        // Predicated region
        $region45: #{tpu_custom_call.1} parent=35 // pred_check
          %p337 = pneg %p214
        $region46: #{tpu_custom_call.1} parent=35 // pred_check_branch
          %339 = sbr.rel (%p337) target = $region48
        $region47: #{tpu_custom_call.1} parent=35 // pred_region
          %p340 = scmp.lt.s32.totalorder %s30, 1
          %s341 = scalar_select %p340, %s30, 1
          %s342 = smul.addr %s341, 2
          %s343 = scalar_lea.vmem %s7, %s342
        $region48: #{tpu_custom_call.1} parent=35 // pred_fallthru
          _
      $region36: #{tpu_custom_call.1} parent=5 // pred_fallthru
        _
      %p344 = scmp.le.s32.totalorder 1, %s23
      %p345 = scmp.lt.s32.totalorder %s23, 5
      %p346 = pnand %p344, %p345
      %p347 = pneg %p346
      // Predicated region
      $region49: #{tpu_custom_call.1} parent=5 // pred_check
        _
      $region50: #{tpu_custom_call.1} parent=5 // pred_check_branch
        %349 = sbr.rel (%p346) target = $region52
      $region51: #{tpu_custom_call.1} parent=5 // pred_region
        %s350 = ssub.s32 %s23, 1
        %s351 = sand.u32 %s50, 1
        %s352 = scalar_lea.sflag [#allocation3], %s351
        %s353 = sand.u32 %s50, 1
        %s354 = smul.addr %s353, 128
        %s355 = scalar_lea.vmem [#allocation2], %s354
        // Predicated region
        $region53: #{tpu_custom_call.1} parent=51 // pred_check
          %p356 = pneg %p63
        $region54: #{tpu_custom_call.1} parent=51 // pred_check_branch
          %358 = sbr.rel (%p356) target = $region56
        $region55: #{tpu_custom_call.1} parent=51 // pred_region
          %359 = dma.done %s352, 2048
        $region56: #{tpu_custom_call.1} parent=51 // pred_fallthru
          _
        %s360 = sand.u32 %s28, 1
        %s361 = scalar_lea.sflag [#allocation6], %s360
        %s362 = sand.u32 %s76, 1
        %s363 = smul.addr %s362, 256
        %s364 = scalar_lea.vmem [#allocation5], %s363
        // Predicated region
        $region57: #{tpu_custom_call.1} parent=51 // pred_check
          %p365 = pneg %p89
        $region58: #{tpu_custom_call.1} parent=51 // pred_check_branch
          %367 = sbr.rel (%p365) target = $region60
        $region59: #{tpu_custom_call.1} parent=51 // pred_region
          %368 = dma.done %s361, 4096
        $region60: #{tpu_custom_call.1} parent=51 // pred_fallthru
          _
        // Predicated region
        $region61: #{tpu_custom_call.1} parent=51 // pred_check
          %p369 = pneg %p131
        $region62: #{tpu_custom_call.1} parent=51 // pred_check_branch
          %371 = sbr.rel (%p369) target = $region64
        $region63: #{tpu_custom_call.1} parent=51 // pred_region
          %372 = dma.done [#allocation6], 4096
        $region64: #{tpu_custom_call.1} parent=51 // pred_fallthru
          _
        %s373 = sand.u32 %s50, 1
        %s374 = scalar_lea.sflag [#allocation3], %s373
        %s375 = sand.u32 %s50, 1
        %s376 = smul.addr %s375, 128
        %s377 = scalar_lea.vmem [#allocation2], %s376
        %p378 = pneg %p63
        %p379 = pneg %p60
        %s380 = sand.u32 %s28, 1
        %s381 = scalar_lea.sflag [#allocation6], %s380
        %s382 = sand.u32 %s76, 1
        %s383 = smul.addr %s382, 256
        %s384 = scalar_lea.vmem [#allocation5], %s383
        %p385 = pneg %p89
        %p386 = pneg %p86
        %p387 = pneg %p110
        %p388 = pneg %p107
        %p389 = pneg %p131
        %p390 = pneg %p128
        %p391 = pneg %p152
        %p392 = pneg %p149
        %p393 = pneg %p173
        %p394 = pneg %p170
        %p395 = pneg %p194
        %p396 = pneg %p191
        %p397 = scmp.lt.s32.totalorder %s32, 1
        %s398 = scalar_select %p397, %s32, 1
        %s399 = smul.addr %s398, 2
        %s400 = scalar_lea.vmem %s7, %s399
        %p401 = pneg %p220
        %p402 = pneg %p217
        %p403 = pneg %p248
        %p404 = pneg %p245
        %s405 = sand.u32 %s235, 1
        %s406 = scalar_lea.sflag [#allocation4], %s405
        %s407 = sand.u32 %s235, 1
        %s408 = smul.addr %s407, 256
        %s409 = scalar_lea.vmem [#allocation8], %s408
        %s410 = smul.u32 16, %s33
        %p411 = scmp.lt.s32.totalorder %s32, 1
        %s412 = scalar_select %p411, %s32, 1
        %s413 = smul.addr %s412, 2
        %s414 = scalar_lea.vmem %s7, %s413
        %s415 = smul.u32 16, %s33
        %s417 = smul.u32 %s33, 128
        %s418 = ssub.s32 128, %s417
        %v419 = vld [vmem:[%s355] sm:$0xff]
        %v420 = vld [vmem:[%s355 + $0x8] sm:$0xff]
        %v421 = vld [vmem:[%s355 + $0x10] sm:$0xff]
        %v422 = vld [vmem:[%s355 + $0x18] sm:$0xff]
        %v423 = vld [vmem:[%s355 + $0x20] sm:$0xff]
        %v424 = vld [vmem:[%s355 + $0x28] sm:$0xff]
        %v425 = vld [vmem:[%s355 + $0x30] sm:$0xff]
        %v426 = vld [vmem:[%s355 + $0x38] sm:$0xff]
        %v427 = vld [vmem:[%s355 + $0x40] sm:$0xff]
        %v428 = vld [vmem:[%s355 + $0x48] sm:$0xff]
        %v429 = vld [vmem:[%s355 + $0x50] sm:$0xff]
        %v430 = vld [vmem:[%s355 + $0x58] sm:$0xff]
        %v431 = vld [vmem:[%s355 + $0x60] sm:$0xff]
        %v432 = vld [vmem:[%s355 + $0x68] sm:$0xff]
        %v433 = vld [vmem:[%s355 + $0x70] sm:$0xff]
        %v434 = vld [vmem:[%s355 + $0x78] sm:$0xff]
        %v435 = vld [vmem:[%s364] sm:$0xff]
        %v436 = vld [vmem:[%s364 + $0x8] sm:$0xff]
        %v437 = vld [vmem:[%s364 + $0x10] sm:$0xff]
        %v438 = vld [vmem:[%s364 + $0x18] sm:$0xff]
        %v439 = vld [vmem:[%s364 + $0x20] sm:$0xff]
        %v440 = vld [vmem:[%s364 + $0x28] sm:$0xff]
        %v441 = vld [vmem:[%s364 + $0x30] sm:$0xff]
        %v442 = vld [vmem:[%s364 + $0x38] sm:$0xff]
        %v443 = vld [vmem:[%s364 + $0x40] sm:$0xff]
        %v444 = vld [vmem:[%s364 + $0x48] sm:$0xff]
        %v445 = vld [vmem:[%s364 + $0x50] sm:$0xff]
        %v446 = vld [vmem:[%s364 + $0x58] sm:$0xff]
        %v447 = vld [vmem:[%s364 + $0x60] sm:$0xff]
        %v448 = vld [vmem:[%s364 + $0x68] sm:$0xff]
        %v449 = vld [vmem:[%s364 + $0x70] sm:$0xff]
        %v450 = vld [vmem:[%s364 + $0x78] sm:$0xff]
        %v451 = vld [vmem:[%s364 + $0x80] sm:$0xff]
        %v452 = vld [vmem:[%s364 + $0x88] sm:$0xff]
        %v453 = vld [vmem:[%s364 + $0x90] sm:$0xff]
        %v454 = vld [vmem:[%s364 + $0x98] sm:$0xff]
        %v455 = vld [vmem:[%s364 + $0xa0] sm:$0xff]
        %v456 = vld [vmem:[%s364 + $0xa8] sm:$0xff]
        %v457 = vld [vmem:[%s364 + $0xb0] sm:$0xff]
        %v458 = vld [vmem:[%s364 + $0xb8] sm:$0xff]
        %v459 = vld [vmem:[%s364 + $0xc0] sm:$0xff]
        %v460 = vld [vmem:[%s364 + $0xc8] sm:$0xff]
        %v461 = vld [vmem:[%s364 + $0xd0] sm:$0xff]
        %v462 = vld [vmem:[%s364 + $0xd8] sm:$0xff]
        %v463 = vld [vmem:[%s364 + $0xe0] sm:$0xff]
        %v464 = vld [vmem:[%s364 + $0xe8] sm:$0xff]
        %v465 = vld [vmem:[%s364 + $0xf0] sm:$0xff]
        %v466 = vld [vmem:[%s364 + $0xf8] sm:$0xff]
        %v467 = vld [vmem:[%s4] sm:$0xf]
        %v468 = vld [vmem:[%s5] sm:$0xf]
        %v469 = vld [vmem:[%s414] sm:$0x3]
        %vm470 = vcmp.eq.s32.totalorder %v469, 0
        %v471 = vld [vmem:[%s2] sm:$0xff]
        %v472 = vld [vmem:[%s2 + $0x8] sm:$0xff]
        %v473 = vld [vmem:[%s2 + $0x10] sm:$0xff]
        %v474 = vld [vmem:[%s2 + $0x18] sm:$0xff]
        %v475 = vld [vmem:[%s2 + $0x20] sm:$0xff]
        %v476 = vld [vmem:[%s2 + $0x28] sm:$0xff]
        %v477 = vld [vmem:[%s2 + $0x30] sm:$0xff]
        %v478 = vld [vmem:[%s2 + $0x38] sm:$0xff]
        %v479 = vld [vmem:[%s2 + $0x40] sm:$0xff]
        %v480 = vld [vmem:[%s2 + $0x48] sm:$0xff]
        %v481 = vld [vmem:[%s2 + $0x50] sm:$0xff]
        %v482 = vld [vmem:[%s2 + $0x58] sm:$0xff]
        %v483 = vld [vmem:[%s2 + $0x60] sm:$0xff]
        %v484 = vld [vmem:[%s2 + $0x68] sm:$0xff]
        %v485 = vld [vmem:[%s2 + $0x70] sm:$0xff]
        %v486 = vld [vmem:[%s2 + $0x78] sm:$0xff]
        %v487 = vld [vmem:[%s2 + $0x80] sm:$0xff]
        %v488 = vld [vmem:[%s2 + $0x88] sm:$0xff]
        %v489 = vld [vmem:[%s2 + $0x90] sm:$0xff]
        %v490 = vld [vmem:[%s2 + $0x98] sm:$0xff]
        %v491 = vld [vmem:[%s2 + $0xa0] sm:$0xff]
        %v492 = vld [vmem:[%s2 + $0xa8] sm:$0xff]
        %v493 = vld [vmem:[%s2 + $0xb0] sm:$0xff]
        %v494 = vld [vmem:[%s2 + $0xb8] sm:$0xff]
        %v495 = vld [vmem:[%s2 + $0xc0] sm:$0xff]
        %v496 = vld [vmem:[%s2 + $0xc8] sm:$0xff]
        %v497 = vld [vmem:[%s2 + $0xd0] sm:$0xff]
        %v498 = vld [vmem:[%s2 + $0xd8] sm:$0xff]
        %v499 = vld [vmem:[%s2 + $0xe0] sm:$0xff]
        %v500 = vld [vmem:[%s2 + $0xe8] sm:$0xff]
        %v501 = vld [vmem:[%s2 + $0xf0] sm:$0xff]
        %v502 = vld [vmem:[%s2 + $0xf8] sm:$0xff]
        %v519 = vunpack.c.l.b16 %v419
        %v520 = vunpack.c.h.b16 %v419
        %v521 = vunpack.c.l.b16 %v420
        %v522 = vunpack.c.h.b16 %v420
        %v523 = vunpack.c.l.b16 %v421
        %v524 = vunpack.c.h.b16 %v421
        %v525 = vunpack.c.l.b16 %v422
        %v526 = vunpack.c.h.b16 %v422
        %v527 = vunpack.c.l.b16 %v423
        %v528 = vunpack.c.h.b16 %v423
        %v529 = vunpack.c.l.b16 %v424
        %v530 = vunpack.c.h.b16 %v424
        %v531 = vunpack.c.l.b16 %v425
        %v532 = vunpack.c.h.b16 %v425
        %v533 = vunpack.c.l.b16 %v426
        %v534 = vunpack.c.h.b16 %v426
        %v535 = vunpack.c.l.b16 %v427
        %v536 = vunpack.c.h.b16 %v427
        %v537 = vunpack.c.l.b16 %v428
        %v538 = vunpack.c.h.b16 %v428
        %v539 = vunpack.c.l.b16 %v429
        %v540 = vunpack.c.h.b16 %v429
        %v541 = vunpack.c.l.b16 %v430
        %v542 = vunpack.c.h.b16 %v430
        %v543 = vunpack.c.l.b16 %v431
        %v544 = vunpack.c.h.b16 %v431
        %v545 = vunpack.c.l.b16 %v432
        %v546 = vunpack.c.h.b16 %v432
        %v547 = vunpack.c.l.b16 %v433
        %v548 = vunpack.c.h.b16 %v433
        %v549 = vunpack.c.l.b16 %v434
        %v550 = vunpack.c.h.b16 %v434
        %v551 = vpack.c.b16 %v521, %v519
        %v552 = vpack.c.b16 %v522, %v520
        %v553 = vpack.c.b16 %v525, %v523
        %v554 = vpack.c.b16 %v526, %v524
        %v555 = vpack.c.b16 %v529, %v527
        %v556 = vpack.c.b16 %v530, %v528
        %v557 = vpack.c.b16 %v533, %v531
        %v558 = vpack.c.b16 %v534, %v532
        %v559 = vpack.c.b16 %v537, %v535
        %v560 = vpack.c.b16 %v538, %v536
        %v561 = vpack.c.b16 %v541, %v539
        %v562 = vpack.c.b16 %v542, %v540
        %v563 = vpack.c.b16 %v545, %v543
        %v564 = vpack.c.b16 %v546, %v544
        %v565 = vpack.c.b16 %v549, %v547
        %v566 = vpack.c.b16 %v550, %v548
        %v615 = vunpack.c.l.b16 %v471
        %v616 = vunpack.c.h.b16 %v471
        %v617 = vunpack.c.l.b16 %v472
        %v618 = vunpack.c.h.b16 %v472
        %v619 = vunpack.c.l.b16 %v473
        %v620 = vunpack.c.h.b16 %v473
        %v621 = vunpack.c.l.b16 %v474
        %v622 = vunpack.c.h.b16 %v474
        %v623 = vunpack.c.l.b16 %v475
        %v624 = vunpack.c.h.b16 %v475
        %v625 = vunpack.c.l.b16 %v476
        %v626 = vunpack.c.h.b16 %v476
        %v627 = vunpack.c.l.b16 %v477
        %v628 = vunpack.c.h.b16 %v477
        %v629 = vunpack.c.l.b16 %v478
        %v630 = vunpack.c.h.b16 %v478
        %v631 = vunpack.c.l.b16 %v479
        %v632 = vunpack.c.h.b16 %v479
        %v633 = vunpack.c.l.b16 %v480
        %v634 = vunpack.c.h.b16 %v480
        %v635 = vunpack.c.l.b16 %v481
        %v636 = vunpack.c.h.b16 %v481
        %v637 = vunpack.c.l.b16 %v482
        %v638 = vunpack.c.h.b16 %v482
        %v639 = vunpack.c.l.b16 %v483
        %v640 = vunpack.c.h.b16 %v483
        %v641 = vunpack.c.l.b16 %v484
        %v642 = vunpack.c.h.b16 %v484
        %v643 = vunpack.c.l.b16 %v485
        %v644 = vunpack.c.h.b16 %v485
        %v645 = vunpack.c.l.b16 %v486
        %v646 = vunpack.c.h.b16 %v486
        %v647 = vunpack.c.l.b16 %v487
        %v648 = vunpack.c.h.b16 %v487
        %v649 = vunpack.c.l.b16 %v488
        %v650 = vunpack.c.h.b16 %v488
        %v651 = vunpack.c.l.b16 %v489
        %v652 = vunpack.c.h.b16 %v489
        %v653 = vunpack.c.l.b16 %v490
        %v654 = vunpack.c.h.b16 %v490
        %v655 = vunpack.c.l.b16 %v491
        %v656 = vunpack.c.h.b16 %v491
        %v657 = vunpack.c.l.b16 %v492
        %v658 = vunpack.c.h.b16 %v492
        %v659 = vunpack.c.l.b16 %v493
        %v660 = vunpack.c.h.b16 %v493
        %v661 = vunpack.c.l.b16 %v494
        %v662 = vunpack.c.h.b16 %v494
        %v663 = vunpack.c.l.b16 %v495
        %v664 = vunpack.c.h.b16 %v495
        %v665 = vunpack.c.l.b16 %v496
        %v666 = vunpack.c.h.b16 %v496
        %v667 = vunpack.c.l.b16 %v497
        %v668 = vunpack.c.h.b16 %v497
        %v669 = vunpack.c.l.b16 %v498
        %v670 = vunpack.c.h.b16 %v498
        %v671 = vunpack.c.l.b16 %v499
        %v672 = vunpack.c.h.b16 %v499
        %v673 = vunpack.c.l.b16 %v500
        %v674 = vunpack.c.h.b16 %v500
        %v675 = vunpack.c.l.b16 %v501
        %v676 = vunpack.c.h.b16 %v501
        %v677 = vunpack.c.l.b16 %v502
        %v678 = vunpack.c.h.b16 %v502
        %v679 = vpack.c.b16 %v617, %v615
        %v680 = vpack.c.b16 %v618, %v616
        %v681 = vpack.c.b16 %v621, %v619
        %v682 = vpack.c.b16 %v622, %v620
        %v683 = vpack.c.b16 %v625, %v623
        %v684 = vpack.c.b16 %v626, %v624
        %v685 = vpack.c.b16 %v629, %v627
        %v686 = vpack.c.b16 %v630, %v628
        %v687 = vpack.c.b16 %v633, %v631
        %v688 = vpack.c.b16 %v634, %v632
        %v689 = vpack.c.b16 %v637, %v635
        %v690 = vpack.c.b16 %v638, %v636
        %v691 = vpack.c.b16 %v641, %v639
        %v692 = vpack.c.b16 %v642, %v640
        %v693 = vpack.c.b16 %v645, %v643
        %v694 = vpack.c.b16 %v646, %v644
        %v695 = vpack.c.b16 %v649, %v647
        %v696 = vpack.c.b16 %v650, %v648
        %v697 = vpack.c.b16 %v653, %v651
        %v698 = vpack.c.b16 %v654, %v652
        %v699 = vpack.c.b16 %v657, %v655
        %v700 = vpack.c.b16 %v658, %v656
        %v701 = vpack.c.b16 %v661, %v659
        %v702 = vpack.c.b16 %v662, %v660
        %v703 = vpack.c.b16 %v665, %v663
        %v704 = vpack.c.b16 %v666, %v664
        %v705 = vpack.c.b16 %v669, %v667
        %v706 = vpack.c.b16 %v670, %v668
        %v707 = vpack.c.b16 %v673, %v671
        %v708 = vpack.c.b16 %v674, %v672
        %v709 = vpack.c.b16 %v677, %v675
        %v710 = vpack.c.b16 %v678, %v676
        %743 = vmatprep.subr.bf16.mxu0 %v680
        %744 = vmatpush1.bf16.msra.mxu0 %v679
        %745 = vmatprep.subr.bf16.mxu0 %v682
        %746 = vmatpush1.bf16.msra.mxu0 %v681
        %747 = vmatprep.subr.bf16.mxu0 %v684
        %748 = vmatpush1.bf16.msra.mxu0 %v683
        %749 = vmatprep.subr.bf16.mxu0 %v686
        %750 = vmatpush1.bf16.msra.mxu0 %v685
        %751 = vmatprep.subr.bf16.mxu0 %v688
        %752 = vmatpush1.bf16.msra.mxu0 %v687
        %753 = vmatprep.subr.bf16.mxu0 %v690
        %754 = vmatpush1.bf16.msra.mxu0 %v689
        %755 = vmatprep.subr.bf16.mxu0 %v692
        %756 = vmatpush1.bf16.msra.mxu0 %v691
        %757 = vmatprep.subr.bf16.mxu0 %v694
        %758 = vmatpush1.bf16.msra.mxu0 %v693
        %759 = vmatprep.subr.bf16.mxu0 %v696
        %760 = vmatpush1.bf16.msra.mxu0 %v695
        %761 = vmatprep.subr.bf16.mxu0 %v698
        %762 = vmatpush1.bf16.msra.mxu0 %v697
        %763 = vmatprep.subr.bf16.mxu0 %v700
        %764 = vmatpush1.bf16.msra.mxu0 %v699
        %765 = vmatprep.subr.bf16.mxu0 %v702
        %766 = vmatpush1.bf16.msra.mxu0 %v701
        %767 = vmatprep.subr.bf16.mxu0 %v704
        %768 = vmatpush1.bf16.msra.mxu0 %v703
        %769 = vmatprep.subr.bf16.mxu0 %v706
        %770 = vmatpush1.bf16.msra.mxu0 %v705
        %771 = vmatprep.subr.bf16.mxu0 %v708
        %772 = vmatpush1.bf16.msra.mxu0 %v707
        %773 = vmatprep.subr.bf16.mxu0 %v710
        %774 = vmatpush1.bf16.msra.mxu0 %v709
        %775 = vmatprep.mubr.bf16.mxu0 %v552
        %776 = vmatmul.mubr.bf16.gmra.mrb[0].mxu0 %v551
        %v777 = vpop.f32.mrb[0].mxu0
        %v778 = vadd.f32 0.0, %v777
        %v779 = vpop.f32.mrb[0].mxu0
        %v780 = vadd.f32 0.0, %v779
        %v781 = vpop.f32.mrb[0].mxu0
        %v782 = vadd.f32 0.0, %v781
        %v783 = vpop.f32.mrb[0].mxu0
        %v784 = vadd.f32 0.0, %v783
        %785 = vmatprep.mubr.bf16.mxu0 %v554
        %786 = vmatmul.mubr.bf16.gmra.mrb[0].mxu0 %v553
        %v787 = vpop.f32.mrb[0].mxu0
        %v788 = vadd.f32 0.0, %v787
        %v789 = vpop.f32.mrb[0].mxu0
        %v790 = vadd.f32 0.0, %v789
        %v791 = vpop.f32.mrb[0].mxu0
        %v792 = vadd.f32 0.0, %v791
        %v793 = vpop.f32.mrb[0].mxu0
        %v794 = vadd.f32 0.0, %v793
        %795 = vmatprep.mubr.bf16.mxu0 %v556
        %796 = vmatmul.mubr.bf16.gmra.mrb[0].mxu0 %v555
        %v797 = vpop.f32.mrb[0].mxu0
        %v798 = vadd.f32 0.0, %v797
        %v799 = vpop.f32.mrb[0].mxu0
        %v800 = vadd.f32 0.0, %v799
        %v801 = vpop.f32.mrb[0].mxu0
        %v802 = vadd.f32 0.0, %v801
        %v803 = vpop.f32.mrb[0].mxu0
        %v804 = vadd.f32 0.0, %v803
        %805 = vmatprep.mubr.bf16.mxu0 %v558
        %806 = vmatmul.mubr.bf16.gmra.mrb[0].mxu0 %v557
        %v807 = vpop.f32.mrb[0].mxu0
        %v808 = vadd.f32 0.0, %v807
        %v809 = vpop.f32.mrb[0].mxu0
        %v810 = vadd.f32 0.0, %v809
        %v811 = vpop.f32.mrb[0].mxu0
        %v812 = vadd.f32 0.0, %v811
        %v813 = vpop.f32.mrb[0].mxu0
        %v814 = vadd.f32 0.0, %v813
        %815 = vmatprep.mubr.bf16.mxu0 %v560
        %816 = vmatmul.mubr.bf16.gmra.mrb[0].mxu0 %v559
        %v817 = vpop.f32.mrb[0].mxu0
        %v818 = vadd.f32 0.0, %v817
        %v819 = vpop.f32.mrb[0].mxu0
        %v820 = vadd.f32 0.0, %v819
        %v821 = vpop.f32.mrb[0].mxu0
        %v822 = vadd.f32 0.0, %v821
        %v823 = vpop.f32.mrb[0].mxu0
        %v824 = vadd.f32 0.0, %v823
        %825 = vmatprep.mubr.bf16.mxu0 %v562
        %826 = vmatmul.mubr.bf16.gmra.mrb[0].mxu0 %v561
        %v827 = vpop.f32.mrb[0].mxu0
        %v828 = vadd.f32 0.0, %v827
        %v829 = vpop.f32.mrb[0].mxu0
        %v830 = vadd.f32 0.0, %v829
        %v831 = vpop.f32.mrb[0].mxu0
        %v832 = vadd.f32 0.0, %v831
        %v833 = vpop.f32.mrb[0].mxu0
        %v834 = vadd.f32 0.0, %v833
        %835 = vmatprep.mubr.bf16.mxu0 %v564
        %836 = vmatmul.mubr.bf16.gmra.mrb[0].mxu0 %v563
        %v837 = vpop.f32.mrb[0].mxu0
        %v838 = vadd.f32 0.0, %v837
        %v839 = vpop.f32.mrb[0].mxu0
        %v840 = vadd.f32 0.0, %v839
        %v841 = vpop.f32.mrb[0].mxu0
        %v842 = vadd.f32 0.0, %v841
        %v843 = vpop.f32.mrb[0].mxu0
        %v844 = vadd.f32 0.0, %v843
        %845 = vmatprep.mubr.bf16.mxu0 %v566
        %846 = vmatmul.mubr.bf16.gmra.mrb[0].mxu0 %v565
        %v847 = vpop.f32.mrb[0].mxu0
        %v848 = vadd.f32 0.0, %v847
        %v849 = vpop.f32.mrb[0].mxu0
        %v850 = vadd.f32 0.0, %v849
        %v851 = vpop.f32.mrb[0].mxu0
        %v852 = vadd.f32 0.0, %v851
        %v853 = vpop.f32.mrb[0].mxu0
        %v854 = vadd.f32 0.0, %v853
        %855 = vdwg.mxu0
        %v856 = vld [vmem:[#allocation7] sm:$0xff]
        %v857 = vld [vmem:[#allocation7 + $0x8] sm:$0xff]
        %v858 = vld [vmem:[#allocation7 + $0x10] sm:$0xff]
        %v859 = vld [vmem:[#allocation7 + $0x18] sm:$0xff]
        %v860 = vld [vmem:[#allocation7 + $0x20] sm:$0xff]
        %v861 = vld [vmem:[#allocation7 + $0x28] sm:$0xff]
        %v862 = vld [vmem:[#allocation7 + $0x30] sm:$0xff]
        %v863 = vld [vmem:[#allocation7 + $0x38] sm:$0xff]
        %v864 = vld [vmem:[#allocation7 + $0x40] sm:$0xff]
        %v865 = vld [vmem:[#allocation7 + $0x48] sm:$0xff]
        %v866 = vld [vmem:[#allocation7 + $0x50] sm:$0xff]
        %v867 = vld [vmem:[#allocation7 + $0x58] sm:$0xff]
        %v868 = vld [vmem:[#allocation7 + $0x60] sm:$0xff]
        %v869 = vld [vmem:[#allocation7 + $0x68] sm:$0xff]
        %v870 = vld [vmem:[#allocation7 + $0x70] sm:$0xff]
        %v871 = vld [vmem:[#allocation7 + $0x78] sm:$0xff]
        %v872 = vld [vmem:[#allocation7 + $0x80] sm:$0xff]
        %v873 = vld [vmem:[#allocation7 + $0x88] sm:$0xff]
        %v874 = vld [vmem:[#allocation7 + $0x90] sm:$0xff]
        %v875 = vld [vmem:[#allocation7 + $0x98] sm:$0xff]
        %v876 = vld [vmem:[#allocation7 + $0xa0] sm:$0xff]
        %v877 = vld [vmem:[#allocation7 + $0xa8] sm:$0xff]
        %v878 = vld [vmem:[#allocation7 + $0xb0] sm:$0xff]
        %v879 = vld [vmem:[#allocation7 + $0xb8] sm:$0xff]
        %v880 = vld [vmem:[#allocation7 + $0xc0] sm:$0xff]
        %v881 = vld [vmem:[#allocation7 + $0xc8] sm:$0xff]
        %v882 = vld [vmem:[#allocation7 + $0xd0] sm:$0xff]
        %v883 = vld [vmem:[#allocation7 + $0xd8] sm:$0xff]
        %v884 = vld [vmem:[#allocation7 + $0xe0] sm:$0xff]
        %v885 = vld [vmem:[#allocation7 + $0xe8] sm:$0xff]
        %v886 = vld [vmem:[#allocation7 + $0xf0] sm:$0xff]
        %v887 = vld [vmem:[#allocation7 + $0xf8] sm:$0xff]
        %v920 = vunpack.c.l.b16 %v435
        %v921 = vunpack.c.h.b16 %v435
        %v922 = vunpack.c.l.b16 %v436
        %v923 = vunpack.c.h.b16 %v436
        %v924 = vunpack.c.l.b16 %v437
        %v925 = vunpack.c.h.b16 %v437
        %v926 = vunpack.c.l.b16 %v438
        %v927 = vunpack.c.h.b16 %v438
        %v928 = vunpack.c.l.b16 %v439
        %v929 = vunpack.c.h.b16 %v439
        %v930 = vunpack.c.l.b16 %v440
        %v931 = vunpack.c.h.b16 %v440
        %v932 = vunpack.c.l.b16 %v441
        %v933 = vunpack.c.h.b16 %v441
        %v934 = vunpack.c.l.b16 %v442
        %v935 = vunpack.c.h.b16 %v442
        %v936 = vunpack.c.l.b16 %v443
        %v937 = vunpack.c.h.b16 %v443
        %v938 = vunpack.c.l.b16 %v444
        %v939 = vunpack.c.h.b16 %v444
        %v940 = vunpack.c.l.b16 %v445
        %v941 = vunpack.c.h.b16 %v445
        %v942 = vunpack.c.l.b16 %v446
        %v943 = vunpack.c.h.b16 %v446
        %v944 = vunpack.c.l.b16 %v447
        %v945 = vunpack.c.h.b16 %v447
        %v946 = vunpack.c.l.b16 %v448
        %v947 = vunpack.c.h.b16 %v448
        %v948 = vunpack.c.l.b16 %v449
        %v949 = vunpack.c.h.b16 %v449
        %v950 = vunpack.c.l.b16 %v450
        %v951 = vunpack.c.h.b16 %v450
        %v952 = vunpack.c.l.b16 %v451
        %v953 = vunpack.c.h.b16 %v451
        %v954 = vunpack.c.l.b16 %v452
        %v955 = vunpack.c.h.b16 %v452
        %v956 = vunpack.c.l.b16 %v453
        %v957 = vunpack.c.h.b16 %v453
        %v958 = vunpack.c.l.b16 %v454
        %v959 = vunpack.c.h.b16 %v454
        %v960 = vunpack.c.l.b16 %v455
        %v961 = vunpack.c.h.b16 %v455
        %v962 = vunpack.c.l.b16 %v456
        %v963 = vunpack.c.h.b16 %v456
        %v964 = vunpack.c.l.b16 %v457
        %v965 = vunpack.c.h.b16 %v457
        %v966 = vunpack.c.l.b16 %v458
        %v967 = vunpack.c.h.b16 %v458
        %v968 = vunpack.c.l.b16 %v459
        %v969 = vunpack.c.h.b16 %v459
        %v970 = vunpack.c.l.b16 %v460
        %v971 = vunpack.c.h.b16 %v460
        %v972 = vunpack.c.l.b16 %v461
        %v973 = vunpack.c.h.b16 %v461
        %v974 = vunpack.c.l.b16 %v462
        %v975 = vunpack.c.h.b16 %v462
        %v976 = vunpack.c.l.b16 %v463
        %v977 = vunpack.c.h.b16 %v463
        %v978 = vunpack.c.l.b16 %v464
        %v979 = vunpack.c.h.b16 %v464
        %v980 = vunpack.c.l.b16 %v465
        %v981 = vunpack.c.h.b16 %v465
        %v982 = vunpack.c.l.b16 %v466
        %v983 = vunpack.c.h.b16 %v466
        %v984 = vpack.c.b16 %v922, %v920
        %v985 = vpack.c.b16 %v923, %v921
        %v986 = vpack.c.b16 %v926, %v924
        %v987 = vpack.c.b16 %v927, %v925
        %v988 = vpack.c.b16 %v930, %v928
        %v989 = vpack.c.b16 %v931, %v929
        %v990 = vpack.c.b16 %v934, %v932
        %v991 = vpack.c.b16 %v935, %v933
        %v992 = vpack.c.b16 %v938, %v936
        %v993 = vpack.c.b16 %v939, %v937
        %v994 = vpack.c.b16 %v942, %v940
        %v995 = vpack.c.b16 %v943, %v941
        %v996 = vpack.c.b16 %v946, %v944
        %v997 = vpack.c.b16 %v947, %v945
        %v998 = vpack.c.b16 %v950, %v948
        %v999 = vpack.c.b16 %v951, %v949
        %v1000 = vpack.c.b16 %v954, %v952
        %v1001 = vpack.c.b16 %v955, %v953
        %v1002 = vpack.c.b16 %v958, %v956
        %v1003 = vpack.c.b16 %v959, %v957
        %v1004 = vpack.c.b16 %v962, %v960
        %v1005 = vpack.c.b16 %v963, %v961
        %v1006 = vpack.c.b16 %v966, %v964
        %v1007 = vpack.c.b16 %v967, %v965
        %v1008 = vpack.c.b16 %v970, %v968
        %v1009 = vpack.c.b16 %v971, %v969
        %v1010 = vpack.c.b16 %v974, %v972
        %v1011 = vpack.c.b16 %v975, %v973
        %v1012 = vpack.c.b16 %v978, %v976
        %v1013 = vpack.c.b16 %v979, %v977
        %v1014 = vpack.c.b16 %v982, %v980
        %v1015 = vpack.c.b16 %v983, %v981
        %v1080 = vunpack.c.l.b16 %v856
        %v1081 = vunpack.c.h.b16 %v856
        %v1082 = vunpack.c.l.b16 %v857
        %v1083 = vunpack.c.h.b16 %v857
        %v1084 = vunpack.c.l.b16 %v858
        %v1085 = vunpack.c.h.b16 %v858
        %v1086 = vunpack.c.l.b16 %v859
        %v1087 = vunpack.c.h.b16 %v859
        %v1088 = vunpack.c.l.b16 %v860
        %v1089 = vunpack.c.h.b16 %v860
        %v1090 = vunpack.c.l.b16 %v861
        %v1091 = vunpack.c.h.b16 %v861
        %v1092 = vunpack.c.l.b16 %v862
        %v1093 = vunpack.c.h.b16 %v862
        %v1094 = vunpack.c.l.b16 %v863
        %v1095 = vunpack.c.h.b16 %v863
        %v1096 = vunpack.c.l.b16 %v864
        %v1097 = vunpack.c.h.b16 %v864
        %v1098 = vunpack.c.l.b16 %v865
        %v1099 = vunpack.c.h.b16 %v865
        %v1100 = vunpack.c.l.b16 %v866
        %v1101 = vunpack.c.h.b16 %v866
        %v1102 = vunpack.c.l.b16 %v867
        %v1103 = vunpack.c.h.b16 %v867
        %v1104 = vunpack.c.l.b16 %v868
        %v1105 = vunpack.c.h.b16 %v868
        %v1106 = vunpack.c.l.b16 %v869
        %v1107 = vunpack.c.h.b16 %v869
        %v1108 = vunpack.c.l.b16 %v870
        %v1109 = vunpack.c.h.b16 %v870
        %v1110 = vunpack.c.l.b16 %v871
        %v1111 = vunpack.c.h.b16 %v871
        %v1112 = vunpack.c.l.b16 %v872
        %v1113 = vunpack.c.h.b16 %v872
        %v1114 = vunpack.c.l.b16 %v873
        %v1115 = vunpack.c.h.b16 %v873
        %v1116 = vunpack.c.l.b16 %v874
        %v1117 = vunpack.c.h.b16 %v874
        %v1118 = vunpack.c.l.b16 %v875
        %v1119 = vunpack.c.h.b16 %v875
        %v1120 = vunpack.c.l.b16 %v876
        %v1121 = vunpack.c.h.b16 %v876
        %v1122 = vunpack.c.l.b16 %v877
        %v1123 = vunpack.c.h.b16 %v877
        %v1124 = vunpack.c.l.b16 %v878
        %v1125 = vunpack.c.h.b16 %v878
        %v1126 = vunpack.c.l.b16 %v879
        %v1127 = vunpack.c.h.b16 %v879
        %v1128 = vunpack.c.l.b16 %v880
        %v1129 = vunpack.c.h.b16 %v880
        %v1130 = vunpack.c.l.b16 %v881
        %v1131 = vunpack.c.h.b16 %v881
        %v1132 = vunpack.c.l.b16 %v882
        %v1133 = vunpack.c.h.b16 %v882
        %v1134 = vunpack.c.l.b16 %v883
        %v1135 = vunpack.c.h.b16 %v883
        %v1136 = vunpack.c.l.b16 %v884
        %v1137 = vunpack.c.h.b16 %v884
        %v1138 = vunpack.c.l.b16 %v885
        %v1139 = vunpack.c.h.b16 %v885
        %v1140 = vunpack.c.l.b16 %v886
        %v1141 = vunpack.c.h.b16 %v886
        %v1142 = vunpack.c.l.b16 %v887
        %v1143 = vunpack.c.h.b16 %v887
        %v1144 = vpack.c.b16 %v1082, %v1080
        %v1145 = vpack.c.b16 %v1083, %v1081
        %v1146 = vpack.c.b16 %v1086, %v1084
        %v1147 = vpack.c.b16 %v1087, %v1085
        %v1148 = vpack.c.b16 %v1090, %v1088
        %v1149 = vpack.c.b16 %v1091, %v1089
        %v1150 = vpack.c.b16 %v1094, %v1092
        %v1151 = vpack.c.b16 %v1095, %v1093
        %v1152 = vpack.c.b16 %v1098, %v1096
        %v1153 = vpack.c.b16 %v1099, %v1097
        %v1154 = vpack.c.b16 %v1102, %v1100
        %v1155 = vpack.c.b16 %v1103, %v1101
        %v1156 = vpack.c.b16 %v1106, %v1104
        %v1157 = vpack.c.b16 %v1107, %v1105
        %v1158 = vpack.c.b16 %v1110, %v1108
        %v1159 = vpack.c.b16 %v1111, %v1109
        %v1160 = vpack.c.b16 %v1114, %v1112
        %v1161 = vpack.c.b16 %v1115, %v1113
        %v1162 = vpack.c.b16 %v1118, %v1116
        %v1163 = vpack.c.b16 %v1119, %v1117
        %v1164 = vpack.c.b16 %v1122, %v1120
        %v1165 = vpack.c.b16 %v1123, %v1121
        %v1166 = vpack.c.b16 %v1126, %v1124
        %v1167 = vpack.c.b16 %v1127, %v1125
        %v1168 = vpack.c.b16 %v1130, %v1128
        %v1169 = vpack.c.b16 %v1131, %v1129
        %v1170 = vpack.c.b16 %v1134, %v1132
        %v1171 = vpack.c.b16 %v1135, %v1133
        %v1172 = vpack.c.b16 %v1138, %v1136
        %v1173 = vpack.c.b16 %v1139, %v1137
        %v1174 = vpack.c.b16 %v1142, %v1140
        %v1175 = vpack.c.b16 %v1143, %v1141
        %1208 = vmatprep.subr.bf16.mxu0 %v1145
        %1209 = vmatpush1.bf16.msra.mxu0 %v1144
        %1210 = vmatprep.subr.bf16.mxu0 %v1147
        %1211 = vmatpush1.bf16.msra.mxu0 %v1146
        %1212 = vmatprep.subr.bf16.mxu0 %v1149
        %1213 = vmatpush1.bf16.msra.mxu0 %v1148
        %1214 = vmatprep.subr.bf16.mxu0 %v1151
        %1215 = vmatpush1.bf16.msra.mxu0 %v1150
        %1216 = vmatprep.subr.bf16.mxu0 %v1153
        %1217 = vmatpush1.bf16.msra.mxu0 %v1152
        %1218 = vmatprep.subr.bf16.mxu0 %v1155
        %1219 = vmatpush1.bf16.msra.mxu0 %v1154
        %1220 = vmatprep.subr.bf16.mxu0 %v1157
        %1221 = vmatpush1.bf16.msra.mxu0 %v1156
        %1222 = vmatprep.subr.bf16.mxu0 %v1159
        %1223 = vmatpush1.bf16.msra.mxu0 %v1158
        %1224 = vmatprep.subr.bf16.mxu0 %v1161
        %1225 = vmatpush1.bf16.msra.mxu0 %v1160
        %1226 = vmatprep.subr.bf16.mxu0 %v1163
        %1227 = vmatpush1.bf16.msra.mxu0 %v1162
        %1228 = vmatprep.subr.bf16.mxu0 %v1165
        %1229 = vmatpush1.bf16.msra.mxu0 %v1164
        %1230 = vmatprep.subr.bf16.mxu0 %v1167
        %1231 = vmatpush1.bf16.msra.mxu0 %v1166
        %1232 = vmatprep.subr.bf16.mxu0 %v1169
        %1233 = vmatpush1.bf16.msra.mxu0 %v1168
        %1234 = vmatprep.subr.bf16.mxu0 %v1171
        %1235 = vmatpush1.bf16.msra.mxu0 %v1170
        %1236 = vmatprep.subr.bf16.mxu0 %v1173
        %1237 = vmatpush1.bf16.msra.mxu0 %v1172
        %1238 = vmatprep.subr.bf16.mxu0 %v1175
        %1239 = vmatpush1.bf16.msra.mxu0 %v1174
        %1240 = vmatprep.mubr.bf16.mxu0 %v985
        %1241 = vmatmul.mubr.bf16.gmra.mrb[0].mxu0 %v984
        %v1242 = vpop.f32.mrb[0].mxu0
        %v1243 = vadd.f32 0.0, %v1242
        %v1244 = vpop.f32.mrb[0].mxu0
        %v1245 = vadd.f32 0.0, %v1244
        %v1246 = vpop.f32.mrb[0].mxu0
        %v1247 = vadd.f32 0.0, %v1246
        %v1248 = vpop.f32.mrb[0].mxu0
        %v1249 = vadd.f32 0.0, %v1248
        %1250 = vmatprep.mubr.bf16.mxu0 %v987
        %1251 = vmatmul.mubr.bf16.gmra.mrb[0].mxu0 %v986
        %v1252 = vpop.f32.mrb[0].mxu0
        %v1253 = vadd.f32 0.0, %v1252
        %v1254 = vpop.f32.mrb[0].mxu0
        %v1255 = vadd.f32 0.0, %v1254
        %v1256 = vpop.f32.mrb[0].mxu0
        %v1257 = vadd.f32 0.0, %v1256
        %v1258 = vpop.f32.mrb[0].mxu0
        %v1259 = vadd.f32 0.0, %v1258
        %1260 = vmatprep.mubr.bf16.mxu0 %v989
        %1261 = vmatmul.mubr.bf16.gmra.mrb[0].mxu0 %v988
        %v1262 = vpop.f32.mrb[0].mxu0
        %v1263 = vadd.f32 0.0, %v1262
        %v1264 = vpop.f32.mrb[0].mxu0
        %v1265 = vadd.f32 0.0, %v1264
        %v1266 = vpop.f32.mrb[0].mxu0
        %v1267 = vadd.f32 0.0, %v1266
        %v1268 = vpop.f32.mrb[0].mxu0
        %v1269 = vadd.f32 0.0, %v1268
        %1270 = vmatprep.mubr.bf16.mxu0 %v991
        %1271 = vmatmul.mubr.bf16.gmra.mrb[0].mxu0 %v990
        %v1272 = vpop.f32.mrb[0].mxu0
        %v1273 = vadd.f32 0.0, %v1272
        %v1274 = vpop.f32.mrb[0].mxu0
        %v1275 = vadd.f32 0.0, %v1274
        %v1276 = vpop.f32.mrb[0].mxu0
        %v1277 = vadd.f32 0.0, %v1276
        %v1278 = vpop.f32.mrb[0].mxu0
        %v1279 = vadd.f32 0.0, %v1278
        %1280 = vmatprep.mubr.bf16.mxu0 %v993
        %1281 = vmatmul.mubr.bf16.gmra.mrb[0].mxu0 %v992
        %v1282 = vpop.f32.mrb[0].mxu0
        %v1283 = vadd.f32 0.0, %v1282
        %v1284 = vpop.f32.mrb[0].mxu0
        %v1285 = vadd.f32 0.0, %v1284
        %v1286 = vpop.f32.mrb[0].mxu0
        %v1287 = vadd.f32 0.0, %v1286
        %v1288 = vpop.f32.mrb[0].mxu0
        %v1289 = vadd.f32 0.0, %v1288
        %1290 = vmatprep.mubr.bf16.mxu0 %v995
        %1291 = vmatmul.mubr.bf16.gmra.mrb[0].mxu0 %v994
        %v1292 = vpop.f32.mrb[0].mxu0
        %v1293 = vadd.f32 0.0, %v1292
        %v1294 = vpop.f32.mrb[0].mxu0
        %v1295 = vadd.f32 0.0, %v1294
        %v1296 = vpop.f32.mrb[0].mxu0
        %v1297 = vadd.f32 0.0, %v1296
        %v1298 = vpop.f32.mrb[0].mxu0
        %v1299 = vadd.f32 0.0, %v1298
        %1300 = vmatprep.mubr.bf16.mxu0 %v997
        %1301 = vmatmul.mubr.bf16.gmra.mrb[0].mxu0 %v996
        %v1302 = vpop.f32.mrb[0].mxu0
        %v1303 = vadd.f32 0.0, %v1302
        %v1304 = vpop.f32.mrb[0].mxu0
        %v1305 = vadd.f32 0.0, %v1304
        %v1306 = vpop.f32.mrb[0].mxu0
        %v1307 = vadd.f32 0.0, %v1306
        %v1308 = vpop.f32.mrb[0].mxu0
        %v1309 = vadd.f32 0.0, %v1308
        %1310 = vmatprep.mubr.bf16.mxu0 %v999
        %1311 = vmatmul.mubr.bf16.gmra.mrb[0].mxu0 %v998
        %v1312 = vpop.f32.mrb[0].mxu0
        %v1313 = vadd.f32 0.0, %v1312
        %v1314 = vpop.f32.mrb[0].mxu0
        %v1315 = vadd.f32 0.0, %v1314
        %v1316 = vpop.f32.mrb[0].mxu0
        %v1317 = vadd.f32 0.0, %v1316
        %v1318 = vpop.f32.mrb[0].mxu0
        %v1319 = vadd.f32 0.0, %v1318
        %1320 = vmatprep.mubr.bf16.mxu0 %v1001
        %1321 = vmatmul.mubr.bf16.gmra.mrb[0].mxu0 %v1000
        %v1322 = vpop.f32.mrb[0].mxu0
        %v1323 = vadd.f32 0.0, %v1322
        %v1324 = vpop.f32.mrb[0].mxu0
        %v1325 = vadd.f32 0.0, %v1324
        %v1326 = vpop.f32.mrb[0].mxu0
        %v1327 = vadd.f32 0.0, %v1326
        %v1328 = vpop.f32.mrb[0].mxu0
        %v1329 = vadd.f32 0.0, %v1328
        %1330 = vmatprep.mubr.bf16.mxu0 %v1003
        %1331 = vmatmul.mubr.bf16.gmra.mrb[0].mxu0 %v1002
        %v1332 = vpop.f32.mrb[0].mxu0
        %v1333 = vadd.f32 0.0, %v1332
        %v1334 = vpop.f32.mrb[0].mxu0
        %v1335 = vadd.f32 0.0, %v1334
        %v1336 = vpop.f32.mrb[0].mxu0
        %v1337 = vadd.f32 0.0, %v1336
        %v1338 = vpop.f32.mrb[0].mxu0
        %v1339 = vadd.f32 0.0, %v1338
        %1340 = vmatprep.mubr.bf16.mxu0 %v1005
        %1341 = vmatmul.mubr.bf16.gmra.mrb[0].mxu0 %v1004
        %v1342 = vpop.f32.mrb[0].mxu0
        %v1343 = vadd.f32 0.0, %v1342
        %v1344 = vpop.f32.mrb[0].mxu0
        %v1345 = vadd.f32 0.0, %v1344
        %v1346 = vpop.f32.mrb[0].mxu0
        %v1347 = vadd.f32 0.0, %v1346
        %v1348 = vpop.f32.mrb[0].mxu0
        %v1349 = vadd.f32 0.0, %v1348
        %1350 = vmatprep.mubr.bf16.mxu0 %v1007
        %1351 = vmatmul.mubr.bf16.gmra.mrb[0].mxu0 %v1006
        %v1352 = vpop.f32.mrb[0].mxu0
        %v1353 = vadd.f32 0.0, %v1352
        %v1354 = vpop.f32.mrb[0].mxu0
        %v1355 = vadd.f32 0.0, %v1354
        %v1356 = vpop.f32.mrb[0].mxu0
        %v1357 = vadd.f32 0.0, %v1356
        %v1358 = vpop.f32.mrb[0].mxu0
        %v1359 = vadd.f32 0.0, %v1358
        %1360 = vmatprep.mubr.bf16.mxu0 %v1009
        %1361 = vmatmul.mubr.bf16.gmra.mrb[0].mxu0 %v1008
        %v1362 = vpop.f32.mrb[0].mxu0
        %v1363 = vadd.f32 0.0, %v1362
        %v1364 = vpop.f32.mrb[0].mxu0
        %v1365 = vadd.f32 0.0, %v1364
        %v1366 = vpop.f32.mrb[0].mxu0
        %v1367 = vadd.f32 0.0, %v1366
        %v1368 = vpop.f32.mrb[0].mxu0
        %v1369 = vadd.f32 0.0, %v1368
        %1370 = vmatprep.mubr.bf16.mxu0 %v1011
        %1371 = vmatmul.mubr.bf16.gmra.mrb[0].mxu0 %v1010
        %v1372 = vpop.f32.mrb[0].mxu0
        %v1373 = vadd.f32 0.0, %v1372
        %v1374 = vpop.f32.mrb[0].mxu0
        %v1375 = vadd.f32 0.0, %v1374
        %v1376 = vpop.f32.mrb[0].mxu0
        %v1377 = vadd.f32 0.0, %v1376
        %v1378 = vpop.f32.mrb[0].mxu0
        %v1379 = vadd.f32 0.0, %v1378
        %1380 = vmatprep.mubr.bf16.mxu0 %v1013
        %1381 = vmatmul.mubr.bf16.gmra.mrb[0].mxu0 %v1012
        %v1382 = vpop.f32.mrb[0].mxu0
        %v1383 = vadd.f32 0.0, %v1382
        %v1384 = vpop.f32.mrb[0].mxu0
        %v1385 = vadd.f32 0.0, %v1384
        %v1386 = vpop.f32.mrb[0].mxu0
        %v1387 = vadd.f32 0.0, %v1386
        %v1388 = vpop.f32.mrb[0].mxu0
        %v1389 = vadd.f32 0.0, %v1388
        %1390 = vmatprep.mubr.bf16.mxu0 %v1015
        %1391 = vmatmul.mubr.bf16.gmra.mrb[0].mxu0 %v1014
        %v1392 = vpop.f32.mrb[0].mxu0
        %v1393 = vadd.f32 0.0, %v1392
        %v1394 = vpop.f32.mrb[0].mxu0
        %v1395 = vadd.f32 0.0, %v1394
        %v1396 = vpop.f32.mrb[0].mxu0
        %v1397 = vadd.f32 0.0, %v1396
        %v1398 = vpop.f32.mrb[0].mxu0
        %v1399 = vadd.f32 0.0, %v1398
        %1400 = vdwg.mxu0
        %v1401 = vpack.c.bf16 %v1247, %v1243
        %v1402 = vpack.c.bf16 %v1249, %v1245
        %v1403 = vpack.c.bf16 %v1257, %v1253
        %v1404 = vpack.c.bf16 %v1259, %v1255
        %v1405 = vpack.c.bf16 %v1267, %v1263
        %v1406 = vpack.c.bf16 %v1269, %v1265
        %v1407 = vpack.c.bf16 %v1277, %v1273
        %v1408 = vpack.c.bf16 %v1279, %v1275
        %v1409 = vpack.c.bf16 %v1287, %v1283
        %v1410 = vpack.c.bf16 %v1289, %v1285
        %v1411 = vpack.c.bf16 %v1297, %v1293
        %v1412 = vpack.c.bf16 %v1299, %v1295
        %v1413 = vpack.c.bf16 %v1307, %v1303
        %v1414 = vpack.c.bf16 %v1309, %v1305
        %v1415 = vpack.c.bf16 %v1317, %v1313
        %v1416 = vpack.c.bf16 %v1319, %v1315
        %v1417 = vpack.c.bf16 %v1327, %v1323
        %v1418 = vpack.c.bf16 %v1329, %v1325
        %v1419 = vpack.c.bf16 %v1337, %v1333
        %v1420 = vpack.c.bf16 %v1339, %v1335
        %v1421 = vpack.c.bf16 %v1347, %v1343
        %v1422 = vpack.c.bf16 %v1349, %v1345
        %v1423 = vpack.c.bf16 %v1357, %v1353
        %v1424 = vpack.c.bf16 %v1359, %v1355
        %v1425 = vpack.c.bf16 %v1367, %v1363
        %v1426 = vpack.c.bf16 %v1369, %v1365
        %v1427 = vpack.c.bf16 %v1377, %v1373
        %v1428 = vpack.c.bf16 %v1379, %v1375
        %v1429 = vpack.c.bf16 %v1387, %v1383
        %v1430 = vpack.c.bf16 %v1389, %v1385
        %v1431 = vpack.c.bf16 %v1397, %v1393
        %v1432 = vpack.c.bf16 %v1399, %v1395
        %s1433 = sshra.s32 %s418, 3
        %s1434 = sand.u32 %s418, 7
        %s1435 = smul.addr %s1433, 4
        %s1436 = scalar_lea.vmem %s6, %s1435
        %v1437 = vld [vmem:[%s1436] sm:$0xf]
        %v1438 = vld [vmem:[%s1436 + $0x4] sm:$0xf]
        %v1439 = vld [vmem:[%s1436 + $0x8] sm:$0xf]
        %v1440 = vld [vmem:[%s1436 + $0xc] sm:$0xf]
        %v1441 = vld [vmem:[%s1436 + $0x10] sm:$0xf]
        %v1442 = vld [vmem:[%s1436 + $0x14] sm:$0xf]
        %v1443 = vld [vmem:[%s1436 + $0x18] sm:$0xf]
        %v1444 = vld [vmem:[%s1436 + $0x1c] sm:$0xf]
        %v1445 = vld [vmem:[%s1436 + $0x20] sm:$0xf]
        %v1446 = vld [vmem:[%s1436 + $0x24] sm:$0xf]
        %v1447 = vld [vmem:[%s1436 + $0x28] sm:$0xf]
        %v1448 = vld [vmem:[%s1436 + $0x2c] sm:$0xf]
        %v1449 = vld [vmem:[%s1436 + $0x30] sm:$0xf]
        %v1450 = vld [vmem:[%s1436 + $0x34] sm:$0xf]
        %v1451 = vld [vmem:[%s1436 + $0x38] sm:$0xf]
        %v1452 = vld [vmem:[%s1436 + $0x3c] sm:$0xf]
        %v1453 = vld [vmem:[%s1436 + $0x40] sm:$0xf]
        %v1454 = vld [vmem:[%s1436 + $0x44] sm:$0xf]
        %v1455 = vld [vmem:[%s1436 + $0x48] sm:$0xf]
        %v1456 = vld [vmem:[%s1436 + $0x4c] sm:$0xf]
        %v1457 = vld [vmem:[%s1436 + $0x50] sm:$0xf]
        %v1458 = vld [vmem:[%s1436 + $0x54] sm:$0xf]
        %v1459 = vld [vmem:[%s1436 + $0x58] sm:$0xf]
        %v1460 = vld [vmem:[%s1436 + $0x5c] sm:$0xf]
        %v1461 = vld [vmem:[%s1436 + $0x60] sm:$0xf]
        %v1462 = vld [vmem:[%s1436 + $0x64] sm:$0xf]
        %v1463 = vld [vmem:[%s1436 + $0x68] sm:$0xf]
        %v1464 = vld [vmem:[%s1436 + $0x6c] sm:$0xf]
        %v1465 = vld [vmem:[%s1436 + $0x70] sm:$0xf]
        %v1466 = vld [vmem:[%s1436 + $0x74] sm:$0xf]
        %v1467 = vld [vmem:[%s1436 + $0x78] sm:$0xf]
        %v1468 = vld [vmem:[%s1436 + $0x7c] sm:$0xf]
        %v1469 = vld [vmem:[%s1436 + $0x80] sm:$0xf]
        %v1470 = vld [vmem:[%s1436 + $0x84] sm:$0xf]
        %v1471 = vld [vmem:[%s1436 + $0x88] sm:$0xf]
        %v1472 = vld [vmem:[%s1436 + $0x8c] sm:$0xf]
        %v1473 = vld [vmem:[%s1436 + $0x90] sm:$0xf]
        %v1474 = vld [vmem:[%s1436 + $0x94] sm:$0xf]
        %v1475 = vld [vmem:[%s1436 + $0x98] sm:$0xf]
        %v1476 = vld [vmem:[%s1436 + $0x9c] sm:$0xf]
        %v1477 = vld [vmem:[%s1436 + $0xa0] sm:$0xf]
        %v1478 = vld [vmem:[%s1436 + $0xa4] sm:$0xf]
        %v1479 = vld [vmem:[%s1436 + $0xa8] sm:$0xf]
        %v1480 = vld [vmem:[%s1436 + $0xac] sm:$0xf]
        %v1481 = vld [vmem:[%s1436 + $0xb0] sm:$0xf]
        %v1482 = vld [vmem:[%s1436 + $0xb4] sm:$0xf]
        %v1483 = vld [vmem:[%s1436 + $0xb8] sm:$0xf]
        %v1484 = vld [vmem:[%s1436 + $0xbc] sm:$0xf]
        %v1485 = vlaneseq
        %v1486 = vshrl.u32 %v1485, 7
        %v1487 = vsub.s32 0, %v1486
        %v1488 = vrot.slane %v467, %v1487
        %v1489 = vadd.f32 %v778, %v1488
        %v1490 = vadd.f32 %v782, %v1488
        %v1491 = vadd.f32 %v788, %v1488
        %v1492 = vadd.f32 %v792, %v1488
        %v1493 = vadd.f32 %v798, %v1488
        %v1494 = vadd.f32 %v802, %v1488
        %v1495 = vadd.f32 %v808, %v1488
        %v1496 = vadd.f32 %v812, %v1488
        %v1497 = vadd.f32 %v818, %v1488
        %v1498 = vadd.f32 %v822, %v1488
        %v1499 = vadd.f32 %v828, %v1488
        %v1500 = vadd.f32 %v832, %v1488
        %v1501 = vadd.f32 %v838, %v1488
        %v1502 = vadd.f32 %v842, %v1488
        %v1503 = vadd.f32 %v848, %v1488
        %v1504 = vadd.f32 %v852, %v1488
        %v1505 = vpack.c.bf16 %v1490, %v1489
        %v1506 = vpack.c.bf16 %v1492, %v1491
        %v1507 = vpack.c.bf16 %v1494, %v1493
        %v1508 = vpack.c.bf16 %v1496, %v1495
        %v1509 = vpack.c.bf16 %v1498, %v1497
        %v1510 = vpack.c.bf16 %v1500, %v1499
        %v1511 = vpack.c.bf16 %v1502, %v1501
        %v1512 = vpack.c.bf16 %v1504, %v1503
        %v1513 = vlaneseq
        %v1514 = vshrl.u32 %v1513, 7
        %v1515 = vsub.s32 0, %v1514
        %v1516 = vrot.slane %v468, %v1515
        %v1517 = vadd.f32 %v778, %v1516
        %v1518 = vadd.f32 %v782, %v1516
        %v1519 = vadd.f32 %v788, %v1516
        %v1520 = vadd.f32 %v792, %v1516
        %v1521 = vadd.f32 %v798, %v1516
        %v1522 = vadd.f32 %v802, %v1516
        %v1523 = vadd.f32 %v808, %v1516
        %v1524 = vadd.f32 %v812, %v1516
        %v1525 = vadd.f32 %v818, %v1516
        %v1526 = vadd.f32 %v822, %v1516
        %v1527 = vadd.f32 %v828, %v1516
        %v1528 = vadd.f32 %v832, %v1516
        %v1529 = vadd.f32 %v838, %v1516
        %v1530 = vadd.f32 %v842, %v1516
        %v1531 = vadd.f32 %v848, %v1516
        %v1532 = vadd.f32 %v852, %v1516
        %v1533 = vpack.c.bf16 %v1518, %v1517
        %v1534 = vpack.c.bf16 %v1520, %v1519
        %v1535 = vpack.c.bf16 %v1522, %v1521
        %v1536 = vpack.c.bf16 %v1524, %v1523
        %v1537 = vpack.c.bf16 %v1526, %v1525
        %v1538 = vpack.c.bf16 %v1528, %v1527
        %v1539 = vpack.c.bf16 %v1530, %v1529
        %v1540 = vpack.c.bf16 %v1532, %v1531
        %v1589 = vunpack.c.l.b16 %v1437
        %v1590 = vunpack.c.l.b16 %v1438
        %v1591 = vunpack.c.l.b16 %v1439
        %v1592 = vunpack.c.l.b16 %v1440
        %v1593 = vunpack.c.l.b16 %v1441
        %v1594 = vunpack.c.l.b16 %v1442
        %v1595 = vunpack.c.l.b16 %v1443
        %v1596 = vunpack.c.l.b16 %v1444
        %v1597 = vunpack.c.l.b16 %v1445
        %v1598 = vunpack.c.l.b16 %v1446
        %v1599 = vunpack.c.l.b16 %v1447
        %v1600 = vunpack.c.l.b16 %v1448
        %v1601 = vunpack.c.l.b16 %v1449
        %v1602 = vunpack.c.l.b16 %v1450
        %v1603 = vunpack.c.l.b16 %v1451
        %v1604 = vunpack.c.l.b16 %v1452
        %v1605 = vunpack.c.l.b16 %v1453
        %v1606 = vunpack.c.l.b16 %v1454
        %v1607 = vunpack.c.l.b16 %v1455
        %v1608 = vunpack.c.l.b16 %v1456
        %v1609 = vunpack.c.l.b16 %v1457
        %v1610 = vunpack.c.l.b16 %v1458
        %v1611 = vunpack.c.l.b16 %v1459
        %v1612 = vunpack.c.l.b16 %v1460
        %v1613 = vunpack.c.l.b16 %v1461
        %v1614 = vunpack.c.l.b16 %v1462
        %v1615 = vunpack.c.l.b16 %v1463
        %v1616 = vunpack.c.l.b16 %v1464
        %v1617 = vunpack.c.l.b16 %v1465
        %v1618 = vunpack.c.l.b16 %v1466
        %v1619 = vunpack.c.l.b16 %v1467
        %v1620 = vunpack.c.l.b16 %v1468
        %v1621 = vunpack.c.l.b16 %v1469
        %v1622 = vunpack.c.l.b16 %v1470
        %v1623 = vunpack.c.l.b16 %v1471
        %v1624 = vunpack.c.l.b16 %v1472
        %v1625 = vunpack.c.l.b16 %v1473
        %v1626 = vunpack.c.l.b16 %v1474
        %v1627 = vunpack.c.l.b16 %v1475
        %v1628 = vunpack.c.l.b16 %v1476
        %v1629 = vunpack.c.l.b16 %v1477
        %v1630 = vunpack.c.l.b16 %v1478
        %v1631 = vunpack.c.l.b16 %v1479
        %v1632 = vunpack.c.l.b16 %v1480
        %v1633 = vunpack.c.l.b16 %v1481
        %v1634 = vunpack.c.l.b16 %v1482
        %v1635 = vunpack.c.l.b16 %v1483
        %v1636 = vunpack.c.l.b16 %v1484
        %v1637 = vpack.c.b16 %v1590, %v1589
        %v1638 = vpack.c.b16 %v1592, %v1591
        %v1639 = vpack.c.b16 %v1594, %v1593
        %v1640 = vpack.c.b16 %v1596, %v1595
        %v1641 = vpack.c.b16 %v1598, %v1597
        %v1642 = vpack.c.b16 %v1600, %v1599
        %v1643 = vpack.c.b16 %v1602, %v1601
        %v1644 = vpack.c.b16 %v1604, %v1603
        %v1645 = vpack.c.b16 %v1606, %v1605
        %v1646 = vpack.c.b16 %v1608, %v1607
        %v1647 = vpack.c.b16 %v1610, %v1609
        %v1648 = vpack.c.b16 %v1612, %v1611
        %v1649 = vpack.c.b16 %v1614, %v1613
        %v1650 = vpack.c.b16 %v1616, %v1615
        %v1651 = vpack.c.b16 %v1618, %v1617
        %v1652 = vpack.c.b16 %v1620, %v1619
        %v1653 = vpack.c.b16 %v1622, %v1621
        %v1654 = vpack.c.b16 %v1624, %v1623
        %v1655 = vpack.c.b16 %v1626, %v1625
        %v1656 = vpack.c.b16 %v1628, %v1627
        %v1657 = vpack.c.b16 %v1630, %v1629
        %v1658 = vpack.c.b16 %v1632, %v1631
        %v1659 = vpack.c.b16 %v1634, %v1633
        %v1660 = vpack.c.b16 %v1636, %v1635
        %vm1661 = vcmask 523264
        %v1663 = vsel %vm1661, %v1533, 0
        %v1666 = vsel %vm1661, %v1534, 0
        %v1669 = vsel %vm1661, %v1535, 0
        %v1672 = vsel %vm1661, %v1536, 0
        %v1675 = vsel %vm1661, %v1537, 0
        %v1678 = vsel %vm1661, %v1538, 0
        %v1681 = vsel %vm1661, %v1539, 0
        %v1684 = vsel %vm1661, %v1540, 0
        %v1687 = vsel %vm1661, %v1637, 0
        %v1690 = vsel %vm1661, %v1638, 0
        %v1693 = vsel %vm1661, %v1639, 0
        %v1696 = vsel %vm1661, %v1640, 0
        %v1699 = vsel %vm1661, %v1641, 0
        %v1702 = vsel %vm1661, %v1642, 0
        %v1705 = vsel %vm1661, %v1643, 0
        %v1708 = vsel %vm1661, %v1644, 0
        %v1711 = vsel %vm1661, %v1645, 0
        %v1714 = vsel %vm1661, %v1646, 0
        %v1717 = vsel %vm1661, %v1647, 0
        %v1720 = vsel %vm1661, %v1648, 0
        %v1723 = vsel %vm1661, %v1649, 0
        %v1726 = vsel %vm1661, %v1650, 0
        %v1729 = vsel %vm1661, %v1651, 0
        %v1732 = vsel %vm1661, %v1652, 0
        %v1735 = vsel %vm1661, %v1653, 0
        %v1738 = vsel %vm1661, %v1654, 0
        %v1741 = vsel %vm1661, %v1655, 0
        %v1744 = vsel %vm1661, %v1656, 0
        %v1747 = vsel %vm1661, %v1657, 0
        %v1750 = vsel %vm1661, %v1658, 0
        %v1753 = vsel %vm1661, %v1659, 0
        %v1756 = vsel %vm1661, %v1660, 0
        %1758 = vmatprep.subr.bf16.mxu0 0
        %1759 = vmatpush1.bf16.xpose.msra.mxu0 %v1687
        %1760 = vmatprep.subr.bf16.mxu0 0
        %1761 = vmatpush1.bf16.xpose.msra.mxu0 %v1690
        %1762 = vmatprep.subr.bf16.mxu0 0
        %1763 = vmatpush1.bf16.xpose.msra.mxu0 %v1693
        %1764 = vmatprep.subr.bf16.mxu0 0
        %1765 = vmatpush1.bf16.xpose.msra.mxu0 %v1696
        %1766 = vmatprep.subr.bf16.mxu0 0
        %1767 = vmatpush1.bf16.xpose.msra.mxu0 %v1699
        %1768 = vmatprep.subr.bf16.mxu0 0
        %1769 = vmatpush1.bf16.xpose.msra.mxu0 %v1702
        %1770 = vmatprep.subr.bf16.mxu0 0
        %1771 = vmatpush1.bf16.xpose.msra.mxu0 %v1705
        %1772 = vmatprep.subr.bf16.mxu0 0
        %1773 = vmatpush1.bf16.xpose.msra.mxu0 %v1708
        %1774 = vmatprep.subr.bf16.mxu0 0
        %1775 = vmatpush1.bf16.xpose.msra.mxu0 %v1711
        %1776 = vmatprep.subr.bf16.mxu0 0
        %1777 = vmatpush1.bf16.xpose.msra.mxu0 %v1714
        %1778 = vmatprep.subr.bf16.mxu0 0
        %1779 = vmatpush1.bf16.xpose.msra.mxu0 %v1717
        %1780 = vmatprep.subr.bf16.mxu0 0
        %1781 = vmatpush1.bf16.xpose.msra.mxu0 %v1720
        %1782 = vmatprep.subr.bf16.mxu0 0
        %1783 = vmatpush1.bf16.xpose.msra.mxu0 %v1723
        %1784 = vmatprep.subr.bf16.mxu0 0
        %1785 = vmatpush1.bf16.xpose.msra.mxu0 %v1726
        %1786 = vmatprep.subr.bf16.mxu0 0
        %1787 = vmatpush1.bf16.xpose.msra.mxu0 %v1729
        %1788 = vmatprep.subr.bf16.mxu0 0
        %1789 = vmatpush1.bf16.xpose.msra.mxu0 %v1732
        %1790 = vmatprep.mubr.bf16.mxu0 0
        %1791 = vmatmul.mubr.bf16.gmra.mrb[0].mxu0 %v1663
        %v1792 = vpop.f32.mrb[0].mxu0
        %v1793 = vadd.f32 0.0, %v1792
        %v1794 = vpop.f32.mrb[0].mxu0
        %v1795 = vadd.f32 0.0, %v1794
        %v1796 = vpop.f32.mrb[0].mxu0
        %v1797 = vadd.f32 0.0, %v1796
        %v1798 = vpop.f32.mrb[0].mxu0
        %v1799 = vadd.f32 0.0, %v1798
        %1800 = vmatprep.mubr.bf16.mxu0 0
        %1801 = vmatmul.mubr.bf16.gmra.mrb[0].mxu0 %v1666
        %v1802 = vpop.f32.mrb[0].mxu0
        %v1803 = vadd.f32 0.0, %v1802
        %v1804 = vpop.f32.mrb[0].mxu0
        %v1805 = vadd.f32 0.0, %v1804
        %v1806 = vpop.f32.mrb[0].mxu0
        %v1807 = vadd.f32 0.0, %v1806
        %v1808 = vpop.f32.mrb[0].mxu0
        %v1809 = vadd.f32 0.0, %v1808
        %1810 = vmatprep.mubr.bf16.mxu0 0
        %1811 = vmatmul.mubr.bf16.gmra.mrb[0].mxu0 %v1669
        %v1812 = vpop.f32.mrb[0].mxu0
        %v1813 = vadd.f32 0.0, %v1812
        %v1814 = vpop.f32.mrb[0].mxu0
        %v1815 = vadd.f32 0.0, %v1814
        %v1816 = vpop.f32.mrb[0].mxu0
        %v1817 = vadd.f32 0.0, %v1816
        %v1818 = vpop.f32.mrb[0].mxu0
        %v1819 = vadd.f32 0.0, %v1818
        %1820 = vmatprep.mubr.bf16.mxu0 0
        %1821 = vmatmul.mubr.bf16.gmra.mrb[0].mxu0 %v1672
        %v1822 = vpop.f32.mrb[0].mxu0
        %v1823 = vadd.f32 0.0, %v1822
        %v1824 = vpop.f32.mrb[0].mxu0
        %v1825 = vadd.f32 0.0, %v1824
        %v1826 = vpop.f32.mrb[0].mxu0
        %v1827 = vadd.f32 0.0, %v1826
        %v1828 = vpop.f32.mrb[0].mxu0
        %v1829 = vadd.f32 0.0, %v1828
        %1830 = vmatprep.mubr.bf16.mxu0 0
        %1831 = vmatmul.mubr.bf16.gmra.mrb[0].mxu0 %v1675
        %v1832 = vpop.f32.mrb[0].mxu0
        %v1833 = vadd.f32 0.0, %v1832
        %v1834 = vpop.f32.mrb[0].mxu0
        %v1835 = vadd.f32 0.0, %v1834
        %v1836 = vpop.f32.mrb[0].mxu0
        %v1837 = vadd.f32 0.0, %v1836
        %v1838 = vpop.f32.mrb[0].mxu0
        %v1839 = vadd.f32 0.0, %v1838
        %1840 = vmatprep.mubr.bf16.mxu0 0
        %1841 = vmatmul.mubr.bf16.gmra.mrb[0].mxu0 %v1678
        %v1842 = vpop.f32.mrb[0].mxu0
        %v1843 = vadd.f32 0.0, %v1842
        %v1844 = vpop.f32.mrb[0].mxu0
        %v1845 = vadd.f32 0.0, %v1844
        %v1846 = vpop.f32.mrb[0].mxu0
        %v1847 = vadd.f32 0.0, %v1846
        %v1848 = vpop.f32.mrb[0].mxu0
        %v1849 = vadd.f32 0.0, %v1848
        %1850 = vmatprep.mubr.bf16.mxu0 0
        %1851 = vmatmul.mubr.bf16.gmra.mrb[0].mxu0 %v1681
        %v1852 = vpop.f32.mrb[0].mxu0
        %v1853 = vadd.f32 0.0, %v1852
        %v1854 = vpop.f32.mrb[0].mxu0
        %v1855 = vadd.f32 0.0, %v1854
        %v1856 = vpop.f32.mrb[0].mxu0
        %v1857 = vadd.f32 0.0, %v1856
        %v1858 = vpop.f32.mrb[0].mxu0
        %v1859 = vadd.f32 0.0, %v1858
        %1860 = vmatprep.mubr.bf16.mxu0 0
        %1861 = vmatmul.mubr.bf16.gmra.mrb[0].mxu0 %v1684
        %v1862 = vpop.f32.mrb[0].mxu0
        %v1863 = vadd.f32 0.0, %v1862
        %v1864 = vpop.f32.mrb[0].mxu0
        %v1865 = vadd.f32 0.0, %v1864
        %v1866 = vpop.f32.mrb[0].mxu0
        %v1867 = vadd.f32 0.0, %v1866
        %v1868 = vpop.f32.mrb[0].mxu0
        %v1869 = vadd.f32 0.0, %v1868
        %1870 = vdwg.mxu0
        %1871 = vmatprep.subr.bf16.mxu0 0
        %1872 = vmatpush1.bf16.xpose.msra.mxu0 %v1735
        %1873 = vmatprep.subr.bf16.mxu0 0
        %1874 = vmatpush1.bf16.xpose.msra.mxu0 %v1738
        %1875 = vmatprep.subr.bf16.mxu0 0
        %1876 = vmatpush1.bf16.xpose.msra.mxu0 %v1741
        %1877 = vmatprep.subr.bf16.mxu0 0
        %1878 = vmatpush1.bf16.xpose.msra.mxu0 %v1744
        %1879 = vmatprep.subr.bf16.mxu0 0
        %1880 = vmatpush1.bf16.xpose.msra.mxu0 %v1747
        %1881 = vmatprep.subr.bf16.mxu0 0
        %1882 = vmatpush1.bf16.xpose.msra.mxu0 %v1750
        %1883 = vmatprep.subr.bf16.mxu0 0
        %1884 = vmatpush1.bf16.xpose.msra.mxu0 %v1753
        %1885 = vmatprep.subr.bf16.mxu0 0
        %1886 = vmatpush1.bf16.xpose.msra.mxu0 %v1756
        %1887 = vmatprep.subr.bf16.mxu0 0
        %1888 = vmatpush1.bf16.xpose.msra.mxu0 0
        %1889 = vmatprep.subr.bf16.mxu0 0
        %1890 = vmatpush1.bf16.xpose.msra.mxu0 0
        %1891 = vmatprep.subr.bf16.mxu0 0
        %1892 = vmatpush1.bf16.xpose.msra.mxu0 0
        %1893 = vmatprep.subr.bf16.mxu0 0
        %1894 = vmatpush1.bf16.xpose.msra.mxu0 0
        %1895 = vmatprep.subr.bf16.mxu0 0
        %1896 = vmatpush1.bf16.xpose.msra.mxu0 0
        %1897 = vmatprep.subr.bf16.mxu0 0
        %1898 = vmatpush1.bf16.xpose.msra.mxu0 0
        %1899 = vmatprep.subr.bf16.mxu0 0
        %1900 = vmatpush1.bf16.xpose.msra.mxu0 0
        %1901 = vmatprep.subr.bf16.mxu0 0
        %1902 = vmatpush1.bf16.xpose.msra.mxu0 0
        %1903 = vmatprep.mubr.bf16.mxu0 0
        %1904 = vmatmul.mubr.bf16.gmra.mrb[0].mxu0 %v1663
        %v1905 = vpop.f32.mrb[0].mxu0
        %v1906 = vadd.f32 0.0, %v1905
        %v1907 = vpop.f32.mrb[0].mxu0
        %v1908 = vpop.f32.mrb[0].mxu0
        %v1909 = vadd.f32 0.0, %v1908
        %v1910 = vpop.f32.mrb[0].mxu0
        %1911 = vmatprep.mubr.bf16.mxu0 0
        %1912 = vmatmul.mubr.bf16.gmra.mrb[0].mxu0 %v1666
        %v1913 = vpop.f32.mrb[0].mxu0
        %v1914 = vadd.f32 0.0, %v1913
        %v1915 = vpop.f32.mrb[0].mxu0
        %v1916 = vpop.f32.mrb[0].mxu0
        %v1917 = vadd.f32 0.0, %v1916
        %v1918 = vpop.f32.mrb[0].mxu0
        %1919 = vmatprep.mubr.bf16.mxu0 0
        %1920 = vmatmul.mubr.bf16.gmra.mrb[0].mxu0 %v1669
        %v1921 = vpop.f32.mrb[0].mxu0
        %v1922 = vadd.f32 0.0, %v1921
        %v1923 = vpop.f32.mrb[0].mxu0
        %v1924 = vpop.f32.mrb[0].mxu0
        %v1925 = vadd.f32 0.0, %v1924
        %v1926 = vpop.f32.mrb[0].mxu0
        %1927 = vmatprep.mubr.bf16.mxu0 0
        %1928 = vmatmul.mubr.bf16.gmra.mrb[0].mxu0 %v1672
        %v1929 = vpop.f32.mrb[0].mxu0
        %v1930 = vadd.f32 0.0, %v1929
        %v1931 = vpop.f32.mrb[0].mxu0
        %v1932 = vpop.f32.mrb[0].mxu0
        %v1933 = vadd.f32 0.0, %v1932
        %v1934 = vpop.f32.mrb[0].mxu0
        %1935 = vmatprep.mubr.bf16.mxu0 0
        %1936 = vmatmul.mubr.bf16.gmra.mrb[0].mxu0 %v1675
        %v1937 = vpop.f32.mrb[0].mxu0
        %v1938 = vadd.f32 0.0, %v1937
        %v1939 = vpop.f32.mrb[0].mxu0
        %v1940 = vpop.f32.mrb[0].mxu0
        %v1941 = vadd.f32 0.0, %v1940
        %v1942 = vpop.f32.mrb[0].mxu0
        %1943 = vmatprep.mubr.bf16.mxu0 0
        %1944 = vmatmul.mubr.bf16.gmra.mrb[0].mxu0 %v1678
        %v1945 = vpop.f32.mrb[0].mxu0
        %v1946 = vadd.f32 0.0, %v1945
        %v1947 = vpop.f32.mrb[0].mxu0
        %v1948 = vpop.f32.mrb[0].mxu0
        %v1949 = vadd.f32 0.0, %v1948
        %v1950 = vpop.f32.mrb[0].mxu0
        %1951 = vmatprep.mubr.bf16.mxu0 0
        %1952 = vmatmul.mubr.bf16.gmra.mrb[0].mxu0 %v1681
        %v1953 = vpop.f32.mrb[0].mxu0
        %v1954 = vadd.f32 0.0, %v1953
        %v1955 = vpop.f32.mrb[0].mxu0
        %v1956 = vpop.f32.mrb[0].mxu0
        %v1957 = vadd.f32 0.0, %v1956
        %v1958 = vpop.f32.mrb[0].mxu0
        %1959 = vmatprep.mubr.bf16.mxu0 0
        %1960 = vmatmul.mubr.bf16.gmra.mrb[0].mxu0 %v1684
        %v1961 = vpop.f32.mrb[0].mxu0
        %v1962 = vadd.f32 0.0, %v1961
        %v1963 = vpop.f32.mrb[0].mxu0
        %v1964 = vpop.f32.mrb[0].mxu0
        %v1965 = vadd.f32 0.0, %v1964
        %v1966 = vpop.f32.mrb[0].mxu0
        %1967 = vdwg.mxu0
        %1969 = vrot.lane.b32.xlu0 %v1793, 256
        %v1970 = vpop.permute.xlu0 %1969
        %1972 = vrot.lane.b32.xlu0 %v1795, 256
        %v1973 = vpop.permute.xlu0 %1972
        %1975 = vrot.lane.b32.xlu0 %v1906, 256
        %v1976 = vpop.permute.xlu0 %1975
        %v1977 = vlaneseq
        %v1978 = vshrl.u32 %v1977, 7
        %v1979 = vlaneseq
        %v1980 = vand.u32 %v1979, 127
        %vm1981 = vcmp.lt.s32.totalorder %v1980, %v1978
        %v1982 = vsel %vm1981, %v1973, %v1976
        %v1983 = vsel %vm1981, %v1970, %v1973
        %s1985 = sor.u32 256, 8
        %1986 = vrot.lane.b32.xlu0 %v1797, %s1985
        %v1987 = vpop.permute.xlu0 %1986
        %s1989 = sor.u32 256, 8
        %1990 = vrot.lane.b32.xlu0 %v1799, %s1989
        %v1991 = vpop.permute.xlu0 %1990
        %s1993 = sor.u32 256, 8
        %1994 = vrot.lane.b32.xlu0 %v1909, %s1993
        %v1995 = vpop.permute.xlu0 %1994
        %v1996 = vadd.s32 %v1978, 8
        %vm1997 = vcmp.lt.s32.totalorder %v1980, %v1996
        %v1998 = vsel %vm1997, %v1991, %v1995
        %v1999 = vsel %vm1997, %v1987, %v1991
        %s2001 = sor.u32 256, 16
        %2002 = vrot.lane.b32.xlu0 %v1803, %s2001
        %v2003 = vpop.permute.xlu0 %2002
        %s2005 = sor.u32 256, 16
        %2006 = vrot.lane.b32.xlu0 %v1805, %s2005
        %v2007 = vpop.permute.xlu0 %2006
        %s2009 = sor.u32 256, 16
        %2010 = vrot.lane.b32.xlu0 %v1914, %s2009
        %v2011 = vpop.permute.xlu0 %2010
        %v2012 = vadd.s32 %v1978, 16
        %vm2013 = vcmp.lt.s32.totalorder %v1980, %v2012
        %v2014 = vsel %vm2013, %v2007, %v2011
        %v2015 = vsel %vm2013, %v2003, %v2007
        %s2017 = sor.u32 256, 24
        %2018 = vrot.lane.b32.xlu0 %v1807, %s2017
        %v2019 = vpop.permute.xlu0 %2018
        %s2021 = sor.u32 256, 24
        %2022 = vrot.lane.b32.xlu0 %v1809, %s2021
        %v2023 = vpop.permute.xlu0 %2022
        %s2025 = sor.u32 256, 24
        %2026 = vrot.lane.b32.xlu0 %v1917, %s2025
        %v2027 = vpop.permute.xlu0 %2026
        %v2028 = vadd.s32 %v1978, 24
        %vm2029 = vcmp.lt.s32.totalorder %v1980, %v2028
        %v2030 = vsel %vm2029, %v2023, %v2027
        %v2031 = vsel %vm2029, %v2019, %v2023
        %s2033 = sor.u32 256, 32
        %2034 = vrot.lane.b32.xlu0 %v1813, %s2033
        %v2035 = vpop.permute.xlu0 %2034
        %s2037 = sor.u32 256, 32
        %2038 = vrot.lane.b32.xlu0 %v1815, %s2037
        %v2039 = vpop.permute.xlu0 %2038
        %s2041 = sor.u32 256, 32
        %2042 = vrot.lane.b32.xlu0 %v1922, %s2041
        %v2043 = vpop.permute.xlu0 %2042
        %v2044 = vadd.s32 %v1978, 32
        %vm2045 = vcmp.lt.s32.totalorder %v1980, %v2044
        %v2046 = vsel %vm2045, %v2039, %v2043
        %v2047 = vsel %vm2045, %v2035, %v2039
        %s2049 = sor.u32 256, 40
        %2050 = vrot.lane.b32.xlu0 %v1817, %s2049
        %v2051 = vpop.permute.xlu0 %2050
        %s2053 = sor.u32 256, 40
        %2054 = vrot.lane.b32.xlu0 %v1819, %s2053
        %v2055 = vpop.permute.xlu0 %2054
        %s2057 = sor.u32 256, 40
        %2058 = vrot.lane.b32.xlu0 %v1925, %s2057
        %v2059 = vpop.permute.xlu0 %2058
        %v2060 = vadd.s32 %v1978, 40
        %vm2061 = vcmp.lt.s32.totalorder %v1980, %v2060
        %v2062 = vsel %vm2061, %v2055, %v2059
        %v2063 = vsel %vm2061, %v2051, %v2055
        %s2065 = sor.u32 256, 48
        %2066 = vrot.lane.b32.xlu0 %v1823, %s2065
        %v2067 = vpop.permute.xlu0 %2066
        %s2069 = sor.u32 256, 48
        %2070 = vrot.lane.b32.xlu0 %v1825, %s2069
        %v2071 = vpop.permute.xlu0 %2070
        %s2073 = sor.u32 256, 48
        %2074 = vrot.lane.b32.xlu0 %v1930, %s2073
        %v2075 = vpop.permute.xlu0 %2074
        %v2076 = vadd.s32 %v1978, 48
        %vm2077 = vcmp.lt.s32.totalorder %v1980, %v2076
        %v2078 = vsel %vm2077, %v2071, %v2075
        %v2079 = vsel %vm2077, %v2067, %v2071
        %s2081 = sor.u32 256, 56
        %2082 = vrot.lane.b32.xlu0 %v1827, %s2081
        %v2083 = vpop.permute.xlu0 %2082
        %s2085 = sor.u32 256, 56
        %2086 = vrot.lane.b32.xlu0 %v1829, %s2085
        %v2087 = vpop.permute.xlu0 %2086
        %s2089 = sor.u32 256, 56
        %2090 = vrot.lane.b32.xlu0 %v1933, %s2089
        %v2091 = vpop.permute.xlu0 %2090
        %v2092 = vadd.s32 %v1978, 56
        %vm2093 = vcmp.lt.s32.totalorder %v1980, %v2092
        %v2094 = vsel %vm2093, %v2087, %v2091
        %v2095 = vsel %vm2093, %v2083, %v2087
        %s2097 = sor.u32 256, 64
        %2098 = vrot.lane.b32.xlu0 %v1833, %s2097
        %v2099 = vpop.permute.xlu0 %2098
        %s2101 = sor.u32 256, 64
        %2102 = vrot.lane.b32.xlu0 %v1835, %s2101
        %v2103 = vpop.permute.xlu0 %2102
        %s2105 = sor.u32 256, 64
        %2106 = vrot.lane.b32.xlu0 %v1938, %s2105
        %v2107 = vpop.permute.xlu0 %2106
        %v2108 = vadd.s32 %v1978, 64
        %vm2109 = vcmp.lt.s32.totalorder %v1980, %v2108
        %v2110 = vsel %vm2109, %v2103, %v2107
        %v2111 = vsel %vm2109, %v2099, %v2103
        %s2113 = sor.u32 256, 72
        %2114 = vrot.lane.b32.xlu0 %v1837, %s2113
        %v2115 = vpop.permute.xlu0 %2114
        %s2117 = sor.u32 256, 72
        %2118 = vrot.lane.b32.xlu0 %v1839, %s2117
        %v2119 = vpop.permute.xlu0 %2118
        %s2121 = sor.u32 256, 72
        %2122 = vrot.lane.b32.xlu0 %v1941, %s2121
        %v2123 = vpop.permute.xlu0 %2122
        %v2124 = vadd.s32 %v1978, 72
        %vm2125 = vcmp.lt.s32.totalorder %v1980, %v2124
        %v2126 = vsel %vm2125, %v2119, %v2123
        %v2127 = vsel %vm2125, %v2115, %v2119
        %s2129 = sor.u32 256, 80
        %2130 = vrot.lane.b32.xlu0 %v1843, %s2129
        %v2131 = vpop.permute.xlu0 %2130
        %s2133 = sor.u32 256, 80
        %2134 = vrot.lane.b32.xlu0 %v1845, %s2133
        %v2135 = vpop.permute.xlu0 %2134
        %s2137 = sor.u32 256, 80
        %2138 = vrot.lane.b32.xlu0 %v1946, %s2137
        %v2139 = vpop.permute.xlu0 %2138
        %v2140 = vadd.s32 %v1978, 80
        %vm2141 = vcmp.lt.s32.totalorder %v1980, %v2140
        %v2142 = vsel %vm2141, %v2135, %v2139
        %v2143 = vsel %vm2141, %v2131, %v2135
        %s2145 = sor.u32 256, 88
        %2146 = vrot.lane.b32.xlu0 %v1847, %s2145
        %v2147 = vpop.permute.xlu0 %2146
        %s2149 = sor.u32 256, 88
        %2150 = vrot.lane.b32.xlu0 %v1849, %s2149
        %v2151 = vpop.permute.xlu0 %2150
        %s2153 = sor.u32 256, 88
        %2154 = vrot.lane.b32.xlu0 %v1949, %s2153
        %v2155 = vpop.permute.xlu0 %2154
        %v2156 = vadd.s32 %v1978, 88
        %vm2157 = vcmp.lt.s32.totalorder %v1980, %v2156
        %v2158 = vsel %vm2157, %v2151, %v2155
        %v2159 = vsel %vm2157, %v2147, %v2151
        %s2161 = sor.u32 256, 96
        %2162 = vrot.lane.b32.xlu0 %v1853, %s2161
        %v2163 = vpop.permute.xlu0 %2162
        %s2165 = sor.u32 256, 96
        %2166 = vrot.lane.b32.xlu0 %v1855, %s2165
        %v2167 = vpop.permute.xlu0 %2166
        %s2169 = sor.u32 256, 96
        %2170 = vrot.lane.b32.xlu0 %v1954, %s2169
        %v2171 = vpop.permute.xlu0 %2170
        %v2172 = vadd.s32 %v1978, 96
        %vm2173 = vcmp.lt.s32.totalorder %v1980, %v2172
        %v2174 = vsel %vm2173, %v2167, %v2171
        %v2175 = vsel %vm2173, %v2163, %v2167
        %s2177 = sor.u32 256, 104
        %2178 = vrot.lane.b32.xlu0 %v1857, %s2177
        %v2179 = vpop.permute.xlu0 %2178
        %s2181 = sor.u32 256, 104
        %2182 = vrot.lane.b32.xlu0 %v1859, %s2181
        %v2183 = vpop.permute.xlu0 %2182
        %s2185 = sor.u32 256, 104
        %2186 = vrot.lane.b32.xlu0 %v1957, %s2185
        %v2187 = vpop.permute.xlu0 %2186
        %v2188 = vadd.s32 %v1978, 104
        %vm2189 = vcmp.lt.s32.totalorder %v1980, %v2188
        %v2190 = vsel %vm2189, %v2183, %v2187
        %v2191 = vsel %vm2189, %v2179, %v2183
        %s2193 = sor.u32 256, 112
        %2194 = vrot.lane.b32.xlu0 %v1863, %s2193
        %v2195 = vpop.permute.xlu0 %2194
        %s2197 = sor.u32 256, 112
        %2198 = vrot.lane.b32.xlu0 %v1865, %s2197
        %v2199 = vpop.permute.xlu0 %2198
        %s2201 = sor.u32 256, 112
        %2202 = vrot.lane.b32.xlu0 %v1962, %s2201
        %v2203 = vpop.permute.xlu0 %2202
        %v2204 = vadd.s32 %v1978, 112
        %vm2205 = vcmp.lt.s32.totalorder %v1980, %v2204
        %v2206 = vsel %vm2205, %v2199, %v2203
        %v2207 = vsel %vm2205, %v2195, %v2199
        %s2209 = sor.u32 256, 120
        %2210 = vrot.lane.b32.xlu0 %v1867, %s2209
        %v2211 = vpop.permute.xlu0 %2210
        %s2213 = sor.u32 256, 120
        %2214 = vrot.lane.b32.xlu0 %v1869, %s2213
        %v2215 = vpop.permute.xlu0 %2214
        %s2217 = sor.u32 256, 120
        %2218 = vrot.lane.b32.xlu0 %v1965, %s2217
        %v2219 = vpop.permute.xlu0 %2218
        %v2220 = vadd.s32 %v1978, 120
        %vm2221 = vcmp.lt.s32.totalorder %v1980, %v2220
        %v2222 = vsel %vm2221, %v2215, %v2219
        %v2223 = vsel %vm2221, %v2211, %v2215
        %v2225 = vsel %vm1661, %v1505, 0
        %v2228 = vsel %vm1661, %v1506, 0
        %v2231 = vsel %vm1661, %v1507, 0
        %v2234 = vsel %vm1661, %v1508, 0
        %v2237 = vsel %vm1661, %v1509, 0
        %v2240 = vsel %vm1661, %v1510, 0
        %v2243 = vsel %vm1661, %v1511, 0
        %v2246 = vsel %vm1661, %v1512, 0
        %v2249 = vsel %vm1661, %v984, 0
        %v2252 = vsel %vm1661, %v986, 0
        %v2255 = vsel %vm1661, %v988, 0
        %v2258 = vsel %vm1661, %v990, 0
        %v2261 = vsel %vm1661, %v992, 0
        %v2264 = vsel %vm1661, %v994, 0
        %v2267 = vsel %vm1661, %v996, 0
        %v2270 = vsel %vm1661, %v998, 0
        %v2273 = vsel %vm1661, %v1000, 0
        %v2276 = vsel %vm1661, %v1002, 0
        %v2279 = vsel %vm1661, %v1004, 0
        %v2282 = vsel %vm1661, %v1006, 0
        %v2285 = vsel %vm1661, %v1008, 0
        %v2288 = vsel %vm1661, %v1010, 0
        %v2291 = vsel %vm1661, %v1012, 0
        %v2294 = vsel %vm1661, %v1014, 0
        %2296 = vmatprep.subr.bf16.mxu0 0
        %2297 = vmatpush1.bf16.xpose.msra.mxu0 %v2249
        %2298 = vmatprep.subr.bf16.mxu0 0
        %2299 = vmatpush1.bf16.xpose.msra.mxu0 %v2252
        %2300 = vmatprep.subr.bf16.mxu0 0
        %2301 = vmatpush1.bf16.xpose.msra.mxu0 %v2255
        %2302 = vmatprep.subr.bf16.mxu0 0
        %2303 = vmatpush1.bf16.xpose.msra.mxu0 %v2258
        %2304 = vmatprep.subr.bf16.mxu0 0
        %2305 = vmatpush1.bf16.xpose.msra.mxu0 %v2261
        %2306 = vmatprep.subr.bf16.mxu0 0
        %2307 = vmatpush1.bf16.xpose.msra.mxu0 %v2264
        %2308 = vmatprep.subr.bf16.mxu0 0
        %2309 = vmatpush1.bf16.xpose.msra.mxu0 %v2267
        %2310 = vmatprep.subr.bf16.mxu0 0
        %2311 = vmatpush1.bf16.xpose.msra.mxu0 %v2270
        %2312 = vmatprep.subr.bf16.mxu0 0
        %2313 = vmatpush1.bf16.xpose.msra.mxu0 %v2273
        %2314 = vmatprep.subr.bf16.mxu0 0
        %2315 = vmatpush1.bf16.xpose.msra.mxu0 %v2276
        %2316 = vmatprep.subr.bf16.mxu0 0
        %2317 = vmatpush1.bf16.xpose.msra.mxu0 %v2279
        %2318 = vmatprep.subr.bf16.mxu0 0
        %2319 = vmatpush1.bf16.xpose.msra.mxu0 %v2282
        %2320 = vmatprep.subr.bf16.mxu0 0
        %2321 = vmatpush1.bf16.xpose.msra.mxu0 %v2285
        %2322 = vmatprep.subr.bf16.mxu0 0
        %2323 = vmatpush1.bf16.xpose.msra.mxu0 %v2288
        %2324 = vmatprep.subr.bf16.mxu0 0
        %2325 = vmatpush1.bf16.xpose.msra.mxu0 %v2291
        %2326 = vmatprep.subr.bf16.mxu0 0
        %2327 = vmatpush1.bf16.xpose.msra.mxu0 %v2294
        %2328 = vmatprep.mubr.bf16.mxu0 0
        %2329 = vmatmul.mubr.bf16.gmra.mrb[0].mxu0 %v2225
        %v2330 = vpop.f32.mrb[0].mxu0
        %v2331 = vadd.f32 %v1983, %v2330
        %v2332 = vpop.f32.mrb[0].mxu0
        %v2333 = vadd.f32 %v1982, %v2332
        %v2334 = vpop.f32.mrb[0].mxu0
        %v2335 = vadd.f32 %v1999, %v2334
        %v2336 = vpop.f32.mrb[0].mxu0
        %v2337 = vadd.f32 %v1998, %v2336
        %2338 = vmatprep.mubr.bf16.mxu0 0
        %2339 = vmatmul.mubr.bf16.gmra.mrb[0].mxu0 %v2228
        %v2340 = vpop.f32.mrb[0].mxu0
        %v2341 = vadd.f32 %v2015, %v2340
        %v2342 = vpop.f32.mrb[0].mxu0
        %v2343 = vadd.f32 %v2014, %v2342
        %v2344 = vpop.f32.mrb[0].mxu0
        %v2345 = vadd.f32 %v2031, %v2344
        %v2346 = vpop.f32.mrb[0].mxu0
        %v2347 = vadd.f32 %v2030, %v2346
        %2348 = vmatprep.mubr.bf16.mxu0 0
        %2349 = vmatmul.mubr.bf16.gmra.mrb[0].mxu0 %v2231
        %v2350 = vpop.f32.mrb[0].mxu0
        %v2351 = vadd.f32 %v2047, %v2350
        %v2352 = vpop.f32.mrb[0].mxu0
        %v2353 = vadd.f32 %v2046, %v2352
        %v2354 = vpop.f32.mrb[0].mxu0
        %v2355 = vadd.f32 %v2063, %v2354
        %v2356 = vpop.f32.mrb[0].mxu0
        %v2357 = vadd.f32 %v2062, %v2356
        %2358 = vmatprep.mubr.bf16.mxu0 0
        %2359 = vmatmul.mubr.bf16.gmra.mrb[0].mxu0 %v2234
        %v2360 = vpop.f32.mrb[0].mxu0
        %v2361 = vadd.f32 %v2079, %v2360
        %v2362 = vpop.f32.mrb[0].mxu0
        %v2363 = vadd.f32 %v2078, %v2362
        %v2364 = vpop.f32.mrb[0].mxu0
        %v2365 = vadd.f32 %v2095, %v2364
        %v2366 = vpop.f32.mrb[0].mxu0
        %v2367 = vadd.f32 %v2094, %v2366
        %2368 = vmatprep.mubr.bf16.mxu0 0
        %2369 = vmatmul.mubr.bf16.gmra.mrb[0].mxu0 %v2237
        %v2370 = vpop.f32.mrb[0].mxu0
        %v2371 = vadd.f32 %v2111, %v2370
        %v2372 = vpop.f32.mrb[0].mxu0
        %v2373 = vadd.f32 %v2110, %v2372
        %v2374 = vpop.f32.mrb[0].mxu0
        %v2375 = vadd.f32 %v2127, %v2374
        %v2376 = vpop.f32.mrb[0].mxu0
        %v2377 = vadd.f32 %v2126, %v2376
        %2378 = vmatprep.mubr.bf16.mxu0 0
        %2379 = vmatmul.mubr.bf16.gmra.mrb[0].mxu0 %v2240
        %v2380 = vpop.f32.mrb[0].mxu0
        %v2381 = vadd.f32 %v2143, %v2380
        %v2382 = vpop.f32.mrb[0].mxu0
        %v2383 = vadd.f32 %v2142, %v2382
        %v2384 = vpop.f32.mrb[0].mxu0
        %v2385 = vadd.f32 %v2159, %v2384
        %v2386 = vpop.f32.mrb[0].mxu0
        %v2387 = vadd.f32 %v2158, %v2386
        %2388 = vmatprep.mubr.bf16.mxu0 0
        %2389 = vmatmul.mubr.bf16.gmra.mrb[0].mxu0 %v2243
        %v2390 = vpop.f32.mrb[0].mxu0
        %v2391 = vadd.f32 %v2175, %v2390
        %v2392 = vpop.f32.mrb[0].mxu0
        %v2393 = vadd.f32 %v2174, %v2392
        %v2394 = vpop.f32.mrb[0].mxu0
        %v2395 = vadd.f32 %v2191, %v2394
        %v2396 = vpop.f32.mrb[0].mxu0
        %v2397 = vadd.f32 %v2190, %v2396
        %2398 = vmatprep.mubr.bf16.mxu0 0
        %2399 = vmatmul.mubr.bf16.gmra.mrb[0].mxu0 %v2246
        %v2400 = vpop.f32.mrb[0].mxu0
        %v2401 = vadd.f32 %v2207, %v2400
        %v2402 = vpop.f32.mrb[0].mxu0
        %v2403 = vadd.f32 %v2206, %v2402
        %v2404 = vpop.f32.mrb[0].mxu0
        %v2405 = vadd.f32 %v2223, %v2404
        %v2406 = vpop.f32.mrb[0].mxu0
        %v2407 = vadd.f32 %v2222, %v2406
        %2408 = vdwg.mxu0
        %v2409 = vsel %vm470, 1, 0
        %v2410 = vlaneseq
        %v2411 = vshrl.u32 %v2410, 7
        %v2412 = vsub.s32 0, %v2411
        %v2413 = vrot.slane %v2409, %v2412
        %v2414 = vlaneseq
        %v2415 = vshrl.u32 %v2414, 7
        %v2416 = vsub.s32 1, %v2415
        %v2417 = vrot.slane %v2409, %v2416
        %vm2418 = vcmp.eq.s32.totalorder %v2413, 1
        %vm2419 = vcmp.eq.s32.totalorder %v2417, 1
        %v2420 = vsel %vm2418, -1e+30, %v2331
        %v2421 = vsel %vm2419, -1e+30, %v2333
        %v2422 = vsel %vm2418, -1e+30, %v2335
        %v2423 = vsel %vm2419, -1e+30, %v2337
        %v2424 = vsel %vm2418, -1e+30, %v2341
        %v2425 = vsel %vm2419, -1e+30, %v2343
        %v2426 = vsel %vm2418, -1e+30, %v2345
        %v2427 = vsel %vm2419, -1e+30, %v2347
        %v2428 = vsel %vm2418, -1e+30, %v2351
        %v2429 = vsel %vm2419, -1e+30, %v2353
        %v2430 = vsel %vm2418, -1e+30, %v2355
        %v2431 = vsel %vm2419, -1e+30, %v2357
        %v2432 = vsel %vm2418, -1e+30, %v2361
        %v2433 = vsel %vm2419, -1e+30, %v2363
        %v2434 = vsel %vm2418, -1e+30, %v2365
        %v2435 = vsel %vm2419, -1e+30, %v2367
        %v2436 = vsel %vm2418, -1e+30, %v2371
        %v2437 = vsel %vm2419, -1e+30, %v2373
        %v2438 = vsel %vm2418, -1e+30, %v2375
        %v2439 = vsel %vm2419, -1e+30, %v2377
        %v2440 = vsel %vm2418, -1e+30, %v2381
        %v2441 = vsel %vm2419, -1e+30, %v2383
        %v2442 = vsel %vm2418, -1e+30, %v2385
        %v2443 = vsel %vm2419, -1e+30, %v2387
        %v2444 = vsel %vm2418, -1e+30, %v2391
        %v2445 = vsel %vm2419, -1e+30, %v2393
        %v2446 = vsel %vm2418, -1e+30, %v2395
        %v2447 = vsel %vm2419, -1e+30, %v2397
        %v2448 = vsel %vm2418, -1e+30, %v2401
        %v2449 = vsel %vm2419, -1e+30, %v2403
        %v2450 = vsel %vm2418, -1e+30, %v2405
        %v2451 = vsel %vm2419, -1e+30, %v2407
        %v2452 = vmax.f32 %v2420, %v2421
        %2453 = vmax.xlane.f32.xlu0 %v2452
        %v2454 = vpop.xlane.xlu0 %2453
        %v2455 = vmax.f32 %v2422, %v2423
        %2456 = vmax.xlane.f32.xlu0 %v2455
        %v2457 = vpop.xlane.xlu0 %2456
        %v2458 = vmax.f32 %v2424, %v2425
        %2459 = vmax.xlane.f32.xlu0 %v2458
        %v2460 = vpop.xlane.xlu0 %2459
        %v2461 = vmax.f32 %v2426, %v2427
        %2462 = vmax.xlane.f32.xlu0 %v2461
        %v2463 = vpop.xlane.xlu0 %2462
        %v2464 = vmax.f32 %v2428, %v2429
        %2465 = vmax.xlane.f32.xlu0 %v2464
        %v2466 = vpop.xlane.xlu0 %2465
        %v2467 = vmax.f32 %v2430, %v2431
        %2468 = vmax.xlane.f32.xlu0 %v2467
        %v2469 = vpop.xlane.xlu0 %2468
        %v2470 = vmax.f32 %v2432, %v2433
        %2471 = vmax.xlane.f32.xlu0 %v2470
        %v2472 = vpop.xlane.xlu0 %2471
        %v2473 = vmax.f32 %v2434, %v2435
        %2474 = vmax.xlane.f32.xlu0 %v2473
        %v2475 = vpop.xlane.xlu0 %2474
        %v2476 = vmax.f32 %v2436, %v2437
        %2477 = vmax.xlane.f32.xlu0 %v2476
        %v2478 = vpop.xlane.xlu0 %2477
        %v2479 = vmax.f32 %v2438, %v2439
        %2480 = vmax.xlane.f32.xlu0 %v2479
        %v2481 = vpop.xlane.xlu0 %2480
        %v2482 = vmax.f32 %v2440, %v2441
        %2483 = vmax.xlane.f32.xlu0 %v2482
        %v2484 = vpop.xlane.xlu0 %2483
        %v2485 = vmax.f32 %v2442, %v2443
        %2486 = vmax.xlane.f32.xlu0 %v2485
        %v2487 = vpop.xlane.xlu0 %2486
        %v2488 = vmax.f32 %v2444, %v2445
        %2489 = vmax.xlane.f32.xlu0 %v2488
        %v2490 = vpop.xlane.xlu0 %2489
        %v2491 = vmax.f32 %v2446, %v2447
        %2492 = vmax.xlane.f32.xlu0 %v2491
        %v2493 = vpop.xlane.xlu0 %2492
        %v2494 = vmax.f32 %v2448, %v2449
        %2495 = vmax.xlane.f32.xlu0 %v2494
        %v2496 = vpop.xlane.xlu0 %2495
        %v2497 = vmax.f32 %v2450, %v2451
        %2498 = vmax.xlane.f32.xlu0 %v2497
        %v2499 = vpop.xlane.xlu0 %2498
        %v2500 = vsub.f32 %v2420, %v2454
        %v2501 = vsub.f32 %v2421, %v2454
        %v2502 = vsub.f32 %v2422, %v2457
        %v2503 = vsub.f32 %v2423, %v2457
        %v2504 = vsub.f32 %v2424, %v2460
        %v2505 = vsub.f32 %v2425, %v2460
        %v2506 = vsub.f32 %v2426, %v2463
        %v2507 = vsub.f32 %v2427, %v2463
        %v2508 = vsub.f32 %v2428, %v2466
        %v2509 = vsub.f32 %v2429, %v2466
        %v2510 = vsub.f32 %v2430, %v2469
        %v2511 = vsub.f32 %v2431, %v2469
        %v2512 = vsub.f32 %v2432, %v2472
        %v2513 = vsub.f32 %v2433, %v2472
        %v2514 = vsub.f32 %v2434, %v2475
        %v2515 = vsub.f32 %v2435, %v2475
        %v2516 = vsub.f32 %v2436, %v2478
        %v2517 = vsub.f32 %v2437, %v2478
        %v2518 = vsub.f32 %v2438, %v2481
        %v2519 = vsub.f32 %v2439, %v2481
        %v2520 = vsub.f32 %v2440, %v2484
        %v2521 = vsub.f32 %v2441, %v2484
        %v2522 = vsub.f32 %v2442, %v2487
        %v2523 = vsub.f32 %v2443, %v2487
        %v2524 = vsub.f32 %v2444, %v2490
        %v2525 = vsub.f32 %v2445, %v2490
        %v2526 = vsub.f32 %v2446, %v2493
        %v2527 = vsub.f32 %v2447, %v2493
        %v2528 = vsub.f32 %v2448, %v2496
        %v2529 = vsub.f32 %v2449, %v2496
        %v2530 = vsub.f32 %v2450, %v2499
        %v2531 = vsub.f32 %v2451, %v2499
        %v2532 = vmul.f32 %v2500, 1.442695
        %v2533 = vpow.pop %v2532
        %v2534 = vmul.f32 %v2501, 1.442695
        %v2535 = vpow.pop %v2534
        %v2536 = vmul.f32 %v2502, 1.442695
        %v2537 = vpow.pop %v2536
        %v2538 = vmul.f32 %v2503, 1.442695
        %v2539 = vpow.pop %v2538
        %v2540 = vmul.f32 %v2504, 1.442695
        %v2541 = vpow.pop %v2540
        %v2542 = vmul.f32 %v2505, 1.442695
        %v2543 = vpow.pop %v2542
        %v2544 = vmul.f32 %v2506, 1.442695
        %v2545 = vpow.pop %v2544
        %v2546 = vmul.f32 %v2507, 1.442695
        %v2547 = vpow.pop %v2546
        %v2548 = vmul.f32 %v2508, 1.442695
        %v2549 = vpow.pop %v2548
        %v2550 = vmul.f32 %v2509, 1.442695
        %v2551 = vpow.pop %v2550
        %v2552 = vmul.f32 %v2510, 1.442695
        %v2553 = vpow.pop %v2552
        %v2554 = vmul.f32 %v2511, 1.442695
        %v2555 = vpow.pop %v2554
        %v2556 = vmul.f32 %v2512, 1.442695
        %v2557 = vpow.pop %v2556
        %v2558 = vmul.f32 %v2513, 1.442695
        %v2559 = vpow.pop %v2558
        %v2560 = vmul.f32 %v2514, 1.442695
        %v2561 = vpow.pop %v2560
        %v2562 = vmul.f32 %v2515, 1.442695
        %v2563 = vpow.pop %v2562
        %v2564 = vmul.f32 %v2516, 1.442695
        %v2565 = vpow.pop %v2564
        %v2566 = vmul.f32 %v2517, 1.442695
        %v2567 = vpow.pop %v2566
        %v2568 = vmul.f32 %v2518, 1.442695
        %v2569 = vpow.pop %v2568
        %v2570 = vmul.f32 %v2519, 1.442695
        %v2571 = vpow.pop %v2570
        %v2572 = vmul.f32 %v2520, 1.442695
        %v2573 = vpow.pop %v2572
        %v2574 = vmul.f32 %v2521, 1.442695
        %v2575 = vpow.pop %v2574
        %v2576 = vmul.f32 %v2522, 1.442695
        %v2577 = vpow.pop %v2576
        %v2578 = vmul.f32 %v2523, 1.442695
        %v2579 = vpow.pop %v2578
        %v2580 = vmul.f32 %v2524, 1.442695
        %v2581 = vpow.pop %v2580
        %v2582 = vmul.f32 %v2525, 1.442695
        %v2583 = vpow.pop %v2582
        %v2584 = vmul.f32 %v2526, 1.442695
        %v2585 = vpow.pop %v2584
        %v2586 = vmul.f32 %v2527, 1.442695
        %v2587 = vpow.pop %v2586
        %v2588 = vmul.f32 %v2528, 1.442695
        %v2589 = vpow.pop %v2588
        %v2590 = vmul.f32 %v2529, 1.442695
        %v2591 = vpow.pop %v2590
        %v2592 = vmul.f32 %v2530, 1.442695
        %v2593 = vpow.pop %v2592
        %v2594 = vmul.f32 %v2531, 1.442695
        %v2595 = vpow.pop %v2594
        %v2596 = vadd.f32 %v2533, %v2535
        %2597 = vadd.xlane.f32.xlu0 %v2596
        %v2598 = vpop.xlane.xlu0 %2597
        %v2599 = vadd.f32 %v2537, %v2539
        %2600 = vadd.xlane.f32.xlu0 %v2599
        %v2601 = vpop.xlane.xlu0 %2600
        %v2602 = vadd.f32 %v2541, %v2543
        %2603 = vadd.xlane.f32.xlu0 %v2602
        %v2604 = vpop.xlane.xlu0 %2603
        %v2605 = vadd.f32 %v2545, %v2547
        %2606 = vadd.xlane.f32.xlu0 %v2605
        %v2607 = vpop.xlane.xlu0 %2606
        %v2608 = vadd.f32 %v2549, %v2551
        %2609 = vadd.xlane.f32.xlu0 %v2608
        %v2610 = vpop.xlane.xlu0 %2609
        %v2611 = vadd.f32 %v2553, %v2555
        %2612 = vadd.xlane.f32.xlu0 %v2611
        %v2613 = vpop.xlane.xlu0 %2612
        %v2614 = vadd.f32 %v2557, %v2559
        %2615 = vadd.xlane.f32.xlu0 %v2614
        %v2616 = vpop.xlane.xlu0 %2615
        %v2617 = vadd.f32 %v2561, %v2563
        %2618 = vadd.xlane.f32.xlu0 %v2617
        %v2619 = vpop.xlane.xlu0 %2618
        %v2620 = vadd.f32 %v2565, %v2567
        %2621 = vadd.xlane.f32.xlu0 %v2620
        %v2622 = vpop.xlane.xlu0 %2621
        %v2623 = vadd.f32 %v2569, %v2571
        %2624 = vadd.xlane.f32.xlu0 %v2623
        %v2625 = vpop.xlane.xlu0 %2624
        %v2626 = vadd.f32 %v2573, %v2575
        %2627 = vadd.xlane.f32.xlu0 %v2626
        %v2628 = vpop.xlane.xlu0 %2627
        %v2629 = vadd.f32 %v2577, %v2579
        %2630 = vadd.xlane.f32.xlu0 %v2629
        %v2631 = vpop.xlane.xlu0 %2630
        %v2632 = vadd.f32 %v2581, %v2583
        %2633 = vadd.xlane.f32.xlu0 %v2632
        %v2634 = vpop.xlane.xlu0 %2633
        %v2635 = vadd.f32 %v2585, %v2587
        %2636 = vadd.xlane.f32.xlu0 %v2635
        %v2637 = vpop.xlane.xlu0 %2636
        %v2638 = vadd.f32 %v2589, %v2591
        %2639 = vadd.xlane.f32.xlu0 %v2638
        %v2640 = vpop.xlane.xlu0 %2639
        %v2641 = vadd.f32 %v2593, %v2595
        %2642 = vadd.xlane.f32.xlu0 %v2641
        %v2643 = vpop.xlane.xlu0 %2642
        %v2644 = vrcp.pop %v2598
        %v2645 = vrcp.pop %v2601
        %v2646 = vrcp.pop %v2604
        %v2647 = vrcp.pop %v2607
        %v2648 = vrcp.pop %v2610
        %v2649 = vrcp.pop %v2613
        %v2650 = vrcp.pop %v2616
        %v2651 = vrcp.pop %v2619
        %v2652 = vrcp.pop %v2622
        %v2653 = vrcp.pop %v2625
        %v2654 = vrcp.pop %v2628
        %v2655 = vrcp.pop %v2631
        %v2656 = vrcp.pop %v2634
        %v2657 = vrcp.pop %v2637
        %v2658 = vrcp.pop %v2640
        %v2659 = vrcp.pop %v2643
        %v2660 = vmul.f32 %v2533, %v2644
        %v2661 = vmul.f32 %v2535, %v2644
        %v2662 = vmul.f32 %v2537, %v2645
        %v2663 = vmul.f32 %v2539, %v2645
        %v2664 = vmul.f32 %v2541, %v2646
        %v2665 = vmul.f32 %v2543, %v2646
        %v2666 = vmul.f32 %v2545, %v2647
        %v2667 = vmul.f32 %v2547, %v2647
        %v2668 = vmul.f32 %v2549, %v2648
        %v2669 = vmul.f32 %v2551, %v2648
        %v2670 = vmul.f32 %v2553, %v2649
        %v2671 = vmul.f32 %v2555, %v2649
        %v2672 = vmul.f32 %v2557, %v2650
        %v2673 = vmul.f32 %v2559, %v2650
        %v2674 = vmul.f32 %v2561, %v2651
        %v2675 = vmul.f32 %v2563, %v2651
        %v2676 = vmul.f32 %v2565, %v2652
        %v2677 = vmul.f32 %v2567, %v2652
        %v2678 = vmul.f32 %v2569, %v2653
        %v2679 = vmul.f32 %v2571, %v2653
        %v2680 = vmul.f32 %v2573, %v2654
        %v2681 = vmul.f32 %v2575, %v2654
        %v2682 = vmul.f32 %v2577, %v2655
        %v2683 = vmul.f32 %v2579, %v2655
        %v2684 = vmul.f32 %v2581, %v2656
        %v2685 = vmul.f32 %v2583, %v2656
        %v2686 = vmul.f32 %v2585, %v2657
        %v2687 = vmul.f32 %v2587, %v2657
        %v2688 = vmul.f32 %v2589, %v2658
        %v2689 = vmul.f32 %v2591, %v2658
        %v2690 = vmul.f32 %v2593, %v2659
        %v2691 = vmul.f32 %v2595, %v2659
        %v2692 = vpack.c.bf16 %v2662, %v2660
        %v2693 = vpack.c.bf16 %v2663, %v2661
        %v2694 = vpack.c.bf16 %v2666, %v2664
        %v2695 = vpack.c.bf16 %v2667, %v2665
        %v2696 = vpack.c.bf16 %v2670, %v2668
        %v2697 = vpack.c.bf16 %v2671, %v2669
        %v2698 = vpack.c.bf16 %v2674, %v2672
        %v2699 = vpack.c.bf16 %v2675, %v2673
        %v2700 = vpack.c.bf16 %v2678, %v2676
        %v2701 = vpack.c.bf16 %v2679, %v2677
        %v2702 = vpack.c.bf16 %v2682, %v2680
        %v2703 = vpack.c.bf16 %v2683, %v2681
        %v2704 = vpack.c.bf16 %v2686, %v2684
        %v2705 = vpack.c.bf16 %v2687, %v2685
        %v2706 = vpack.c.bf16 %v2690, %v2688
        %v2707 = vpack.c.bf16 %v2691, %v2689
        %2708 = vmatprep.subr.bf16.mxu0 0
        %2709 = vmatpush1.bf16.msra.mxu0 %v1401
        %2710 = vmatprep.subr.bf16.mxu0 0
        %2711 = vmatpush1.bf16.msra.mxu0 %v1403
        %2712 = vmatprep.subr.bf16.mxu0 0
        %2713 = vmatpush1.bf16.msra.mxu0 %v1405
        %2714 = vmatprep.subr.bf16.mxu0 0
        %2715 = vmatpush1.bf16.msra.mxu0 %v1407
        %2716 = vmatprep.subr.bf16.mxu0 0
        %2717 = vmatpush1.bf16.msra.mxu0 %v1409
        %2718 = vmatprep.subr.bf16.mxu0 0
        %2719 = vmatpush1.bf16.msra.mxu0 %v1411
        %2720 = vmatprep.subr.bf16.mxu0 0
        %2721 = vmatpush1.bf16.msra.mxu0 %v1413
        %2722 = vmatprep.subr.bf16.mxu0 0
        %2723 = vmatpush1.bf16.msra.mxu0 %v1415
        %2724 = vmatprep.subr.bf16.mxu0 0
        %2725 = vmatpush1.bf16.msra.mxu0 %v1417
        %2726 = vmatprep.subr.bf16.mxu0 0
        %2727 = vmatpush1.bf16.msra.mxu0 %v1419
        %2728 = vmatprep.subr.bf16.mxu0 0
        %2729 = vmatpush1.bf16.msra.mxu0 %v1421
        %2730 = vmatprep.subr.bf16.mxu0 0
        %2731 = vmatpush1.bf16.msra.mxu0 %v1423
        %2732 = vmatprep.subr.bf16.mxu0 0
        %2733 = vmatpush1.bf16.msra.mxu0 %v1425
        %2734 = vmatprep.subr.bf16.mxu0 0
        %2735 = vmatpush1.bf16.msra.mxu0 %v1427
        %2736 = vmatprep.subr.bf16.mxu0 0
        %2737 = vmatpush1.bf16.msra.mxu0 %v1429
        %2738 = vmatprep.subr.bf16.mxu0 0
        %2739 = vmatpush1.bf16.msra.mxu0 %v1431
        %2740 = vmatprep.mubr.bf16.mxu0 %v2693
        %2741 = vmatmul.mubr.bf16.gmra.mrb[0].mxu0 %v2692
        %v2742 = vpop.f32.mrb[0].mxu0
        %v2743 = vadd.f32 0.0, %v2742
        %v2744 = vpop.f32.mrb[0].mxu0
        %v2745 = vpop.f32.mrb[0].mxu0
        %v2746 = vadd.f32 0.0, %v2745
        %v2747 = vpop.f32.mrb[0].mxu0
        %2748 = vmatprep.mubr.bf16.mxu0 %v2695
        %2749 = vmatmul.mubr.bf16.gmra.mrb[0].mxu0 %v2694
        %v2750 = vpop.f32.mrb[0].mxu0
        %v2751 = vadd.f32 0.0, %v2750
        %v2752 = vpop.f32.mrb[0].mxu0
        %v2753 = vpop.f32.mrb[0].mxu0
        %v2754 = vadd.f32 0.0, %v2753
        %v2755 = vpop.f32.mrb[0].mxu0
        %2756 = vmatprep.mubr.bf16.mxu0 %v2697
        %2757 = vmatmul.mubr.bf16.gmra.mrb[0].mxu0 %v2696
        %v2758 = vpop.f32.mrb[0].mxu0
        %v2759 = vadd.f32 0.0, %v2758
        %v2760 = vpop.f32.mrb[0].mxu0
        %v2761 = vpop.f32.mrb[0].mxu0
        %v2762 = vadd.f32 0.0, %v2761
        %v2763 = vpop.f32.mrb[0].mxu0
        %2764 = vmatprep.mubr.bf16.mxu0 %v2699
        %2765 = vmatmul.mubr.bf16.gmra.mrb[0].mxu0 %v2698
        %v2766 = vpop.f32.mrb[0].mxu0
        %v2767 = vadd.f32 0.0, %v2766
        %v2768 = vpop.f32.mrb[0].mxu0
        %v2769 = vpop.f32.mrb[0].mxu0
        %v2770 = vadd.f32 0.0, %v2769
        %v2771 = vpop.f32.mrb[0].mxu0
        %2772 = vmatprep.mubr.bf16.mxu0 %v2701
        %2773 = vmatmul.mubr.bf16.gmra.mrb[0].mxu0 %v2700
        %v2774 = vpop.f32.mrb[0].mxu0
        %v2775 = vadd.f32 0.0, %v2774
        %v2776 = vpop.f32.mrb[0].mxu0
        %v2777 = vpop.f32.mrb[0].mxu0
        %v2778 = vadd.f32 0.0, %v2777
        %v2779 = vpop.f32.mrb[0].mxu0
        %2780 = vmatprep.mubr.bf16.mxu0 %v2703
        %2781 = vmatmul.mubr.bf16.gmra.mrb[0].mxu0 %v2702
        %v2782 = vpop.f32.mrb[0].mxu0
        %v2783 = vadd.f32 0.0, %v2782
        %v2784 = vpop.f32.mrb[0].mxu0
        %v2785 = vpop.f32.mrb[0].mxu0
        %v2786 = vadd.f32 0.0, %v2785
        %v2787 = vpop.f32.mrb[0].mxu0
        %2788 = vmatprep.mubr.bf16.mxu0 %v2705
        %2789 = vmatmul.mubr.bf16.gmra.mrb[0].mxu0 %v2704
        %v2790 = vpop.f32.mrb[0].mxu0
        %v2791 = vadd.f32 0.0, %v2790
        %v2792 = vpop.f32.mrb[0].mxu0
        %v2793 = vpop.f32.mrb[0].mxu0
        %v2794 = vadd.f32 0.0, %v2793
        %v2795 = vpop.f32.mrb[0].mxu0
        %2796 = vmatprep.mubr.bf16.mxu0 %v2707
        %2797 = vmatmul.mubr.bf16.gmra.mrb[0].mxu0 %v2706
        %v2798 = vpop.f32.mrb[0].mxu0
        %v2799 = vadd.f32 0.0, %v2798
        %v2800 = vpop.f32.mrb[0].mxu0
        %v2801 = vpop.f32.mrb[0].mxu0
        %v2802 = vadd.f32 0.0, %v2801
        %v2803 = vpop.f32.mrb[0].mxu0
        %2804 = vdwg.mxu0
        %2805 = vst.msk [vmem:[%s409] sm:$0xff] %vm1661, %v2743
        %2806 = vst.msk [vmem:[%s409 + $0x10] sm:$0xff] %vm1661, %v2746
        %2807 = vst.msk [vmem:[%s409 + $0x20] sm:$0xff] %vm1661, %v2751
        %2808 = vst.msk [vmem:[%s409 + $0x30] sm:$0xff] %vm1661, %v2754
        %2809 = vst.msk [vmem:[%s409 + $0x40] sm:$0xff] %vm1661, %v2759
        %2810 = vst.msk [vmem:[%s409 + $0x50] sm:$0xff] %vm1661, %v2762
        %2811 = vst.msk [vmem:[%s409 + $0x60] sm:$0xff] %vm1661, %v2767
        %2812 = vst.msk [vmem:[%s409 + $0x70] sm:$0xff] %vm1661, %v2770
        %2813 = vst.msk [vmem:[%s409 + $0x80] sm:$0xff] %vm1661, %v2775
        %2814 = vst.msk [vmem:[%s409 + $0x90] sm:$0xff] %vm1661, %v2778
        %2815 = vst.msk [vmem:[%s409 + $0xa0] sm:$0xff] %vm1661, %v2783
        %2816 = vst.msk [vmem:[%s409 + $0xb0] sm:$0xff] %vm1661, %v2786
        %2817 = vst.msk [vmem:[%s409 + $0xc0] sm:$0xff] %vm1661, %v2791
        %2818 = vst.msk [vmem:[%s409 + $0xd0] sm:$0xff] %vm1661, %v2794
        %2819 = vst.msk [vmem:[%s409 + $0xe0] sm:$0xff] %vm1661, %v2799
        %2820 = vst.msk [vmem:[%s409 + $0xf0] sm:$0xff] %vm1661, %v2802
        %v2821 = vlaneseq
        %v2822 = vshrl.u32 %v2821, 7
        %v2823 = vsub.s32 1, %v2822
        %v2824 = vrot.slane %v467, %v2823
        %2826 = vrot.lane.b32.xlu0 %v2824, 64
        %v2827 = vpop.permute.xlu0 %2826
        %v2829 = vadd.f32 %v778, %v2827
        %v2830 = vadd.f32 %v782, %v2827
        %v2831 = vadd.f32 %v788, %v2827
        %v2832 = vadd.f32 %v792, %v2827
        %v2833 = vadd.f32 %v798, %v2827
        %v2834 = vadd.f32 %v802, %v2827
        %v2835 = vadd.f32 %v808, %v2827
        %v2836 = vadd.f32 %v812, %v2827
        %v2837 = vadd.f32 %v818, %v2827
        %v2838 = vadd.f32 %v822, %v2827
        %v2839 = vadd.f32 %v828, %v2827
        %v2840 = vadd.f32 %v832, %v2827
        %v2841 = vadd.f32 %v838, %v2827
        %v2842 = vadd.f32 %v842, %v2827
        %v2843 = vadd.f32 %v848, %v2827
        %v2844 = vadd.f32 %v852, %v2827
        %v2845 = vpack.c.bf16 %v2830, %v2829
        %v2846 = vpack.c.bf16 %v2832, %v2831
        %v2847 = vpack.c.bf16 %v2834, %v2833
        %v2848 = vpack.c.bf16 %v2836, %v2835
        %v2849 = vpack.c.bf16 %v2838, %v2837
        %v2850 = vpack.c.bf16 %v2840, %v2839
        %v2851 = vpack.c.bf16 %v2842, %v2841
        %v2852 = vpack.c.bf16 %v2844, %v2843
        %v2853 = vlaneseq
        %v2854 = vshrl.u32 %v2853, 7
        %v2855 = vsub.s32 1, %v2854
        %v2856 = vrot.slane %v468, %v2855
        %2858 = vrot.lane.b32.xlu0 %v2856, 64
        %v2859 = vpop.permute.xlu0 %2858
        %v2861 = vadd.f32 %v778, %v2859
        %v2862 = vadd.f32 %v782, %v2859
        %v2863 = vadd.f32 %v788, %v2859
        %v2864 = vadd.f32 %v792, %v2859
        %v2865 = vadd.f32 %v798, %v2859
        %v2866 = vadd.f32 %v802, %v2859
        %v2867 = vadd.f32 %v808, %v2859
        %v2868 = vadd.f32 %v812, %v2859
        %v2869 = vadd.f32 %v818, %v2859
        %v2870 = vadd.f32 %v822, %v2859
        %v2871 = vadd.f32 %v828, %v2859
        %v2872 = vadd.f32 %v832, %v2859
        %v2873 = vadd.f32 %v838, %v2859
        %v2874 = vadd.f32 %v842, %v2859
        %v2875 = vadd.f32 %v848, %v2859
        %v2876 = vadd.f32 %v852, %v2859
        %v2877 = vpack.c.bf16 %v2862, %v2861
        %v2878 = vpack.c.bf16 %v2864, %v2863
        %v2879 = vpack.c.bf16 %v2866, %v2865
        %v2880 = vpack.c.bf16 %v2868, %v2867
        %v2881 = vpack.c.bf16 %v2870, %v2869
        %v2882 = vpack.c.bf16 %v2872, %v2871
        %v2883 = vpack.c.bf16 %v2874, %v2873
        %v2884 = vpack.c.bf16 %v2876, %v2875
        %2893 = vrot.lane.b32.xlu0 %v2877, 64
        %v2894 = vpop.permute.xlu0 %2893
        %2895 = vrot.lane.b32.xlu0 %v2878, 64
        %v2896 = vpop.permute.xlu0 %2895
        %2897 = vrot.lane.b32.xlu0 %v2879, 64
        %v2898 = vpop.permute.xlu0 %2897
        %2899 = vrot.lane.b32.xlu0 %v2880, 64
        %v2900 = vpop.permute.xlu0 %2899
        %2901 = vrot.lane.b32.xlu0 %v2881, 64
        %v2902 = vpop.permute.xlu0 %2901
        %2903 = vrot.lane.b32.xlu0 %v2882, 64
        %v2904 = vpop.permute.xlu0 %2903
        %2905 = vrot.lane.b32.xlu0 %v2883, 64
        %v2906 = vpop.permute.xlu0 %2905
        %2907 = vrot.lane.b32.xlu0 %v2884, 64
        %v2908 = vpop.permute.xlu0 %2907
        %v2910 = vsel %vm1661, %v2894, 0
        %v2913 = vsel %vm1661, %v2896, 0
        %v2916 = vsel %vm1661, %v2898, 0
        %v2919 = vsel %vm1661, %v2900, 0
        %v2922 = vsel %vm1661, %v2902, 0
        %v2925 = vsel %vm1661, %v2904, 0
        %v2928 = vsel %vm1661, %v2906, 0
        %v2931 = vsel %vm1661, %v2908, 0
        %2933 = vmatprep.subr.bf16.mxu0 0
        %2934 = vmatpush1.bf16.xpose.msra.mxu0 %v1687
        %2935 = vmatprep.subr.bf16.mxu0 0
        %2936 = vmatpush1.bf16.xpose.msra.mxu0 %v1690
        %2937 = vmatprep.subr.bf16.mxu0 0
        %2938 = vmatpush1.bf16.xpose.msra.mxu0 %v1693
        %2939 = vmatprep.subr.bf16.mxu0 0
        %2940 = vmatpush1.bf16.xpose.msra.mxu0 %v1696
        %2941 = vmatprep.subr.bf16.mxu0 0
        %2942 = vmatpush1.bf16.xpose.msra.mxu0 %v1699
        %2943 = vmatprep.subr.bf16.mxu0 0
        %2944 = vmatpush1.bf16.xpose.msra.mxu0 %v1702
        %2945 = vmatprep.subr.bf16.mxu0 0
        %2946 = vmatpush1.bf16.xpose.msra.mxu0 %v1705
        %2947 = vmatprep.subr.bf16.mxu0 0
        %2948 = vmatpush1.bf16.xpose.msra.mxu0 %v1708
        %2949 = vmatprep.subr.bf16.mxu0 0
        %2950 = vmatpush1.bf16.xpose.msra.mxu0 %v1711
        %2951 = vmatprep.subr.bf16.mxu0 0
        %2952 = vmatpush1.bf16.xpose.msra.mxu0 %v1714
        %2953 = vmatprep.subr.bf16.mxu0 0
        %2954 = vmatpush1.bf16.xpose.msra.mxu0 %v1717
        %2955 = vmatprep.subr.bf16.mxu0 0
        %2956 = vmatpush1.bf16.xpose.msra.mxu0 %v1720
        %2957 = vmatprep.subr.bf16.mxu0 0
        %2958 = vmatpush1.bf16.xpose.msra.mxu0 %v1723
        %2959 = vmatprep.subr.bf16.mxu0 0
        %2960 = vmatpush1.bf16.xpose.msra.mxu0 %v1726
        %2961 = vmatprep.subr.bf16.mxu0 0
        %2962 = vmatpush1.bf16.xpose.msra.mxu0 %v1729
        %2963 = vmatprep.subr.bf16.mxu0 0
        %2964 = vmatpush1.bf16.xpose.msra.mxu0 %v1732
        %2965 = vmatprep.mubr.bf16.mxu0 0
        %2966 = vmatmul.mubr.bf16.gmra.mrb[0].mxu0 %v2910
        %v2967 = vpop.f32.mrb[0].mxu0
        %v2968 = vadd.f32 0.0, %v2967
        %v2969 = vpop.f32.mrb[0].mxu0
        %v2970 = vadd.f32 0.0, %v2969
        %v2971 = vpop.f32.mrb[0].mxu0
        %v2972 = vadd.f32 0.0, %v2971
        %v2973 = vpop.f32.mrb[0].mxu0
        %v2974 = vadd.f32 0.0, %v2973
        %2975 = vmatprep.mubr.bf16.mxu0 0
        %2976 = vmatmul.mubr.bf16.gmra.mrb[0].mxu0 %v2913
        %v2977 = vpop.f32.mrb[0].mxu0
        %v2978 = vadd.f32 0.0, %v2977
        %v2979 = vpop.f32.mrb[0].mxu0
        %v2980 = vadd.f32 0.0, %v2979
        %v2981 = vpop.f32.mrb[0].mxu0
        %v2982 = vadd.f32 0.0, %v2981
        %v2983 = vpop.f32.mrb[0].mxu0
        %v2984 = vadd.f32 0.0, %v2983
        %2985 = vmatprep.mubr.bf16.mxu0 0
        %2986 = vmatmul.mubr.bf16.gmra.mrb[0].mxu0 %v2916
        %v2987 = vpop.f32.mrb[0].mxu0
        %v2988 = vadd.f32 0.0, %v2987
        %v2989 = vpop.f32.mrb[0].mxu0
        %v2990 = vadd.f32 0.0, %v2989
        %v2991 = vpop.f32.mrb[0].mxu0
        %v2992 = vadd.f32 0.0, %v2991
        %v2993 = vpop.f32.mrb[0].mxu0
        %v2994 = vadd.f32 0.0, %v2993
        %2995 = vmatprep.mubr.bf16.mxu0 0
        %2996 = vmatmul.mubr.bf16.gmra.mrb[0].mxu0 %v2919
        %v2997 = vpop.f32.mrb[0].mxu0
        %v2998 = vadd.f32 0.0, %v2997
        %v2999 = vpop.f32.mrb[0].mxu0
        %v3000 = vadd.f32 0.0, %v2999
        %v3001 = vpop.f32.mrb[0].mxu0
        %v3002 = vadd.f32 0.0, %v3001
        %v3003 = vpop.f32.mrb[0].mxu0
        %v3004 = vadd.f32 0.0, %v3003
        %3005 = vmatprep.mubr.bf16.mxu0 0
        %3006 = vmatmul.mubr.bf16.gmra.mrb[0].mxu0 %v2922
        %v3007 = vpop.f32.mrb[0].mxu0
        %v3008 = vadd.f32 0.0, %v3007
        %v3009 = vpop.f32.mrb[0].mxu0
        %v3010 = vadd.f32 0.0, %v3009
        %v3011 = vpop.f32.mrb[0].mxu0
        %v3012 = vadd.f32 0.0, %v3011
        %v3013 = vpop.f32.mrb[0].mxu0
        %v3014 = vadd.f32 0.0, %v3013
        %3015 = vmatprep.mubr.bf16.mxu0 0
        %3016 = vmatmul.mubr.bf16.gmra.mrb[0].mxu0 %v2925
        %v3017 = vpop.f32.mrb[0].mxu0
        %v3018 = vadd.f32 0.0, %v3017
        %v3019 = vpop.f32.mrb[0].mxu0
        %v3020 = vadd.f32 0.0, %v3019
        %v3021 = vpop.f32.mrb[0].mxu0
        %v3022 = vadd.f32 0.0, %v3021
        %v3023 = vpop.f32.mrb[0].mxu0
        %v3024 = vadd.f32 0.0, %v3023
        %3025 = vmatprep.mubr.bf16.mxu0 0
        %3026 = vmatmul.mubr.bf16.gmra.mrb[0].mxu0 %v2928
        %v3027 = vpop.f32.mrb[0].mxu0
        %v3028 = vadd.f32 0.0, %v3027
        %v3029 = vpop.f32.mrb[0].mxu0
        %v3030 = vadd.f32 0.0, %v3029
        %v3031 = vpop.f32.mrb[0].mxu0
        %v3032 = vadd.f32 0.0, %v3031
        %v3033 = vpop.f32.mrb[0].mxu0
        %v3034 = vadd.f32 0.0, %v3033
        %3035 = vmatprep.mubr.bf16.mxu0 0
        %3036 = vmatmul.mubr.bf16.gmra.mrb[0].mxu0 %v2931
        %v3037 = vpop.f32.mrb[0].mxu0
        %v3038 = vadd.f32 0.0, %v3037
        %v3039 = vpop.f32.mrb[0].mxu0
        %v3040 = vadd.f32 0.0, %v3039
        %v3041 = vpop.f32.mrb[0].mxu0
        %v3042 = vadd.f32 0.0, %v3041
        %v3043 = vpop.f32.mrb[0].mxu0
        %v3044 = vadd.f32 0.0, %v3043
        %3045 = vdwg.mxu0
        %3046 = vmatprep.subr.bf16.mxu0 0
        %3047 = vmatpush1.bf16.xpose.msra.mxu0 %v1735
        %3048 = vmatprep.subr.bf16.mxu0 0
        %3049 = vmatpush1.bf16.xpose.msra.mxu0 %v1738
        %3050 = vmatprep.subr.bf16.mxu0 0
        %3051 = vmatpush1.bf16.xpose.msra.mxu0 %v1741
        %3052 = vmatprep.subr.bf16.mxu0 0
        %3053 = vmatpush1.bf16.xpose.msra.mxu0 %v1744
        %3054 = vmatprep.subr.bf16.mxu0 0
        %3055 = vmatpush1.bf16.xpose.msra.mxu0 %v1747
        %3056 = vmatprep.subr.bf16.mxu0 0
        %3057 = vmatpush1.bf16.xpose.msra.mxu0 %v1750
        %3058 = vmatprep.subr.bf16.mxu0 0
        %3059 = vmatpush1.bf16.xpose.msra.mxu0 %v1753
        %3060 = vmatprep.subr.bf16.mxu0 0
        %3061 = vmatpush1.bf16.xpose.msra.mxu0 %v1756
        %3062 = vmatprep.subr.bf16.mxu0 0
        %3063 = vmatpush1.bf16.xpose.msra.mxu0 0
        %3064 = vmatprep.subr.bf16.mxu0 0
        %3065 = vmatpush1.bf16.xpose.msra.mxu0 0
        %3066 = vmatprep.subr.bf16.mxu0 0
        %3067 = vmatpush1.bf16.xpose.msra.mxu0 0
        %3068 = vmatprep.subr.bf16.mxu0 0
        %3069 = vmatpush1.bf16.xpose.msra.mxu0 0
        %3070 = vmatprep.subr.bf16.mxu0 0
        %3071 = vmatpush1.bf16.xpose.msra.mxu0 0
        %3072 = vmatprep.subr.bf16.mxu0 0
        %3073 = vmatpush1.bf16.xpose.msra.mxu0 0
        %3074 = vmatprep.subr.bf16.mxu0 0
        %3075 = vmatpush1.bf16.xpose.msra.mxu0 0
        %3076 = vmatprep.subr.bf16.mxu0 0
        %3077 = vmatpush1.bf16.xpose.msra.mxu0 0
        %3078 = vmatprep.mubr.bf16.mxu0 0
        %3079 = vmatmul.mubr.bf16.gmra.mrb[0].mxu0 %v2910
        %v3080 = vpop.f32.mrb[0].mxu0
        %v3081 = vadd.f32 0.0, %v3080
        %v3082 = vpop.f32.mrb[0].mxu0
        %v3083 = vpop.f32.mrb[0].mxu0
        %v3084 = vadd.f32 0.0, %v3083
        %v3085 = vpop.f32.mrb[0].mxu0
        %3086 = vmatprep.mubr.bf16.mxu0 0
        %3087 = vmatmul.mubr.bf16.gmra.mrb[0].mxu0 %v2913
        %v3088 = vpop.f32.mrb[0].mxu0
        %v3089 = vadd.f32 0.0, %v3088
        %v3090 = vpop.f32.mrb[0].mxu0
        %v3091 = vpop.f32.mrb[0].mxu0
        %v3092 = vadd.f32 0.0, %v3091
        %v3093 = vpop.f32.mrb[0].mxu0
        %3094 = vmatprep.mubr.bf16.mxu0 0
        %3095 = vmatmul.mubr.bf16.gmra.mrb[0].mxu0 %v2916
        %v3096 = vpop.f32.mrb[0].mxu0
        %v3097 = vadd.f32 0.0, %v3096
        %v3098 = vpop.f32.mrb[0].mxu0
        %v3099 = vpop.f32.mrb[0].mxu0
        %v3100 = vadd.f32 0.0, %v3099
        %v3101 = vpop.f32.mrb[0].mxu0
        %3102 = vmatprep.mubr.bf16.mxu0 0
        %3103 = vmatmul.mubr.bf16.gmra.mrb[0].mxu0 %v2919
        %v3104 = vpop.f32.mrb[0].mxu0
        %v3105 = vadd.f32 0.0, %v3104
        %v3106 = vpop.f32.mrb[0].mxu0
        %v3107 = vpop.f32.mrb[0].mxu0
        %v3108 = vadd.f32 0.0, %v3107
        %v3109 = vpop.f32.mrb[0].mxu0
        %3110 = vmatprep.mubr.bf16.mxu0 0
        %3111 = vmatmul.mubr.bf16.gmra.mrb[0].mxu0 %v2922
        %v3112 = vpop.f32.mrb[0].mxu0
        %v3113 = vadd.f32 0.0, %v3112
        %v3114 = vpop.f32.mrb[0].mxu0
        %v3115 = vpop.f32.mrb[0].mxu0
        %v3116 = vadd.f32 0.0, %v3115
        %v3117 = vpop.f32.mrb[0].mxu0
        %3118 = vmatprep.mubr.bf16.mxu0 0
        %3119 = vmatmul.mubr.bf16.gmra.mrb[0].mxu0 %v2925
        %v3120 = vpop.f32.mrb[0].mxu0
        %v3121 = vadd.f32 0.0, %v3120
        %v3122 = vpop.f32.mrb[0].mxu0
        %v3123 = vpop.f32.mrb[0].mxu0
        %v3124 = vadd.f32 0.0, %v3123
        %v3125 = vpop.f32.mrb[0].mxu0
        %3126 = vmatprep.mubr.bf16.mxu0 0
        %3127 = vmatmul.mubr.bf16.gmra.mrb[0].mxu0 %v2928
        %v3128 = vpop.f32.mrb[0].mxu0
        %v3129 = vadd.f32 0.0, %v3128
        %v3130 = vpop.f32.mrb[0].mxu0
        %v3131 = vpop.f32.mrb[0].mxu0
        %v3132 = vadd.f32 0.0, %v3131
        %v3133 = vpop.f32.mrb[0].mxu0
        %3134 = vmatprep.mubr.bf16.mxu0 0
        %3135 = vmatmul.mubr.bf16.gmra.mrb[0].mxu0 %v2931
        %v3136 = vpop.f32.mrb[0].mxu0
        %v3137 = vadd.f32 0.0, %v3136
        %v3138 = vpop.f32.mrb[0].mxu0
        %v3139 = vpop.f32.mrb[0].mxu0
        %v3140 = vadd.f32 0.0, %v3139
        %v3141 = vpop.f32.mrb[0].mxu0
        %3142 = vdwg.mxu0
        %3144 = vrot.lane.b32.xlu0 %v2968, 256
        %v3145 = vpop.permute.xlu0 %3144
        %3147 = vrot.lane.b32.xlu0 %v2970, 256
        %v3148 = vpop.permute.xlu0 %3147
        %3150 = vrot.lane.b32.xlu0 %v3081, 256
        %v3151 = vpop.permute.xlu0 %3150
        %v3152 = vsel %vm1981, %v3148, %v3151
        %v3153 = vsel %vm1981, %v3145, %v3148
        %s3155 = sor.u32 256, 8
        %3156 = vrot.lane.b32.xlu0 %v2972, %s3155
        %v3157 = vpop.permute.xlu0 %3156
        %s3159 = sor.u32 256, 8
        %3160 = vrot.lane.b32.xlu0 %v2974, %s3159
        %v3161 = vpop.permute.xlu0 %3160
        %s3163 = sor.u32 256, 8
        %3164 = vrot.lane.b32.xlu0 %v3084, %s3163
        %v3165 = vpop.permute.xlu0 %3164
        %v3166 = vsel %vm1997, %v3161, %v3165
        %v3167 = vsel %vm1997, %v3157, %v3161
        %s3169 = sor.u32 256, 16
        %3170 = vrot.lane.b32.xlu0 %v2978, %s3169
        %v3171 = vpop.permute.xlu0 %3170
        %s3173 = sor.u32 256, 16
        %3174 = vrot.lane.b32.xlu0 %v2980, %s3173
        %v3175 = vpop.permute.xlu0 %3174
        %s3177 = sor.u32 256, 16
        %3178 = vrot.lane.b32.xlu0 %v3089, %s3177
        %v3179 = vpop.permute.xlu0 %3178
        %v3180 = vsel %vm2013, %v3175, %v3179
        %v3181 = vsel %vm2013, %v3171, %v3175
        %s3183 = sor.u32 256, 24
        %3184 = vrot.lane.b32.xlu0 %v2982, %s3183
        %v3185 = vpop.permute.xlu0 %3184
        %s3187 = sor.u32 256, 24
        %3188 = vrot.lane.b32.xlu0 %v2984, %s3187
        %v3189 = vpop.permute.xlu0 %3188
        %s3191 = sor.u32 256, 24
        %3192 = vrot.lane.b32.xlu0 %v3092, %s3191
        %v3193 = vpop.permute.xlu0 %3192
        %v3194 = vsel %vm2029, %v3189, %v3193
        %v3195 = vsel %vm2029, %v3185, %v3189
        %s3197 = sor.u32 256, 32
        %3198 = vrot.lane.b32.xlu0 %v2988, %s3197
        %v3199 = vpop.permute.xlu0 %3198
        %s3201 = sor.u32 256, 32
        %3202 = vrot.lane.b32.xlu0 %v2990, %s3201
        %v3203 = vpop.permute.xlu0 %3202
        %s3205 = sor.u32 256, 32
        %3206 = vrot.lane.b32.xlu0 %v3097, %s3205
        %v3207 = vpop.permute.xlu0 %3206
        %v3208 = vsel %vm2045, %v3203, %v3207
        %v3209 = vsel %vm2045, %v3199, %v3203
        %s3211 = sor.u32 256, 40
        %3212 = vrot.lane.b32.xlu0 %v2992, %s3211
        %v3213 = vpop.permute.xlu0 %3212
        %s3215 = sor.u32 256, 40
        %3216 = vrot.lane.b32.xlu0 %v2994, %s3215
        %v3217 = vpop.permute.xlu0 %3216
        %s3219 = sor.u32 256, 40
        %3220 = vrot.lane.b32.xlu0 %v3100, %s3219
        %v3221 = vpop.permute.xlu0 %3220
        %v3222 = vsel %vm2061, %v3217, %v3221
        %v3223 = vsel %vm2061, %v3213, %v3217
        %s3225 = sor.u32 256, 48
        %3226 = vrot.lane.b32.xlu0 %v2998, %s3225
        %v3227 = vpop.permute.xlu0 %3226
        %s3229 = sor.u32 256, 48
        %3230 = vrot.lane.b32.xlu0 %v3000, %s3229
        %v3231 = vpop.permute.xlu0 %3230
        %s3233 = sor.u32 256, 48
        %3234 = vrot.lane.b32.xlu0 %v3105, %s3233
        %v3235 = vpop.permute.xlu0 %3234
        %v3236 = vsel %vm2077, %v3231, %v3235
        %v3237 = vsel %vm2077, %v3227, %v3231
        %s3239 = sor.u32 256, 56
        %3240 = vrot.lane.b32.xlu0 %v3002, %s3239
        %v3241 = vpop.permute.xlu0 %3240
        %s3243 = sor.u32 256, 56
        %3244 = vrot.lane.b32.xlu0 %v3004, %s3243
        %v3245 = vpop.permute.xlu0 %3244
        %s3247 = sor.u32 256, 56
        %3248 = vrot.lane.b32.xlu0 %v3108, %s3247
        %v3249 = vpop.permute.xlu0 %3248
        %v3250 = vsel %vm2093, %v3245, %v3249
        %v3251 = vsel %vm2093, %v3241, %v3245
        %s3253 = sor.u32 256, 64
        %3254 = vrot.lane.b32.xlu0 %v3008, %s3253
        %v3255 = vpop.permute.xlu0 %3254
        %s3257 = sor.u32 256, 64
        %3258 = vrot.lane.b32.xlu0 %v3010, %s3257
        %v3259 = vpop.permute.xlu0 %3258
        %s3261 = sor.u32 256, 64
        %3262 = vrot.lane.b32.xlu0 %v3113, %s3261
        %v3263 = vpop.permute.xlu0 %3262
        %v3264 = vsel %vm2109, %v3259, %v3263
        %v3265 = vsel %vm2109, %v3255, %v3259
        %s3267 = sor.u32 256, 72
        %3268 = vrot.lane.b32.xlu0 %v3012, %s3267
        %v3269 = vpop.permute.xlu0 %3268
        %s3271 = sor.u32 256, 72
        %3272 = vrot.lane.b32.xlu0 %v3014, %s3271
        %v3273 = vpop.permute.xlu0 %3272
        %s3275 = sor.u32 256, 72
        %3276 = vrot.lane.b32.xlu0 %v3116, %s3275
        %v3277 = vpop.permute.xlu0 %3276
        %v3278 = vsel %vm2125, %v3273, %v3277
        %v3279 = vsel %vm2125, %v3269, %v3273
        %s3281 = sor.u32 256, 80
        %3282 = vrot.lane.b32.xlu0 %v3018, %s3281
        %v3283 = vpop.permute.xlu0 %3282
        %s3285 = sor.u32 256, 80
        %3286 = vrot.lane.b32.xlu0 %v3020, %s3285
        %v3287 = vpop.permute.xlu0 %3286
        %s3289 = sor.u32 256, 80
        %3290 = vrot.lane.b32.xlu0 %v3121, %s3289
        %v3291 = vpop.permute.xlu0 %3290
        %v3292 = vsel %vm2141, %v3287, %v3291
        %v3293 = vsel %vm2141, %v3283, %v3287
        %s3295 = sor.u32 256, 88
        %3296 = vrot.lane.b32.xlu0 %v3022, %s3295
        %v3297 = vpop.permute.xlu0 %3296
        %s3299 = sor.u32 256, 88
        %3300 = vrot.lane.b32.xlu0 %v3024, %s3299
        %v3301 = vpop.permute.xlu0 %3300
        %s3303 = sor.u32 256, 88
        %3304 = vrot.lane.b32.xlu0 %v3124, %s3303
        %v3305 = vpop.permute.xlu0 %3304
        %v3306 = vsel %vm2157, %v3301, %v3305
        %v3307 = vsel %vm2157, %v3297, %v3301
        %s3309 = sor.u32 256, 96
        %3310 = vrot.lane.b32.xlu0 %v3028, %s3309
        %v3311 = vpop.permute.xlu0 %3310
        %s3313 = sor.u32 256, 96
        %3314 = vrot.lane.b32.xlu0 %v3030, %s3313
        %v3315 = vpop.permute.xlu0 %3314
        %s3317 = sor.u32 256, 96
        %3318 = vrot.lane.b32.xlu0 %v3129, %s3317
        %v3319 = vpop.permute.xlu0 %3318
        %v3320 = vsel %vm2173, %v3315, %v3319
        %v3321 = vsel %vm2173, %v3311, %v3315
        %s3323 = sor.u32 256, 104
        %3324 = vrot.lane.b32.xlu0 %v3032, %s3323
        %v3325 = vpop.permute.xlu0 %3324
        %s3327 = sor.u32 256, 104
        %3328 = vrot.lane.b32.xlu0 %v3034, %s3327
        %v3329 = vpop.permute.xlu0 %3328
        %s3331 = sor.u32 256, 104
        %3332 = vrot.lane.b32.xlu0 %v3132, %s3331
        %v3333 = vpop.permute.xlu0 %3332
        %v3334 = vsel %vm2189, %v3329, %v3333
        %v3335 = vsel %vm2189, %v3325, %v3329
        %s3337 = sor.u32 256, 112
        %3338 = vrot.lane.b32.xlu0 %v3038, %s3337
        %v3339 = vpop.permute.xlu0 %3338
        %s3341 = sor.u32 256, 112
        %3342 = vrot.lane.b32.xlu0 %v3040, %s3341
        %v3343 = vpop.permute.xlu0 %3342
        %s3345 = sor.u32 256, 112
        %3346 = vrot.lane.b32.xlu0 %v3137, %s3345
        %v3347 = vpop.permute.xlu0 %3346
        %v3348 = vsel %vm2205, %v3343, %v3347
        %v3349 = vsel %vm2205, %v3339, %v3343
        %s3351 = sor.u32 256, 120
        %3352 = vrot.lane.b32.xlu0 %v3042, %s3351
        %v3353 = vpop.permute.xlu0 %3352
        %s3355 = sor.u32 256, 120
        %3356 = vrot.lane.b32.xlu0 %v3044, %s3355
        %v3357 = vpop.permute.xlu0 %3356
        %s3359 = sor.u32 256, 120
        %3360 = vrot.lane.b32.xlu0 %v3140, %s3359
        %v3361 = vpop.permute.xlu0 %3360
        %v3362 = vsel %vm2221, %v3357, %v3361
        %v3363 = vsel %vm2221, %v3353, %v3357
        %3372 = vrot.lane.b32.xlu0 %v2845, 64
        %v3373 = vpop.permute.xlu0 %3372
        %3374 = vrot.lane.b32.xlu0 %v2846, 64
        %v3375 = vpop.permute.xlu0 %3374
        %3376 = vrot.lane.b32.xlu0 %v2847, 64
        %v3377 = vpop.permute.xlu0 %3376
        %3378 = vrot.lane.b32.xlu0 %v2848, 64
        %v3379 = vpop.permute.xlu0 %3378
        %3380 = vrot.lane.b32.xlu0 %v2849, 64
        %v3381 = vpop.permute.xlu0 %3380
        %3382 = vrot.lane.b32.xlu0 %v2850, 64
        %v3383 = vpop.permute.xlu0 %3382
        %3384 = vrot.lane.b32.xlu0 %v2851, 64
        %v3385 = vpop.permute.xlu0 %3384
        %3386 = vrot.lane.b32.xlu0 %v2852, 64
        %v3387 = vpop.permute.xlu0 %3386
        %3388 = vrot.lane.b32.xlu0 %v984, 64
        %v3389 = vpop.permute.xlu0 %3388
        %3390 = vrot.lane.b32.xlu0 %v986, 64
        %v3391 = vpop.permute.xlu0 %3390
        %3392 = vrot.lane.b32.xlu0 %v988, 64
        %v3393 = vpop.permute.xlu0 %3392
        %3394 = vrot.lane.b32.xlu0 %v990, 64
        %v3395 = vpop.permute.xlu0 %3394
        %3396 = vrot.lane.b32.xlu0 %v992, 64
        %v3397 = vpop.permute.xlu0 %3396
        %3398 = vrot.lane.b32.xlu0 %v994, 64
        %v3399 = vpop.permute.xlu0 %3398
        %3400 = vrot.lane.b32.xlu0 %v996, 64
        %v3401 = vpop.permute.xlu0 %3400
        %3402 = vrot.lane.b32.xlu0 %v998, 64
        %v3403 = vpop.permute.xlu0 %3402
        %3404 = vrot.lane.b32.xlu0 %v1000, 64
        %v3405 = vpop.permute.xlu0 %3404
        %3406 = vrot.lane.b32.xlu0 %v1002, 64
        %v3407 = vpop.permute.xlu0 %3406
        %3408 = vrot.lane.b32.xlu0 %v1004, 64
        %v3409 = vpop.permute.xlu0 %3408
        %3410 = vrot.lane.b32.xlu0 %v1006, 64
        %v3411 = vpop.permute.xlu0 %3410
        %3412 = vrot.lane.b32.xlu0 %v1008, 64
        %v3413 = vpop.permute.xlu0 %3412
        %3414 = vrot.lane.b32.xlu0 %v1010, 64
        %v3415 = vpop.permute.xlu0 %3414
        %3416 = vrot.lane.b32.xlu0 %v1012, 64
        %v3417 = vpop.permute.xlu0 %3416
        %3418 = vrot.lane.b32.xlu0 %v1014, 64
        %v3419 = vpop.permute.xlu0 %3418
        %v3421 = vsel %vm1661, %v3373, 0
        %v3424 = vsel %vm1661, %v3375, 0
        %v3427 = vsel %vm1661, %v3377, 0
        %v3430 = vsel %vm1661, %v3379, 0
        %v3433 = vsel %vm1661, %v3381, 0
        %v3436 = vsel %vm1661, %v3383, 0
        %v3439 = vsel %vm1661, %v3385, 0
        %v3442 = vsel %vm1661, %v3387, 0
        %v3445 = vsel %vm1661, %v3389, 0
        %v3448 = vsel %vm1661, %v3391, 0
        %v3451 = vsel %vm1661, %v3393, 0
        %v3454 = vsel %vm1661, %v3395, 0
        %v3457 = vsel %vm1661, %v3397, 0
        %v3460 = vsel %vm1661, %v3399, 0
        %v3463 = vsel %vm1661, %v3401, 0
        %v3466 = vsel %vm1661, %v3403, 0
        %v3469 = vsel %vm1661, %v3405, 0
        %v3472 = vsel %vm1661, %v3407, 0
        %v3475 = vsel %vm1661, %v3409, 0
        %v3478 = vsel %vm1661, %v3411, 0
        %v3481 = vsel %vm1661, %v3413, 0
        %v3484 = vsel %vm1661, %v3415, 0
        %v3487 = vsel %vm1661, %v3417, 0
        %v3490 = vsel %vm1661, %v3419, 0
        %3492 = vmatprep.subr.bf16.mxu0 0
        %3493 = vmatpush1.bf16.xpose.msra.mxu0 %v3445
        %3494 = vmatprep.subr.bf16.mxu0 0
        %3495 = vmatpush1.bf16.xpose.msra.mxu0 %v3448
        %3496 = vmatprep.subr.bf16.mxu0 0
        %3497 = vmatpush1.bf16.xpose.msra.mxu0 %v3451
        %3498 = vmatprep.subr.bf16.mxu0 0
        %3499 = vmatpush1.bf16.xpose.msra.mxu0 %v3454
        %3500 = vmatprep.subr.bf16.mxu0 0
        %3501 = vmatpush1.bf16.xpose.msra.mxu0 %v3457
        %3502 = vmatprep.subr.bf16.mxu0 0
        %3503 = vmatpush1.bf16.xpose.msra.mxu0 %v3460
        %3504 = vmatprep.subr.bf16.mxu0 0
        %3505 = vmatpush1.bf16.xpose.msra.mxu0 %v3463
        %3506 = vmatprep.subr.bf16.mxu0 0
        %3507 = vmatpush1.bf16.xpose.msra.mxu0 %v3466
        %3508 = vmatprep.subr.bf16.mxu0 0
        %3509 = vmatpush1.bf16.xpose.msra.mxu0 %v3469
        %3510 = vmatprep.subr.bf16.mxu0 0
        %3511 = vmatpush1.bf16.xpose.msra.mxu0 %v3472
        %3512 = vmatprep.subr.bf16.mxu0 0
        %3513 = vmatpush1.bf16.xpose.msra.mxu0 %v3475
        %3514 = vmatprep.subr.bf16.mxu0 0
        %3515 = vmatpush1.bf16.xpose.msra.mxu0 %v3478
        %3516 = vmatprep.subr.bf16.mxu0 0
        %3517 = vmatpush1.bf16.xpose.msra.mxu0 %v3481
        %3518 = vmatprep.subr.bf16.mxu0 0
        %3519 = vmatpush1.bf16.xpose.msra.mxu0 %v3484
        %3520 = vmatprep.subr.bf16.mxu0 0
        %3521 = vmatpush1.bf16.xpose.msra.mxu0 %v3487
        %3522 = vmatprep.subr.bf16.mxu0 0
        %3523 = vmatpush1.bf16.xpose.msra.mxu0 %v3490
        %3524 = vmatprep.mubr.bf16.mxu0 0
        %3525 = vmatmul.mubr.bf16.gmra.mrb[0].mxu0 %v3421
        %v3526 = vpop.f32.mrb[0].mxu0
        %v3527 = vadd.f32 %v3153, %v3526
        %v3528 = vpop.f32.mrb[0].mxu0
        %v3529 = vadd.f32 %v3152, %v3528
        %v3530 = vpop.f32.mrb[0].mxu0
        %v3531 = vadd.f32 %v3167, %v3530
        %v3532 = vpop.f32.mrb[0].mxu0
        %v3533 = vadd.f32 %v3166, %v3532
        %3534 = vmatprep.mubr.bf16.mxu0 0
        %3535 = vmatmul.mubr.bf16.gmra.mrb[0].mxu0 %v3424
        %v3536 = vpop.f32.mrb[0].mxu0
        %v3537 = vadd.f32 %v3181, %v3536
        %v3538 = vpop.f32.mrb[0].mxu0
        %v3539 = vadd.f32 %v3180, %v3538
        %v3540 = vpop.f32.mrb[0].mxu0
        %v3541 = vadd.f32 %v3195, %v3540
        %v3542 = vpop.f32.mrb[0].mxu0
        %v3543 = vadd.f32 %v3194, %v3542
        %3544 = vmatprep.mubr.bf16.mxu0 0
        %3545 = vmatmul.mubr.bf16.gmra.mrb[0].mxu0 %v3427
        %v3546 = vpop.f32.mrb[0].mxu0
        %v3547 = vadd.f32 %v3209, %v3546
        %v3548 = vpop.f32.mrb[0].mxu0
        %v3549 = vadd.f32 %v3208, %v3548
        %v3550 = vpop.f32.mrb[0].mxu0
        %v3551 = vadd.f32 %v3223, %v3550
        %v3552 = vpop.f32.mrb[0].mxu0
        %v3553 = vadd.f32 %v3222, %v3552
        %3554 = vmatprep.mubr.bf16.mxu0 0
        %3555 = vmatmul.mubr.bf16.gmra.mrb[0].mxu0 %v3430
        %v3556 = vpop.f32.mrb[0].mxu0
        %v3557 = vadd.f32 %v3237, %v3556
        %v3558 = vpop.f32.mrb[0].mxu0
        %v3559 = vadd.f32 %v3236, %v3558
        %v3560 = vpop.f32.mrb[0].mxu0
        %v3561 = vadd.f32 %v3251, %v3560
        %v3562 = vpop.f32.mrb[0].mxu0
        %v3563 = vadd.f32 %v3250, %v3562
        %3564 = vmatprep.mubr.bf16.mxu0 0
        %3565 = vmatmul.mubr.bf16.gmra.mrb[0].mxu0 %v3433
        %v3566 = vpop.f32.mrb[0].mxu0
        %v3567 = vadd.f32 %v3265, %v3566
        %v3568 = vpop.f32.mrb[0].mxu0
        %v3569 = vadd.f32 %v3264, %v3568
        %v3570 = vpop.f32.mrb[0].mxu0
        %v3571 = vadd.f32 %v3279, %v3570
        %v3572 = vpop.f32.mrb[0].mxu0
        %v3573 = vadd.f32 %v3278, %v3572
        %3574 = vmatprep.mubr.bf16.mxu0 0
        %3575 = vmatmul.mubr.bf16.gmra.mrb[0].mxu0 %v3436
        %v3576 = vpop.f32.mrb[0].mxu0
        %v3577 = vadd.f32 %v3293, %v3576
        %v3578 = vpop.f32.mrb[0].mxu0
        %v3579 = vadd.f32 %v3292, %v3578
        %v3580 = vpop.f32.mrb[0].mxu0
        %v3581 = vadd.f32 %v3307, %v3580
        %v3582 = vpop.f32.mrb[0].mxu0
        %v3583 = vadd.f32 %v3306, %v3582
        %3584 = vmatprep.mubr.bf16.mxu0 0
        %3585 = vmatmul.mubr.bf16.gmra.mrb[0].mxu0 %v3439
        %v3586 = vpop.f32.mrb[0].mxu0
        %v3587 = vadd.f32 %v3321, %v3586
        %v3588 = vpop.f32.mrb[0].mxu0
        %v3589 = vadd.f32 %v3320, %v3588
        %v3590 = vpop.f32.mrb[0].mxu0
        %v3591 = vadd.f32 %v3335, %v3590
        %v3592 = vpop.f32.mrb[0].mxu0
        %v3593 = vadd.f32 %v3334, %v3592
        %3594 = vmatprep.mubr.bf16.mxu0 0
        %3595 = vmatmul.mubr.bf16.gmra.mrb[0].mxu0 %v3442
        %v3596 = vpop.f32.mrb[0].mxu0
        %v3597 = vadd.f32 %v3349, %v3596
        %v3598 = vpop.f32.mrb[0].mxu0
        %v3599 = vadd.f32 %v3348, %v3598
        %v3600 = vpop.f32.mrb[0].mxu0
        %v3601 = vadd.f32 %v3363, %v3600
        %v3602 = vpop.f32.mrb[0].mxu0
        %v3603 = vadd.f32 %v3362, %v3602
        %3604 = vdwg.mxu0
        %v3605 = vsel %vm2418, -1e+30, %v3527
        %v3606 = vsel %vm2419, -1e+30, %v3529
        %v3607 = vsel %vm2418, -1e+30, %v3531
        %v3608 = vsel %vm2419, -1e+30, %v3533
        %v3609 = vsel %vm2418, -1e+30, %v3537
        %v3610 = vsel %vm2419, -1e+30, %v3539
        %v3611 = vsel %vm2418, -1e+30, %v3541
        %v3612 = vsel %vm2419, -1e+30, %v3543
        %v3613 = vsel %vm2418, -1e+30, %v3547
        %v3614 = vsel %vm2419, -1e+30, %v3549
        %v3615 = vsel %vm2418, -1e+30, %v3551
        %v3616 = vsel %vm2419, -1e+30, %v3553
        %v3617 = vsel %vm2418, -1e+30, %v3557
        %v3618 = vsel %vm2419, -1e+30, %v3559
        %v3619 = vsel %vm2418, -1e+30, %v3561
        %v3620 = vsel %vm2419, -1e+30, %v3563
        %v3621 = vsel %vm2418, -1e+30, %v3567
        %v3622 = vsel %vm2419, -1e+30, %v3569
        %v3623 = vsel %vm2418, -1e+30, %v3571
        %v3624 = vsel %vm2419, -1e+30, %v3573
        %v3625 = vsel %vm2418, -1e+30, %v3577
        %v3626 = vsel %vm2419, -1e+30, %v3579
        %v3627 = vsel %vm2418, -1e+30, %v3581
        %v3628 = vsel %vm2419, -1e+30, %v3583
        %v3629 = vsel %vm2418, -1e+30, %v3587
        %v3630 = vsel %vm2419, -1e+30, %v3589
        %v3631 = vsel %vm2418, -1e+30, %v3591
        %v3632 = vsel %vm2419, -1e+30, %v3593
        %v3633 = vsel %vm2418, -1e+30, %v3597
        %v3634 = vsel %vm2419, -1e+30, %v3599
        %v3635 = vsel %vm2418, -1e+30, %v3601
        %v3636 = vsel %vm2419, -1e+30, %v3603
        %v3637 = vmax.f32 %v3605, %v3606
        %3638 = vmax.xlane.f32.xlu0 %v3637
        %v3639 = vpop.xlane.xlu0 %3638
        %v3640 = vmax.f32 %v3607, %v3608
        %3641 = vmax.xlane.f32.xlu0 %v3640
        %v3642 = vpop.xlane.xlu0 %3641
        %v3643 = vmax.f32 %v3609, %v3610
        %3644 = vmax.xlane.f32.xlu0 %v3643
        %v3645 = vpop.xlane.xlu0 %3644
        %v3646 = vmax.f32 %v3611, %v3612
        %3647 = vmax.xlane.f32.xlu0 %v3646
        %v3648 = vpop.xlane.xlu0 %3647
        %v3649 = vmax.f32 %v3613, %v3614
        %3650 = vmax.xlane.f32.xlu0 %v3649
        %v3651 = vpop.xlane.xlu0 %3650
        %v3652 = vmax.f32 %v3615, %v3616
        %3653 = vmax.xlane.f32.xlu0 %v3652
        %v3654 = vpop.xlane.xlu0 %3653
        %v3655 = vmax.f32 %v3617, %v3618
        %3656 = vmax.xlane.f32.xlu0 %v3655
        %v3657 = vpop.xlane.xlu0 %3656
        %v3658 = vmax.f32 %v3619, %v3620
        %3659 = vmax.xlane.f32.xlu0 %v3658
        %v3660 = vpop.xlane.xlu0 %3659
        %v3661 = vmax.f32 %v3621, %v3622
        %3662 = vmax.xlane.f32.xlu0 %v3661
        %v3663 = vpop.xlane.xlu0 %3662
        %v3664 = vmax.f32 %v3623, %v3624
        %3665 = vmax.xlane.f32.xlu0 %v3664
        %v3666 = vpop.xlane.xlu0 %3665
        %v3667 = vmax.f32 %v3625, %v3626
        %3668 = vmax.xlane.f32.xlu0 %v3667
        %v3669 = vpop.xlane.xlu0 %3668
        %v3670 = vmax.f32 %v3627, %v3628
        %3671 = vmax.xlane.f32.xlu0 %v3670
        %v3672 = vpop.xlane.xlu0 %3671
        %v3673 = vmax.f32 %v3629, %v3630
        %3674 = vmax.xlane.f32.xlu0 %v3673
        %v3675 = vpop.xlane.xlu0 %3674
        %v3676 = vmax.f32 %v3631, %v3632
        %3677 = vmax.xlane.f32.xlu0 %v3676
        %v3678 = vpop.xlane.xlu0 %3677
        %v3679 = vmax.f32 %v3633, %v3634
        %3680 = vmax.xlane.f32.xlu0 %v3679
        %v3681 = vpop.xlane.xlu0 %3680
        %v3682 = vmax.f32 %v3635, %v3636
        %3683 = vmax.xlane.f32.xlu0 %v3682
        %v3684 = vpop.xlane.xlu0 %3683
        %v3685 = vsub.f32 %v3605, %v3639
        %v3686 = vsub.f32 %v3606, %v3639
        %v3687 = vsub.f32 %v3607, %v3642
        %v3688 = vsub.f32 %v3608, %v3642
        %v3689 = vsub.f32 %v3609, %v3645
        %v3690 = vsub.f32 %v3610, %v3645
        %v3691 = vsub.f32 %v3611, %v3648
        %v3692 = vsub.f32 %v3612, %v3648
        %v3693 = vsub.f32 %v3613, %v3651
        %v3694 = vsub.f32 %v3614, %v3651
        %v3695 = vsub.f32 %v3615, %v3654
        %v3696 = vsub.f32 %v3616, %v3654
        %v3697 = vsub.f32 %v3617, %v3657
        %v3698 = vsub.f32 %v3618, %v3657
        %v3699 = vsub.f32 %v3619, %v3660
        %v3700 = vsub.f32 %v3620, %v3660
        %v3701 = vsub.f32 %v3621, %v3663
        %v3702 = vsub.f32 %v3622, %v3663
        %v3703 = vsub.f32 %v3623, %v3666
        %v3704 = vsub.f32 %v3624, %v3666
        %v3705 = vsub.f32 %v3625, %v3669
        %v3706 = vsub.f32 %v3626, %v3669
        %v3707 = vsub.f32 %v3627, %v3672
        %v3708 = vsub.f32 %v3628, %v3672
        %v3709 = vsub.f32 %v3629, %v3675
        %v3710 = vsub.f32 %v3630, %v3675
        %v3711 = vsub.f32 %v3631, %v3678
        %v3712 = vsub.f32 %v3632, %v3678
        %v3713 = vsub.f32 %v3633, %v3681
        %v3714 = vsub.f32 %v3634, %v3681
        %v3715 = vsub.f32 %v3635, %v3684
        %v3716 = vsub.f32 %v3636, %v3684
        %v3717 = vmul.f32 %v3685, 1.442695
        %v3718 = vpow.pop %v3717
        %v3719 = vmul.f32 %v3686, 1.442695
        %v3720 = vpow.pop %v3719
        %v3721 = vmul.f32 %v3687, 1.442695
        %v3722 = vpow.pop %v3721
        %v3723 = vmul.f32 %v3688, 1.442695
        %v3724 = vpow.pop %v3723
        %v3725 = vmul.f32 %v3689, 1.442695
        %v3726 = vpow.pop %v3725
        %v3727 = vmul.f32 %v3690, 1.442695
        %v3728 = vpow.pop %v3727
        %v3729 = vmul.f32 %v3691, 1.442695
        %v3730 = vpow.pop %v3729
        %v3731 = vmul.f32 %v3692, 1.442695
        %v3732 = vpow.pop %v3731
        %v3733 = vmul.f32 %v3693, 1.442695
        %v3734 = vpow.pop %v3733
        %v3735 = vmul.f32 %v3694, 1.442695
        %v3736 = vpow.pop %v3735
        %v3737 = vmul.f32 %v3695, 1.442695
        %v3738 = vpow.pop %v3737
        %v3739 = vmul.f32 %v3696, 1.442695
        %v3740 = vpow.pop %v3739
        %v3741 = vmul.f32 %v3697, 1.442695
        %v3742 = vpow.pop %v3741
        %v3743 = vmul.f32 %v3698, 1.442695
        %v3744 = vpow.pop %v3743
        %v3745 = vmul.f32 %v3699, 1.442695
        %v3746 = vpow.pop %v3745
        %v3747 = vmul.f32 %v3700, 1.442695
        %v3748 = vpow.pop %v3747
        %v3749 = vmul.f32 %v3701, 1.442695
        %v3750 = vpow.pop %v3749
        %v3751 = vmul.f32 %v3702, 1.442695
        %v3752 = vpow.pop %v3751
        %v3753 = vmul.f32 %v3703, 1.442695
        %v3754 = vpow.pop %v3753
        %v3755 = vmul.f32 %v3704, 1.442695
        %v3756 = vpow.pop %v3755
        %v3757 = vmul.f32 %v3705, 1.442695
        %v3758 = vpow.pop %v3757
        %v3759 = vmul.f32 %v3706, 1.442695
        %v3760 = vpow.pop %v3759
        %v3761 = vmul.f32 %v3707, 1.442695
        %v3762 = vpow.pop %v3761
        %v3763 = vmul.f32 %v3708, 1.442695
        %v3764 = vpow.pop %v3763
        %v3765 = vmul.f32 %v3709, 1.442695
        %v3766 = vpow.pop %v3765
        %v3767 = vmul.f32 %v3710, 1.442695
        %v3768 = vpow.pop %v3767
        %v3769 = vmul.f32 %v3711, 1.442695
        %v3770 = vpow.pop %v3769
        %v3771 = vmul.f32 %v3712, 1.442695
        %v3772 = vpow.pop %v3771
        %v3773 = vmul.f32 %v3713, 1.442695
        %v3774 = vpow.pop %v3773
        %v3775 = vmul.f32 %v3714, 1.442695
        %v3776 = vpow.pop %v3775
        %v3777 = vmul.f32 %v3715, 1.442695
        %v3778 = vpow.pop %v3777
        %v3779 = vmul.f32 %v3716, 1.442695
        %v3780 = vpow.pop %v3779
        %v3781 = vadd.f32 %v3718, %v3720
        %3782 = vadd.xlane.f32.xlu0 %v3781
        %v3783 = vpop.xlane.xlu0 %3782
        %v3784 = vadd.f32 %v3722, %v3724
        %3785 = vadd.xlane.f32.xlu0 %v3784
        %v3786 = vpop.xlane.xlu0 %3785
        %v3787 = vadd.f32 %v3726, %v3728
        %3788 = vadd.xlane.f32.xlu0 %v3787
        %v3789 = vpop.xlane.xlu0 %3788
        %v3790 = vadd.f32 %v3730, %v3732
        %3791 = vadd.xlane.f32.xlu0 %v3790
        %v3792 = vpop.xlane.xlu0 %3791
        %v3793 = vadd.f32 %v3734, %v3736
        %3794 = vadd.xlane.f32.xlu0 %v3793
        %v3795 = vpop.xlane.xlu0 %3794
        %v3796 = vadd.f32 %v3738, %v3740
        %3797 = vadd.xlane.f32.xlu0 %v3796
        %v3798 = vpop.xlane.xlu0 %3797
        %v3799 = vadd.f32 %v3742, %v3744
        %3800 = vadd.xlane.f32.xlu0 %v3799
        %v3801 = vpop.xlane.xlu0 %3800
        %v3802 = vadd.f32 %v3746, %v3748
        %3803 = vadd.xlane.f32.xlu0 %v3802
        %v3804 = vpop.xlane.xlu0 %3803
        %v3805 = vadd.f32 %v3750, %v3752
        %3806 = vadd.xlane.f32.xlu0 %v3805
        %v3807 = vpop.xlane.xlu0 %3806
        %v3808 = vadd.f32 %v3754, %v3756
        %3809 = vadd.xlane.f32.xlu0 %v3808
        %v3810 = vpop.xlane.xlu0 %3809
        %v3811 = vadd.f32 %v3758, %v3760
        %3812 = vadd.xlane.f32.xlu0 %v3811
        %v3813 = vpop.xlane.xlu0 %3812
        %v3814 = vadd.f32 %v3762, %v3764
        %3815 = vadd.xlane.f32.xlu0 %v3814
        %v3816 = vpop.xlane.xlu0 %3815
        %v3817 = vadd.f32 %v3766, %v3768
        %3818 = vadd.xlane.f32.xlu0 %v3817
        %v3819 = vpop.xlane.xlu0 %3818
        %v3820 = vadd.f32 %v3770, %v3772
        %3821 = vadd.xlane.f32.xlu0 %v3820
        %v3822 = vpop.xlane.xlu0 %3821
        %v3823 = vadd.f32 %v3774, %v3776
        %3824 = vadd.xlane.f32.xlu0 %v3823
        %v3825 = vpop.xlane.xlu0 %3824
        %v3826 = vadd.f32 %v3778, %v3780
        %3827 = vadd.xlane.f32.xlu0 %v3826
        %v3828 = vpop.xlane.xlu0 %3827
        %v3829 = vrcp.pop %v3783
        %v3830 = vrcp.pop %v3786
        %v3831 = vrcp.pop %v3789
        %v3832 = vrcp.pop %v3792
        %v3833 = vrcp.pop %v3795
        %v3834 = vrcp.pop %v3798
        %v3835 = vrcp.pop %v3801
        %v3836 = vrcp.pop %v3804
        %v3837 = vrcp.pop %v3807
        %v3838 = vrcp.pop %v3810
        %v3839 = vrcp.pop %v3813
        %v3840 = vrcp.pop %v3816
        %v3841 = vrcp.pop %v3819
        %v3842 = vrcp.pop %v3822
        %v3843 = vrcp.pop %v3825
        %v3844 = vrcp.pop %v3828
        %v3845 = vmul.f32 %v3718, %v3829
        %v3846 = vmul.f32 %v3720, %v3829
        %v3847 = vmul.f32 %v3722, %v3830
        %v3848 = vmul.f32 %v3724, %v3830
        %v3849 = vmul.f32 %v3726, %v3831
        %v3850 = vmul.f32 %v3728, %v3831
        %v3851 = vmul.f32 %v3730, %v3832
        %v3852 = vmul.f32 %v3732, %v3832
        %v3853 = vmul.f32 %v3734, %v3833
        %v3854 = vmul.f32 %v3736, %v3833
        %v3855 = vmul.f32 %v3738, %v3834
        %v3856 = vmul.f32 %v3740, %v3834
        %v3857 = vmul.f32 %v3742, %v3835
        %v3858 = vmul.f32 %v3744, %v3835
        %v3859 = vmul.f32 %v3746, %v3836
        %v3860 = vmul.f32 %v3748, %v3836
        %v3861 = vmul.f32 %v3750, %v3837
        %v3862 = vmul.f32 %v3752, %v3837
        %v3863 = vmul.f32 %v3754, %v3838
        %v3864 = vmul.f32 %v3756, %v3838
        %v3865 = vmul.f32 %v3758, %v3839
        %v3866 = vmul.f32 %v3760, %v3839
        %v3867 = vmul.f32 %v3762, %v3840
        %v3868 = vmul.f32 %v3764, %v3840
        %v3869 = vmul.f32 %v3766, %v3841
        %v3870 = vmul.f32 %v3768, %v3841
        %v3871 = vmul.f32 %v3770, %v3842
        %v3872 = vmul.f32 %v3772, %v3842
        %v3873 = vmul.f32 %v3774, %v3843
        %v3874 = vmul.f32 %v3776, %v3843
        %v3875 = vmul.f32 %v3778, %v3844
        %v3876 = vmul.f32 %v3780, %v3844
        %v3877 = vpack.c.bf16 %v3847, %v3845
        %v3878 = vpack.c.bf16 %v3848, %v3846
        %v3879 = vpack.c.bf16 %v3851, %v3849
        %v3880 = vpack.c.bf16 %v3852, %v3850
        %v3881 = vpack.c.bf16 %v3855, %v3853
        %v3882 = vpack.c.bf16 %v3856, %v3854
        %v3883 = vpack.c.bf16 %v3859, %v3857
        %v3884 = vpack.c.bf16 %v3860, %v3858
        %v3885 = vpack.c.bf16 %v3863, %v3861
        %v3886 = vpack.c.bf16 %v3864, %v3862
        %v3887 = vpack.c.bf16 %v3867, %v3865
        %v3888 = vpack.c.bf16 %v3868, %v3866
        %v3889 = vpack.c.bf16 %v3871, %v3869
        %v3890 = vpack.c.bf16 %v3872, %v3870
        %v3891 = vpack.c.bf16 %v3875, %v3873
        %v3892 = vpack.c.bf16 %v3876, %v3874
        %3909 = vrot.lane.b32.xlu0 %v1401, 64
        %v3910 = vpop.permute.xlu0 %3909
        %3911 = vrot.lane.b32.xlu0 %v1403, 64
        %v3912 = vpop.permute.xlu0 %3911
        %3913 = vrot.lane.b32.xlu0 %v1405, 64
        %v3914 = vpop.permute.xlu0 %3913
        %3915 = vrot.lane.b32.xlu0 %v1407, 64
        %v3916 = vpop.permute.xlu0 %3915
        %3917 = vrot.lane.b32.xlu0 %v1409, 64
        %v3918 = vpop.permute.xlu0 %3917
        %3919 = vrot.lane.b32.xlu0 %v1411, 64
        %v3920 = vpop.permute.xlu0 %3919
        %3921 = vrot.lane.b32.xlu0 %v1413, 64
        %v3922 = vpop.permute.xlu0 %3921
        %3923 = vrot.lane.b32.xlu0 %v1415, 64
        %v3924 = vpop.permute.xlu0 %3923
        %3925 = vrot.lane.b32.xlu0 %v1417, 64
        %v3926 = vpop.permute.xlu0 %3925
        %3927 = vrot.lane.b32.xlu0 %v1419, 64
        %v3928 = vpop.permute.xlu0 %3927
        %3929 = vrot.lane.b32.xlu0 %v1421, 64
        %v3930 = vpop.permute.xlu0 %3929
        %3931 = vrot.lane.b32.xlu0 %v1423, 64
        %v3932 = vpop.permute.xlu0 %3931
        %3933 = vrot.lane.b32.xlu0 %v1425, 64
        %v3934 = vpop.permute.xlu0 %3933
        %3935 = vrot.lane.b32.xlu0 %v1427, 64
        %v3936 = vpop.permute.xlu0 %3935
        %3937 = vrot.lane.b32.xlu0 %v1429, 64
        %v3938 = vpop.permute.xlu0 %3937
        %3939 = vrot.lane.b32.xlu0 %v1431, 64
        %v3940 = vpop.permute.xlu0 %3939
        %3957 = vmatprep.subr.bf16.mxu0 0
        %3958 = vmatpush1.bf16.msra.mxu0 %v3910
        %3959 = vmatprep.subr.bf16.mxu0 0
        %3960 = vmatpush1.bf16.msra.mxu0 %v3912
        %3961 = vmatprep.subr.bf16.mxu0 0
        %3962 = vmatpush1.bf16.msra.mxu0 %v3914
        %3963 = vmatprep.subr.bf16.mxu0 0
        %3964 = vmatpush1.bf16.msra.mxu0 %v3916
        %3965 = vmatprep.subr.bf16.mxu0 0
        %3966 = vmatpush1.bf16.msra.mxu0 %v3918
        %3967 = vmatprep.subr.bf16.mxu0 0
        %3968 = vmatpush1.bf16.msra.mxu0 %v3920
        %3969 = vmatprep.subr.bf16.mxu0 0
        %3970 = vmatpush1.bf16.msra.mxu0 %v3922
        %3971 = vmatprep.subr.bf16.mxu0 0
        %3972 = vmatpush1.bf16.msra.mxu0 %v3924
        %3973 = vmatprep.subr.bf16.mxu0 0
        %3974 = vmatpush1.bf16.msra.mxu0 %v3926
        %3975 = vmatprep.subr.bf16.mxu0 0
        %3976 = vmatpush1.bf16.msra.mxu0 %v3928
        %3977 = vmatprep.subr.bf16.mxu0 0
        %3978 = vmatpush1.bf16.msra.mxu0 %v3930
        %3979 = vmatprep.subr.bf16.mxu0 0
        %3980 = vmatpush1.bf16.msra.mxu0 %v3932
        %3981 = vmatprep.subr.bf16.mxu0 0
        %3982 = vmatpush1.bf16.msra.mxu0 %v3934
        %3983 = vmatprep.subr.bf16.mxu0 0
        %3984 = vmatpush1.bf16.msra.mxu0 %v3936
        %3985 = vmatprep.subr.bf16.mxu0 0
        %3986 = vmatpush1.bf16.msra.mxu0 %v3938
        %3987 = vmatprep.subr.bf16.mxu0 0
        %3988 = vmatpush1.bf16.msra.mxu0 %v3940
        %3989 = vmatprep.mubr.bf16.mxu0 %v3878
        %3990 = vmatmul.mubr.bf16.gmra.mrb[0].mxu0 %v3877
        %v3991 = vpop.f32.mrb[0].mxu0
        %v3992 = vadd.f32 0.0, %v3991
        %v3993 = vpop.f32.mrb[0].mxu0
        %v3994 = vpop.f32.mrb[0].mxu0
        %v3995 = vadd.f32 0.0, %v3994
        %v3996 = vpop.f32.mrb[0].mxu0
        %3997 = vmatprep.mubr.bf16.mxu0 %v3880
        %3998 = vmatmul.mubr.bf16.gmra.mrb[0].mxu0 %v3879
        %v3999 = vpop.f32.mrb[0].mxu0
        %v4000 = vadd.f32 0.0, %v3999
        %v4001 = vpop.f32.mrb[0].mxu0
        %v4002 = vpop.f32.mrb[0].mxu0
        %v4003 = vadd.f32 0.0, %v4002
        %v4004 = vpop.f32.mrb[0].mxu0
        %4005 = vmatprep.mubr.bf16.mxu0 %v3882
        %4006 = vmatmul.mubr.bf16.gmra.mrb[0].mxu0 %v3881
        %v4007 = vpop.f32.mrb[0].mxu0
        %v4008 = vadd.f32 0.0, %v4007
        %v4009 = vpop.f32.mrb[0].mxu0
        %v4010 = vpop.f32.mrb[0].mxu0
        %v4011 = vadd.f32 0.0, %v4010
        %v4012 = vpop.f32.mrb[0].mxu0
        %4013 = vmatprep.mubr.bf16.mxu0 %v3884
        %4014 = vmatmul.mubr.bf16.gmra.mrb[0].mxu0 %v3883
        %v4015 = vpop.f32.mrb[0].mxu0
        %v4016 = vadd.f32 0.0, %v4015
        %v4017 = vpop.f32.mrb[0].mxu0
        %v4018 = vpop.f32.mrb[0].mxu0
        %v4019 = vadd.f32 0.0, %v4018
        %v4020 = vpop.f32.mrb[0].mxu0
        %4021 = vmatprep.mubr.bf16.mxu0 %v3886
        %4022 = vmatmul.mubr.bf16.gmra.mrb[0].mxu0 %v3885
        %v4023 = vpop.f32.mrb[0].mxu0
        %v4024 = vadd.f32 0.0, %v4023
        %v4025 = vpop.f32.mrb[0].mxu0
        %v4026 = vpop.f32.mrb[0].mxu0
        %v4027 = vadd.f32 0.0, %v4026
        %v4028 = vpop.f32.mrb[0].mxu0
        %4029 = vmatprep.mubr.bf16.mxu0 %v3888
        %4030 = vmatmul.mubr.bf16.gmra.mrb[0].mxu0 %v3887
        %v4031 = vpop.f32.mrb[0].mxu0
        %v4032 = vadd.f32 0.0, %v4031
        %v4033 = vpop.f32.mrb[0].mxu0
        %v4034 = vpop.f32.mrb[0].mxu0
        %v4035 = vadd.f32 0.0, %v4034
        %v4036 = vpop.f32.mrb[0].mxu0
        %4037 = vmatprep.mubr.bf16.mxu0 %v3890
        %4038 = vmatmul.mubr.bf16.gmra.mrb[0].mxu0 %v3889
        %v4039 = vpop.f32.mrb[0].mxu0
        %v4040 = vadd.f32 0.0, %v4039
        %v4041 = vpop.f32.mrb[0].mxu0
        %v4042 = vpop.f32.mrb[0].mxu0
        %v4043 = vadd.f32 0.0, %v4042
        %v4044 = vpop.f32.mrb[0].mxu0
        %4045 = vmatprep.mubr.bf16.mxu0 %v3892
        %4046 = vmatmul.mubr.bf16.gmra.mrb[0].mxu0 %v3891
        %v4047 = vpop.f32.mrb[0].mxu0
        %v4048 = vadd.f32 0.0, %v4047
        %v4049 = vpop.f32.mrb[0].mxu0
        %v4050 = vpop.f32.mrb[0].mxu0
        %v4051 = vadd.f32 0.0, %v4050
        %v4052 = vpop.f32.mrb[0].mxu0
        %4053 = vdwg.mxu0
        %4070 = vrot.lane.b32.xlu0 %v3992, 64
        %v4071 = vpop.permute.xlu0 %4070
        %4072 = vrot.lane.b32.xlu0 %v3995, 64
        %v4073 = vpop.permute.xlu0 %4072
        %4074 = vrot.lane.b32.xlu0 %v4000, 64
        %v4075 = vpop.permute.xlu0 %4074
        %4076 = vrot.lane.b32.xlu0 %v4003, 64
        %v4077 = vpop.permute.xlu0 %4076
        %4078 = vrot.lane.b32.xlu0 %v4008, 64
        %v4079 = vpop.permute.xlu0 %4078
        %4080 = vrot.lane.b32.xlu0 %v4011, 64
        %v4081 = vpop.permute.xlu0 %4080
        %4082 = vrot.lane.b32.xlu0 %v4016, 64
        %v4083 = vpop.permute.xlu0 %4082
        %4084 = vrot.lane.b32.xlu0 %v4019, 64
        %v4085 = vpop.permute.xlu0 %4084
        %4086 = vrot.lane.b32.xlu0 %v4024, 64
        %v4087 = vpop.permute.xlu0 %4086
        %4088 = vrot.lane.b32.xlu0 %v4027, 64
        %v4089 = vpop.permute.xlu0 %4088
        %4090 = vrot.lane.b32.xlu0 %v4032, 64
        %v4091 = vpop.permute.xlu0 %4090
        %4092 = vrot.lane.b32.xlu0 %v4035, 64
        %v4093 = vpop.permute.xlu0 %4092
        %4094 = vrot.lane.b32.xlu0 %v4040, 64
        %v4095 = vpop.permute.xlu0 %4094
        %4096 = vrot.lane.b32.xlu0 %v4043, 64
        %v4097 = vpop.permute.xlu0 %4096
        %4098 = vrot.lane.b32.xlu0 %v4048, 64
        %v4099 = vpop.permute.xlu0 %4098
        %4100 = vrot.lane.b32.xlu0 %v4051, 64
        %v4101 = vpop.permute.xlu0 %4100
        %vm4118 = vcmask 1048064
        %4119 = vst.msk [vmem:[%s409] sm:$0xff] %vm4118, %v4071
        %4120 = vst.msk [vmem:[%s409 + $0x10] sm:$0xff] %vm4118, %v4073
        %4121 = vst.msk [vmem:[%s409 + $0x20] sm:$0xff] %vm4118, %v4075
        %4122 = vst.msk [vmem:[%s409 + $0x30] sm:$0xff] %vm4118, %v4077
        %4123 = vst.msk [vmem:[%s409 + $0x40] sm:$0xff] %vm4118, %v4079
        %4124 = vst.msk [vmem:[%s409 + $0x50] sm:$0xff] %vm4118, %v4081
        %4125 = vst.msk [vmem:[%s409 + $0x60] sm:$0xff] %vm4118, %v4083
        %4126 = vst.msk [vmem:[%s409 + $0x70] sm:$0xff] %vm4118, %v4085
        %4127 = vst.msk [vmem:[%s409 + $0x80] sm:$0xff] %vm4118, %v4087
        %4128 = vst.msk [vmem:[%s409 + $0x90] sm:$0xff] %vm4118, %v4089
        %4129 = vst.msk [vmem:[%s409 + $0xa0] sm:$0xff] %vm4118, %v4091
        %4130 = vst.msk [vmem:[%s409 + $0xb0] sm:$0xff] %vm4118, %v4093
        %4131 = vst.msk [vmem:[%s409 + $0xc0] sm:$0xff] %vm4118, %v4095
        %4132 = vst.msk [vmem:[%s409 + $0xd0] sm:$0xff] %vm4118, %v4097
        %4133 = vst.msk [vmem:[%s409 + $0xe0] sm:$0xff] %vm4118, %v4099
        %4134 = vst.msk [vmem:[%s409 + $0xf0] sm:$0xff] %vm4118, %v4101
        %v4135 = vlaneseq
        %v4136 = vshrl.u32 %v4135, 7
        %v4137 = vsub.s32 2, %v4136
        %v4138 = vrot.slane %v467, %v4137
        %v4139 = vadd.f32 %v780, %v4138
        %v4140 = vadd.f32 %v784, %v4138
        %v4141 = vadd.f32 %v790, %v4138
        %v4142 = vadd.f32 %v794, %v4138
        %v4143 = vadd.f32 %v800, %v4138
        %v4144 = vadd.f32 %v804, %v4138
        %v4145 = vadd.f32 %v810, %v4138
        %v4146 = vadd.f32 %v814, %v4138
        %v4147 = vadd.f32 %v820, %v4138
        %v4148 = vadd.f32 %v824, %v4138
        %v4149 = vadd.f32 %v830, %v4138
        %v4150 = vadd.f32 %v834, %v4138
        %v4151 = vadd.f32 %v840, %v4138
        %v4152 = vadd.f32 %v844, %v4138
        %v4153 = vadd.f32 %v850, %v4138
        %v4154 = vadd.f32 %v854, %v4138
        %v4155 = vpack.c.bf16 %v4140, %v4139
        %v4156 = vpack.c.bf16 %v4142, %v4141
        %v4157 = vpack.c.bf16 %v4144, %v4143
        %v4158 = vpack.c.bf16 %v4146, %v4145
        %v4159 = vpack.c.bf16 %v4148, %v4147
        %v4160 = vpack.c.bf16 %v4150, %v4149
        %v4161 = vpack.c.bf16 %v4152, %v4151
        %v4162 = vpack.c.bf16 %v4154, %v4153
        %v4163 = vlaneseq
        %v4164 = vshrl.u32 %v4163, 7
        %v4165 = vsub.s32 2, %v4164
        %v4166 = vrot.slane %v468, %v4165
        %v4167 = vadd.f32 %v780, %v4166
        %v4168 = vadd.f32 %v784, %v4166
        %v4169 = vadd.f32 %v790, %v4166
        %v4170 = vadd.f32 %v794, %v4166
        %v4171 = vadd.f32 %v800, %v4166
        %v4172 = vadd.f32 %v804, %v4166
        %v4173 = vadd.f32 %v810, %v4166
        %v4174 = vadd.f32 %v814, %v4166
        %v4175 = vadd.f32 %v820, %v4166
        %v4176 = vadd.f32 %v824, %v4166
        %v4177 = vadd.f32 %v830, %v4166
        %v4178 = vadd.f32 %v834, %v4166
        %v4179 = vadd.f32 %v840, %v4166
        %v4180 = vadd.f32 %v844, %v4166
        %v4181 = vadd.f32 %v850, %v4166
        %v4182 = vadd.f32 %v854, %v4166
        %v4183 = vpack.c.bf16 %v4168, %v4167
        %v4184 = vpack.c.bf16 %v4170, %v4169
        %v4185 = vpack.c.bf16 %v4172, %v4171
        %v4186 = vpack.c.bf16 %v4174, %v4173
        %v4187 = vpack.c.bf16 %v4176, %v4175
        %v4188 = vpack.c.bf16 %v4178, %v4177
        %v4189 = vpack.c.bf16 %v4180, %v4179
        %v4190 = vpack.c.bf16 %v4182, %v4181
        %v4192 = vsel %vm1661, %v4183, 0
        %v4195 = vsel %vm1661, %v4184, 0
        %v4198 = vsel %vm1661, %v4185, 0
        %v4201 = vsel %vm1661, %v4186, 0
        %v4204 = vsel %vm1661, %v4187, 0
        %v4207 = vsel %vm1661, %v4188, 0
        %v4210 = vsel %vm1661, %v4189, 0
        %v4213 = vsel %vm1661, %v4190, 0
        %4215 = vmatprep.subr.bf16.mxu0 0
        %4216 = vmatpush1.bf16.xpose.msra.mxu0 %v1687
        %4217 = vmatprep.subr.bf16.mxu0 0
        %4218 = vmatpush1.bf16.xpose.msra.mxu0 %v1690
        %4219 = vmatprep.subr.bf16.mxu0 0
        %4220 = vmatpush1.bf16.xpose.msra.mxu0 %v1693
        %4221 = vmatprep.subr.bf16.mxu0 0
        %4222 = vmatpush1.bf16.xpose.msra.mxu0 %v1696
        %4223 = vmatprep.subr.bf16.mxu0 0
        %4224 = vmatpush1.bf16.xpose.msra.mxu0 %v1699
        %4225 = vmatprep.subr.bf16.mxu0 0
        %4226 = vmatpush1.bf16.xpose.msra.mxu0 %v1702
        %4227 = vmatprep.subr.bf16.mxu0 0
        %4228 = vmatpush1.bf16.xpose.msra.mxu0 %v1705
        %4229 = vmatprep.subr.bf16.mxu0 0
        %4230 = vmatpush1.bf16.xpose.msra.mxu0 %v1708
        %4231 = vmatprep.subr.bf16.mxu0 0
        %4232 = vmatpush1.bf16.xpose.msra.mxu0 %v1711
        %4233 = vmatprep.subr.bf16.mxu0 0
        %4234 = vmatpush1.bf16.xpose.msra.mxu0 %v1714
        %4235 = vmatprep.subr.bf16.mxu0 0
        %4236 = vmatpush1.bf16.xpose.msra.mxu0 %v1717
        %4237 = vmatprep.subr.bf16.mxu0 0
        %4238 = vmatpush1.bf16.xpose.msra.mxu0 %v1720
        %4239 = vmatprep.subr.bf16.mxu0 0
        %4240 = vmatpush1.bf16.xpose.msra.mxu0 %v1723
        %4241 = vmatprep.subr.bf16.mxu0 0
        %4242 = vmatpush1.bf16.xpose.msra.mxu0 %v1726
        %4243 = vmatprep.subr.bf16.mxu0 0
        %4244 = vmatpush1.bf16.xpose.msra.mxu0 %v1729
        %4245 = vmatprep.subr.bf16.mxu0 0
        %4246 = vmatpush1.bf16.xpose.msra.mxu0 %v1732
        %4247 = vmatprep.mubr.bf16.mxu0 0
        %4248 = vmatmul.mubr.bf16.gmra.mrb[0].mxu0 %v4192
        %v4249 = vpop.f32.mrb[0].mxu0
        %v4250 = vadd.f32 0.0, %v4249
        %v4251 = vpop.f32.mrb[0].mxu0
        %v4252 = vadd.f32 0.0, %v4251
        %v4253 = vpop.f32.mrb[0].mxu0
        %v4254 = vadd.f32 0.0, %v4253
        %v4255 = vpop.f32.mrb[0].mxu0
        %v4256 = vadd.f32 0.0, %v4255
        %4257 = vmatprep.mubr.bf16.mxu0 0
        %4258 = vmatmul.mubr.bf16.gmra.mrb[0].mxu0 %v4195
        %v4259 = vpop.f32.mrb[0].mxu0
        %v4260 = vadd.f32 0.0, %v4259
        %v4261 = vpop.f32.mrb[0].mxu0
        %v4262 = vadd.f32 0.0, %v4261
        %v4263 = vpop.f32.mrb[0].mxu0
        %v4264 = vadd.f32 0.0, %v4263
        %v4265 = vpop.f32.mrb[0].mxu0
        %v4266 = vadd.f32 0.0, %v4265
        %4267 = vmatprep.mubr.bf16.mxu0 0
        %4268 = vmatmul.mubr.bf16.gmra.mrb[0].mxu0 %v4198
        %v4269 = vpop.f32.mrb[0].mxu0
        %v4270 = vadd.f32 0.0, %v4269
        %v4271 = vpop.f32.mrb[0].mxu0
        %v4272 = vadd.f32 0.0, %v4271
        %v4273 = vpop.f32.mrb[0].mxu0
        %v4274 = vadd.f32 0.0, %v4273
        %v4275 = vpop.f32.mrb[0].mxu0
        %v4276 = vadd.f32 0.0, %v4275
        %4277 = vmatprep.mubr.bf16.mxu0 0
        %4278 = vmatmul.mubr.bf16.gmra.mrb[0].mxu0 %v4201
        %v4279 = vpop.f32.mrb[0].mxu0
        %v4280 = vadd.f32 0.0, %v4279
        %v4281 = vpop.f32.mrb[0].mxu0
        %v4282 = vadd.f32 0.0, %v4281
        %v4283 = vpop.f32.mrb[0].mxu0
        %v4284 = vadd.f32 0.0, %v4283
        %v4285 = vpop.f32.mrb[0].mxu0
        %v4286 = vadd.f32 0.0, %v4285
        %4287 = vmatprep.mubr.bf16.mxu0 0
        %4288 = vmatmul.mubr.bf16.gmra.mrb[0].mxu0 %v4204
        %v4289 = vpop.f32.mrb[0].mxu0
        %v4290 = vadd.f32 0.0, %v4289
        %v4291 = vpop.f32.mrb[0].mxu0
        %v4292 = vadd.f32 0.0, %v4291
        %v4293 = vpop.f32.mrb[0].mxu0
        %v4294 = vadd.f32 0.0, %v4293
        %v4295 = vpop.f32.mrb[0].mxu0
        %v4296 = vadd.f32 0.0, %v4295
        %4297 = vmatprep.mubr.bf16.mxu0 0
        %4298 = vmatmul.mubr.bf16.gmra.mrb[0].mxu0 %v4207
        %v4299 = vpop.f32.mrb[0].mxu0
        %v4300 = vadd.f32 0.0, %v4299
        %v4301 = vpop.f32.mrb[0].mxu0
        %v4302 = vadd.f32 0.0, %v4301
        %v4303 = vpop.f32.mrb[0].mxu0
        %v4304 = vadd.f32 0.0, %v4303
        %v4305 = vpop.f32.mrb[0].mxu0
        %v4306 = vadd.f32 0.0, %v4305
        %4307 = vmatprep.mubr.bf16.mxu0 0
        %4308 = vmatmul.mubr.bf16.gmra.mrb[0].mxu0 %v4210
        %v4309 = vpop.f32.mrb[0].mxu0
        %v4310 = vadd.f32 0.0, %v4309
        %v4311 = vpop.f32.mrb[0].mxu0
        %v4312 = vadd.f32 0.0, %v4311
        %v4313 = vpop.f32.mrb[0].mxu0
        %v4314 = vadd.f32 0.0, %v4313
        %v4315 = vpop.f32.mrb[0].mxu0
        %v4316 = vadd.f32 0.0, %v4315
        %4317 = vmatprep.mubr.bf16.mxu0 0
        %4318 = vmatmul.mubr.bf16.gmra.mrb[0].mxu0 %v4213
        %v4319 = vpop.f32.mrb[0].mxu0
        %v4320 = vadd.f32 0.0, %v4319
        %v4321 = vpop.f32.mrb[0].mxu0
        %v4322 = vadd.f32 0.0, %v4321
        %v4323 = vpop.f32.mrb[0].mxu0
        %v4324 = vadd.f32 0.0, %v4323
        %v4325 = vpop.f32.mrb[0].mxu0
        %v4326 = vadd.f32 0.0, %v4325
        %4327 = vdwg.mxu0
        %4328 = vmatprep.subr.bf16.mxu0 0
        %4329 = vmatpush1.bf16.xpose.msra.mxu0 %v1735
        %4330 = vmatprep.subr.bf16.mxu0 0
        %4331 = vmatpush1.bf16.xpose.msra.mxu0 %v1738
        %4332 = vmatprep.subr.bf16.mxu0 0
        %4333 = vmatpush1.bf16.xpose.msra.mxu0 %v1741
        %4334 = vmatprep.subr.bf16.mxu0 0
        %4335 = vmatpush1.bf16.xpose.msra.mxu0 %v1744
        %4336 = vmatprep.subr.bf16.mxu0 0
        %4337 = vmatpush1.bf16.xpose.msra.mxu0 %v1747
        %4338 = vmatprep.subr.bf16.mxu0 0
        %4339 = vmatpush1.bf16.xpose.msra.mxu0 %v1750
        %4340 = vmatprep.subr.bf16.mxu0 0
        %4341 = vmatpush1.bf16.xpose.msra.mxu0 %v1753
        %4342 = vmatprep.subr.bf16.mxu0 0
        %4343 = vmatpush1.bf16.xpose.msra.mxu0 %v1756
        %4344 = vmatprep.subr.bf16.mxu0 0
        %4345 = vmatpush1.bf16.xpose.msra.mxu0 0
        %4346 = vmatprep.subr.bf16.mxu0 0
        %4347 = vmatpush1.bf16.xpose.msra.mxu0 0
        %4348 = vmatprep.subr.bf16.mxu0 0
        %4349 = vmatpush1.bf16.xpose.msra.mxu0 0
        %4350 = vmatprep.subr.bf16.mxu0 0
        %4351 = vmatpush1.bf16.xpose.msra.mxu0 0
        %4352 = vmatprep.subr.bf16.mxu0 0
        %4353 = vmatpush1.bf16.xpose.msra.mxu0 0
        %4354 = vmatprep.subr.bf16.mxu0 0
        %4355 = vmatpush1.bf16.xpose.msra.mxu0 0
        %4356 = vmatprep.subr.bf16.mxu0 0
        %4357 = vmatpush1.bf16.xpose.msra.mxu0 0
        %4358 = vmatprep.subr.bf16.mxu0 0
        %4359 = vmatpush1.bf16.xpose.msra.mxu0 0
        %4360 = vmatprep.mubr.bf16.mxu0 0
        %4361 = vmatmul.mubr.bf16.gmra.mrb[0].mxu0 %v4192
        %v4362 = vpop.f32.mrb[0].mxu0
        %v4363 = vadd.f32 0.0, %v4362
        %v4364 = vpop.f32.mrb[0].mxu0
        %v4365 = vpop.f32.mrb[0].mxu0
        %v4366 = vadd.f32 0.0, %v4365
        %v4367 = vpop.f32.mrb[0].mxu0
        %4368 = vmatprep.mubr.bf16.mxu0 0
        %4369 = vmatmul.mubr.bf16.gmra.mrb[0].mxu0 %v4195
        %v4370 = vpop.f32.mrb[0].mxu0
        %v4371 = vadd.f32 0.0, %v4370
        %v4372 = vpop.f32.mrb[0].mxu0
        %v4373 = vpop.f32.mrb[0].mxu0
        %v4374 = vadd.f32 0.0, %v4373
        %v4375 = vpop.f32.mrb[0].mxu0
        %4376 = vmatprep.mubr.bf16.mxu0 0
        %4377 = vmatmul.mubr.bf16.gmra.mrb[0].mxu0 %v4198
        %v4378 = vpop.f32.mrb[0].mxu0
        %v4379 = vadd.f32 0.0, %v4378
        %v4380 = vpop.f32.mrb[0].mxu0
        %v4381 = vpop.f32.mrb[0].mxu0
        %v4382 = vadd.f32 0.0, %v4381
        %v4383 = vpop.f32.mrb[0].mxu0
        %4384 = vmatprep.mubr.bf16.mxu0 0
        %4385 = vmatmul.mubr.bf16.gmra.mrb[0].mxu0 %v4201
        %v4386 = vpop.f32.mrb[0].mxu0
        %v4387 = vadd.f32 0.0, %v4386
        %v4388 = vpop.f32.mrb[0].mxu0
        %v4389 = vpop.f32.mrb[0].mxu0
        %v4390 = vadd.f32 0.0, %v4389
        %v4391 = vpop.f32.mrb[0].mxu0
        %4392 = vmatprep.mubr.bf16.mxu0 0
        %4393 = vmatmul.mubr.bf16.gmra.mrb[0].mxu0 %v4204
        %v4394 = vpop.f32.mrb[0].mxu0
        %v4395 = vadd.f32 0.0, %v4394
        %v4396 = vpop.f32.mrb[0].mxu0
        %v4397 = vpop.f32.mrb[0].mxu0
        %v4398 = vadd.f32 0.0, %v4397
        %v4399 = vpop.f32.mrb[0].mxu0
        %4400 = vmatprep.mubr.bf16.mxu0 0
        %4401 = vmatmul.mubr.bf16.gmra.mrb[0].mxu0 %v4207
        %v4402 = vpop.f32.mrb[0].mxu0
        %v4403 = vadd.f32 0.0, %v4402
        %v4404 = vpop.f32.mrb[0].mxu0
        %v4405 = vpop.f32.mrb[0].mxu0
        %v4406 = vadd.f32 0.0, %v4405
        %v4407 = vpop.f32.mrb[0].mxu0
        %4408 = vmatprep.mubr.bf16.mxu0 0
        %4409 = vmatmul.mubr.bf16.gmra.mrb[0].mxu0 %v4210
        %v4410 = vpop.f32.mrb[0].mxu0
        %v4411 = vadd.f32 0.0, %v4410
        %v4412 = vpop.f32.mrb[0].mxu0
        %v4413 = vpop.f32.mrb[0].mxu0
        %v4414 = vadd.f32 0.0, %v4413
        %v4415 = vpop.f32.mrb[0].mxu0
        %4416 = vmatprep.mubr.bf16.mxu0 0
        %4417 = vmatmul.mubr.bf16.gmra.mrb[0].mxu0 %v4213
        %v4418 = vpop.f32.mrb[0].mxu0
        %v4419 = vadd.f32 0.0, %v4418
        %v4420 = vpop.f32.mrb[0].mxu0
        %v4421 = vpop.f32.mrb[0].mxu0
        %v4422 = vadd.f32 0.0, %v4421
        %v4423 = vpop.f32.mrb[0].mxu0
        %4424 = vdwg.mxu0
        %4426 = vrot.lane.b32.xlu0 %v4250, 256
        %v4427 = vpop.permute.xlu0 %4426
        %4429 = vrot.lane.b32.xlu0 %v4252, 256
        %v4430 = vpop.permute.xlu0 %4429
        %4432 = vrot.lane.b32.xlu0 %v4363, 256
        %v4433 = vpop.permute.xlu0 %4432
        %v4434 = vsel %vm1981, %v4430, %v4433
        %v4435 = vsel %vm1981, %v4427, %v4430
        %s4437 = sor.u32 256, 8
        %4438 = vrot.lane.b32.xlu0 %v4254, %s4437
        %v4439 = vpop.permute.xlu0 %4438
        %s4441 = sor.u32 256, 8
        %4442 = vrot.lane.b32.xlu0 %v4256, %s4441
        %v4443 = vpop.permute.xlu0 %4442
        %s4445 = sor.u32 256, 8
        %4446 = vrot.lane.b32.xlu0 %v4366, %s4445
        %v4447 = vpop.permute.xlu0 %4446
        %v4448 = vsel %vm1997, %v4443, %v4447
        %v4449 = vsel %vm1997, %v4439, %v4443
        %s4451 = sor.u32 256, 16
        %4452 = vrot.lane.b32.xlu0 %v4260, %s4451
        %v4453 = vpop.permute.xlu0 %4452
        %s4455 = sor.u32 256, 16
        %4456 = vrot.lane.b32.xlu0 %v4262, %s4455
        %v4457 = vpop.permute.xlu0 %4456
        %s4459 = sor.u32 256, 16
        %4460 = vrot.lane.b32.xlu0 %v4371, %s4459
        %v4461 = vpop.permute.xlu0 %4460
        %v4462 = vsel %vm2013, %v4457, %v4461
        %v4463 = vsel %vm2013, %v4453, %v4457
        %s4465 = sor.u32 256, 24
        %4466 = vrot.lane.b32.xlu0 %v4264, %s4465
        %v4467 = vpop.permute.xlu0 %4466
        %s4469 = sor.u32 256, 24
        %4470 = vrot.lane.b32.xlu0 %v4266, %s4469
        %v4471 = vpop.permute.xlu0 %4470
        %s4473 = sor.u32 256, 24
        %4474 = vrot.lane.b32.xlu0 %v4374, %s4473
        %v4475 = vpop.permute.xlu0 %4474
        %v4476 = vsel %vm2029, %v4471, %v4475
        %v4477 = vsel %vm2029, %v4467, %v4471
        %s4479 = sor.u32 256, 32
        %4480 = vrot.lane.b32.xlu0 %v4270, %s4479
        %v4481 = vpop.permute.xlu0 %4480
        %s4483 = sor.u32 256, 32
        %4484 = vrot.lane.b32.xlu0 %v4272, %s4483
        %v4485 = vpop.permute.xlu0 %4484
        %s4487 = sor.u32 256, 32
        %4488 = vrot.lane.b32.xlu0 %v4379, %s4487
        %v4489 = vpop.permute.xlu0 %4488
        %v4490 = vsel %vm2045, %v4485, %v4489
        %v4491 = vsel %vm2045, %v4481, %v4485
        %s4493 = sor.u32 256, 40
        %4494 = vrot.lane.b32.xlu0 %v4274, %s4493
        %v4495 = vpop.permute.xlu0 %4494
        %s4497 = sor.u32 256, 40
        %4498 = vrot.lane.b32.xlu0 %v4276, %s4497
        %v4499 = vpop.permute.xlu0 %4498
        %s4501 = sor.u32 256, 40
        %4502 = vrot.lane.b32.xlu0 %v4382, %s4501
        %v4503 = vpop.permute.xlu0 %4502
        %v4504 = vsel %vm2061, %v4499, %v4503
        %v4505 = vsel %vm2061, %v4495, %v4499
        %s4507 = sor.u32 256, 48
        %4508 = vrot.lane.b32.xlu0 %v4280, %s4507
        %v4509 = vpop.permute.xlu0 %4508
        %s4511 = sor.u32 256, 48
        %4512 = vrot.lane.b32.xlu0 %v4282, %s4511
        %v4513 = vpop.permute.xlu0 %4512
        %s4515 = sor.u32 256, 48
        %4516 = vrot.lane.b32.xlu0 %v4387, %s4515
        %v4517 = vpop.permute.xlu0 %4516
        %v4518 = vsel %vm2077, %v4513, %v4517
        %v4519 = vsel %vm2077, %v4509, %v4513
        %s4521 = sor.u32 256, 56
        %4522 = vrot.lane.b32.xlu0 %v4284, %s4521
        %v4523 = vpop.permute.xlu0 %4522
        %s4525 = sor.u32 256, 56
        %4526 = vrot.lane.b32.xlu0 %v4286, %s4525
        %v4527 = vpop.permute.xlu0 %4526
        %s4529 = sor.u32 256, 56
        %4530 = vrot.lane.b32.xlu0 %v4390, %s4529
        %v4531 = vpop.permute.xlu0 %4530
        %v4532 = vsel %vm2093, %v4527, %v4531
        %v4533 = vsel %vm2093, %v4523, %v4527
        %s4535 = sor.u32 256, 64
        %4536 = vrot.lane.b32.xlu0 %v4290, %s4535
        %v4537 = vpop.permute.xlu0 %4536
        %s4539 = sor.u32 256, 64
        %4540 = vrot.lane.b32.xlu0 %v4292, %s4539
        %v4541 = vpop.permute.xlu0 %4540
        %s4543 = sor.u32 256, 64
        %4544 = vrot.lane.b32.xlu0 %v4395, %s4543
        %v4545 = vpop.permute.xlu0 %4544
        %v4546 = vsel %vm2109, %v4541, %v4545
        %v4547 = vsel %vm2109, %v4537, %v4541
        %s4549 = sor.u32 256, 72
        %4550 = vrot.lane.b32.xlu0 %v4294, %s4549
        %v4551 = vpop.permute.xlu0 %4550
        %s4553 = sor.u32 256, 72
        %4554 = vrot.lane.b32.xlu0 %v4296, %s4553
        %v4555 = vpop.permute.xlu0 %4554
        %s4557 = sor.u32 256, 72
        %4558 = vrot.lane.b32.xlu0 %v4398, %s4557
        %v4559 = vpop.permute.xlu0 %4558
        %v4560 = vsel %vm2125, %v4555, %v4559
        %v4561 = vsel %vm2125, %v4551, %v4555
        %s4563 = sor.u32 256, 80
        %4564 = vrot.lane.b32.xlu0 %v4300, %s4563
        %v4565 = vpop.permute.xlu0 %4564
        %s4567 = sor.u32 256, 80
        %4568 = vrot.lane.b32.xlu0 %v4302, %s4567
        %v4569 = vpop.permute.xlu0 %4568
        %s4571 = sor.u32 256, 80
        %4572 = vrot.lane.b32.xlu0 %v4403, %s4571
        %v4573 = vpop.permute.xlu0 %4572
        %v4574 = vsel %vm2141, %v4569, %v4573
        %v4575 = vsel %vm2141, %v4565, %v4569
        %s4577 = sor.u32 256, 88
        %4578 = vrot.lane.b32.xlu0 %v4304, %s4577
        %v4579 = vpop.permute.xlu0 %4578
        %s4581 = sor.u32 256, 88
        %4582 = vrot.lane.b32.xlu0 %v4306, %s4581
        %v4583 = vpop.permute.xlu0 %4582
        %s4585 = sor.u32 256, 88
        %4586 = vrot.lane.b32.xlu0 %v4406, %s4585
        %v4587 = vpop.permute.xlu0 %4586
        %v4588 = vsel %vm2157, %v4583, %v4587
        %v4589 = vsel %vm2157, %v4579, %v4583
        %s4591 = sor.u32 256, 96
        %4592 = vrot.lane.b32.xlu0 %v4310, %s4591
        %v4593 = vpop.permute.xlu0 %4592
        %s4595 = sor.u32 256, 96
        %4596 = vrot.lane.b32.xlu0 %v4312, %s4595
        %v4597 = vpop.permute.xlu0 %4596
        %s4599 = sor.u32 256, 96
        %4600 = vrot.lane.b32.xlu0 %v4411, %s4599
        %v4601 = vpop.permute.xlu0 %4600
        %v4602 = vsel %vm2173, %v4597, %v4601
        %v4603 = vsel %vm2173, %v4593, %v4597
        %s4605 = sor.u32 256, 104
        %4606 = vrot.lane.b32.xlu0 %v4314, %s4605
        %v4607 = vpop.permute.xlu0 %4606
        %s4609 = sor.u32 256, 104
        %4610 = vrot.lane.b32.xlu0 %v4316, %s4609
        %v4611 = vpop.permute.xlu0 %4610
        %s4613 = sor.u32 256, 104
        %4614 = vrot.lane.b32.xlu0 %v4414, %s4613
        %v4615 = vpop.permute.xlu0 %4614
        %v4616 = vsel %vm2189, %v4611, %v4615
        %v4617 = vsel %vm2189, %v4607, %v4611
        %s4619 = sor.u32 256, 112
        %4620 = vrot.lane.b32.xlu0 %v4320, %s4619
        %v4621 = vpop.permute.xlu0 %4620
        %s4623 = sor.u32 256, 112
        %4624 = vrot.lane.b32.xlu0 %v4322, %s4623
        %v4625 = vpop.permute.xlu0 %4624
        %s4627 = sor.u32 256, 112
        %4628 = vrot.lane.b32.xlu0 %v4419, %s4627
        %v4629 = vpop.permute.xlu0 %4628
        %v4630 = vsel %vm2205, %v4625, %v4629
        %v4631 = vsel %vm2205, %v4621, %v4625
        %s4633 = sor.u32 256, 120
        %4634 = vrot.lane.b32.xlu0 %v4324, %s4633
        %v4635 = vpop.permute.xlu0 %4634
        %s4637 = sor.u32 256, 120
        %4638 = vrot.lane.b32.xlu0 %v4326, %s4637
        %v4639 = vpop.permute.xlu0 %4638
        %s4641 = sor.u32 256, 120
        %4642 = vrot.lane.b32.xlu0 %v4422, %s4641
        %v4643 = vpop.permute.xlu0 %4642
        %v4644 = vsel %vm2221, %v4639, %v4643
        %v4645 = vsel %vm2221, %v4635, %v4639
        %v4647 = vsel %vm1661, %v4155, 0
        %v4650 = vsel %vm1661, %v4156, 0
        %v4653 = vsel %vm1661, %v4157, 0
        %v4656 = vsel %vm1661, %v4158, 0
        %v4659 = vsel %vm1661, %v4159, 0
        %v4662 = vsel %vm1661, %v4160, 0
        %v4665 = vsel %vm1661, %v4161, 0
        %v4668 = vsel %vm1661, %v4162, 0
        %v4671 = vsel %vm1661, %v985, 0
        %v4674 = vsel %vm1661, %v987, 0
        %v4677 = vsel %vm1661, %v989, 0
        %v4680 = vsel %vm1661, %v991, 0
        %v4683 = vsel %vm1661, %v993, 0
        %v4686 = vsel %vm1661, %v995, 0
        %v4689 = vsel %vm1661, %v997, 0
        %v4692 = vsel %vm1661, %v999, 0
        %v4695 = vsel %vm1661, %v1001, 0
        %v4698 = vsel %vm1661, %v1003, 0
        %v4701 = vsel %vm1661, %v1005, 0
        %v4704 = vsel %vm1661, %v1007, 0
        %v4707 = vsel %vm1661, %v1009, 0
        %v4710 = vsel %vm1661, %v1011, 0
        %v4713 = vsel %vm1661, %v1013, 0
        %v4716 = vsel %vm1661, %v1015, 0
        %4718 = vmatprep.subr.bf16.mxu0 0
        %4719 = vmatpush1.bf16.xpose.msra.mxu0 %v4671
        %4720 = vmatprep.subr.bf16.mxu0 0
        %4721 = vmatpush1.bf16.xpose.msra.mxu0 %v4674
        %4722 = vmatprep.subr.bf16.mxu0 0
        %4723 = vmatpush1.bf16.xpose.msra.mxu0 %v4677
        %4724 = vmatprep.subr.bf16.mxu0 0
        %4725 = vmatpush1.bf16.xpose.msra.mxu0 %v4680
        %4726 = vmatprep.subr.bf16.mxu0 0
        %4727 = vmatpush1.bf16.xpose.msra.mxu0 %v4683
        %4728 = vmatprep.subr.bf16.mxu0 0
        %4729 = vmatpush1.bf16.xpose.msra.mxu0 %v4686
        %4730 = vmatprep.subr.bf16.mxu0 0
        %4731 = vmatpush1.bf16.xpose.msra.mxu0 %v4689
        %4732 = vmatprep.subr.bf16.mxu0 0
        %4733 = vmatpush1.bf16.xpose.msra.mxu0 %v4692
        %4734 = vmatprep.subr.bf16.mxu0 0
        %4735 = vmatpush1.bf16.xpose.msra.mxu0 %v4695
        %4736 = vmatprep.subr.bf16.mxu0 0
        %4737 = vmatpush1.bf16.xpose.msra.mxu0 %v4698
        %4738 = vmatprep.subr.bf16.mxu0 0
        %4739 = vmatpush1.bf16.xpose.msra.mxu0 %v4701
        %4740 = vmatprep.subr.bf16.mxu0 0
        %4741 = vmatpush1.bf16.xpose.msra.mxu0 %v4704
        %4742 = vmatprep.subr.bf16.mxu0 0
        %4743 = vmatpush1.bf16.xpose.msra.mxu0 %v4707
        %4744 = vmatprep.subr.bf16.mxu0 0
        %4745 = vmatpush1.bf16.xpose.msra.mxu0 %v4710
        %4746 = vmatprep.subr.bf16.mxu0 0
        %4747 = vmatpush1.bf16.xpose.msra.mxu0 %v4713
        %4748 = vmatprep.subr.bf16.mxu0 0
        %4749 = vmatpush1.bf16.xpose.msra.mxu0 %v4716
        %4750 = vmatprep.mubr.bf16.mxu0 0
        %4751 = vmatmul.mubr.bf16.gmra.mrb[0].mxu0 %v4647
        %v4752 = vpop.f32.mrb[0].mxu0
        %v4753 = vadd.f32 %v4435, %v4752
        %v4754 = vpop.f32.mrb[0].mxu0
        %v4755 = vadd.f32 %v4434, %v4754
        %v4756 = vpop.f32.mrb[0].mxu0
        %v4757 = vadd.f32 %v4449, %v4756
        %v4758 = vpop.f32.mrb[0].mxu0
        %v4759 = vadd.f32 %v4448, %v4758
        %4760 = vmatprep.mubr.bf16.mxu0 0
        %4761 = vmatmul.mubr.bf16.gmra.mrb[0].mxu0 %v4650
        %v4762 = vpop.f32.mrb[0].mxu0
        %v4763 = vadd.f32 %v4463, %v4762
        %v4764 = vpop.f32.mrb[0].mxu0
        %v4765 = vadd.f32 %v4462, %v4764
        %v4766 = vpop.f32.mrb[0].mxu0
        %v4767 = vadd.f32 %v4477, %v4766
        %v4768 = vpop.f32.mrb[0].mxu0
        %v4769 = vadd.f32 %v4476, %v4768
        %4770 = vmatprep.mubr.bf16.mxu0 0
        %4771 = vmatmul.mubr.bf16.gmra.mrb[0].mxu0 %v4653
        %v4772 = vpop.f32.mrb[0].mxu0
        %v4773 = vadd.f32 %v4491, %v4772
        %v4774 = vpop.f32.mrb[0].mxu0
        %v4775 = vadd.f32 %v4490, %v4774
        %v4776 = vpop.f32.mrb[0].mxu0
        %v4777 = vadd.f32 %v4505, %v4776
        %v4778 = vpop.f32.mrb[0].mxu0
        %v4779 = vadd.f32 %v4504, %v4778
        %4780 = vmatprep.mubr.bf16.mxu0 0
        %4781 = vmatmul.mubr.bf16.gmra.mrb[0].mxu0 %v4656
        %v4782 = vpop.f32.mrb[0].mxu0
        %v4783 = vadd.f32 %v4519, %v4782
        %v4784 = vpop.f32.mrb[0].mxu0
        %v4785 = vadd.f32 %v4518, %v4784
        %v4786 = vpop.f32.mrb[0].mxu0
        %v4787 = vadd.f32 %v4533, %v4786
        %v4788 = vpop.f32.mrb[0].mxu0
        %v4789 = vadd.f32 %v4532, %v4788
        %4790 = vmatprep.mubr.bf16.mxu0 0
        %4791 = vmatmul.mubr.bf16.gmra.mrb[0].mxu0 %v4659
        %v4792 = vpop.f32.mrb[0].mxu0
        %v4793 = vadd.f32 %v4547, %v4792
        %v4794 = vpop.f32.mrb[0].mxu0
        %v4795 = vadd.f32 %v4546, %v4794
        %v4796 = vpop.f32.mrb[0].mxu0
        %v4797 = vadd.f32 %v4561, %v4796
        %v4798 = vpop.f32.mrb[0].mxu0
        %v4799 = vadd.f32 %v4560, %v4798
        %4800 = vmatprep.mubr.bf16.mxu0 0
        %4801 = vmatmul.mubr.bf16.gmra.mrb[0].mxu0 %v4662
        %v4802 = vpop.f32.mrb[0].mxu0
        %v4803 = vadd.f32 %v4575, %v4802
        %v4804 = vpop.f32.mrb[0].mxu0
        %v4805 = vadd.f32 %v4574, %v4804
        %v4806 = vpop.f32.mrb[0].mxu0
        %v4807 = vadd.f32 %v4589, %v4806
        %v4808 = vpop.f32.mrb[0].mxu0
        %v4809 = vadd.f32 %v4588, %v4808
        %4810 = vmatprep.mubr.bf16.mxu0 0
        %4811 = vmatmul.mubr.bf16.gmra.mrb[0].mxu0 %v4665
        %v4812 = vpop.f32.mrb[0].mxu0
        %v4813 = vadd.f32 %v4603, %v4812
        %v4814 = vpop.f32.mrb[0].mxu0
        %v4815 = vadd.f32 %v4602, %v4814
        %v4816 = vpop.f32.mrb[0].mxu0
        %v4817 = vadd.f32 %v4617, %v4816
        %v4818 = vpop.f32.mrb[0].mxu0
        %v4819 = vadd.f32 %v4616, %v4818
        %4820 = vmatprep.mubr.bf16.mxu0 0
        %4821 = vmatmul.mubr.bf16.gmra.mrb[0].mxu0 %v4668
        %v4822 = vpop.f32.mrb[0].mxu0
        %v4823 = vadd.f32 %v4631, %v4822
        %v4824 = vpop.f32.mrb[0].mxu0
        %v4825 = vadd.f32 %v4630, %v4824
        %v4826 = vpop.f32.mrb[0].mxu0
        %v4827 = vadd.f32 %v4645, %v4826
        %v4828 = vpop.f32.mrb[0].mxu0
        %v4829 = vadd.f32 %v4644, %v4828
        %4830 = vdwg.mxu0
        %v4831 = vsel %vm2418, -1e+30, %v4753
        %v4832 = vsel %vm2419, -1e+30, %v4755
        %v4833 = vsel %vm2418, -1e+30, %v4757
        %v4834 = vsel %vm2419, -1e+30, %v4759
        %v4835 = vsel %vm2418, -1e+30, %v4763
        %v4836 = vsel %vm2419, -1e+30, %v4765
        %v4837 = vsel %vm2418, -1e+30, %v4767
        %v4838 = vsel %vm2419, -1e+30, %v4769
        %v4839 = vsel %vm2418, -1e+30, %v4773
        %v4840 = vsel %vm2419, -1e+30, %v4775
        %v4841 = vsel %vm2418, -1e+30, %v4777
        %v4842 = vsel %vm2419, -1e+30, %v4779
        %v4843 = vsel %vm2418, -1e+30, %v4783
        %v4844 = vsel %vm2419, -1e+30, %v4785
        %v4845 = vsel %vm2418, -1e+30, %v4787
        %v4846 = vsel %vm2419, -1e+30, %v4789
        %v4847 = vsel %vm2418, -1e+30, %v4793
        %v4848 = vsel %vm2419, -1e+30, %v4795
        %v4849 = vsel %vm2418, -1e+30, %v4797
        %v4850 = vsel %vm2419, -1e+30, %v4799
        %v4851 = vsel %vm2418, -1e+30, %v4803
        %v4852 = vsel %vm2419, -1e+30, %v4805
        %v4853 = vsel %vm2418, -1e+30, %v4807
        %v4854 = vsel %vm2419, -1e+30, %v4809
        %v4855 = vsel %vm2418, -1e+30, %v4813
        %v4856 = vsel %vm2419, -1e+30, %v4815
        %v4857 = vsel %vm2418, -1e+30, %v4817
        %v4858 = vsel %vm2419, -1e+30, %v4819
        %v4859 = vsel %vm2418, -1e+30, %v4823
        %v4860 = vsel %vm2419, -1e+30, %v4825
        %v4861 = vsel %vm2418, -1e+30, %v4827
        %v4862 = vsel %vm2419, -1e+30, %v4829
        %v4863 = vmax.f32 %v4831, %v4832
        %4864 = vmax.xlane.f32.xlu0 %v4863
        %v4865 = vpop.xlane.xlu0 %4864
        %v4866 = vmax.f32 %v4833, %v4834
        %4867 = vmax.xlane.f32.xlu0 %v4866
        %v4868 = vpop.xlane.xlu0 %4867
        %v4869 = vmax.f32 %v4835, %v4836
        %4870 = vmax.xlane.f32.xlu0 %v4869
        %v4871 = vpop.xlane.xlu0 %4870
        %v4872 = vmax.f32 %v4837, %v4838
        %4873 = vmax.xlane.f32.xlu0 %v4872
        %v4874 = vpop.xlane.xlu0 %4873
        %v4875 = vmax.f32 %v4839, %v4840
        %4876 = vmax.xlane.f32.xlu0 %v4875
        %v4877 = vpop.xlane.xlu0 %4876
        %v4878 = vmax.f32 %v4841, %v4842
        %4879 = vmax.xlane.f32.xlu0 %v4878
        %v4880 = vpop.xlane.xlu0 %4879
        %v4881 = vmax.f32 %v4843, %v4844
        %4882 = vmax.xlane.f32.xlu0 %v4881
        %v4883 = vpop.xlane.xlu0 %4882
        %v4884 = vmax.f32 %v4845, %v4846
        %4885 = vmax.xlane.f32.xlu0 %v4884
        %v4886 = vpop.xlane.xlu0 %4885
        %v4887 = vmax.f32 %v4847, %v4848
        %4888 = vmax.xlane.f32.xlu0 %v4887
        %v4889 = vpop.xlane.xlu0 %4888
        %v4890 = vmax.f32 %v4849, %v4850
        %4891 = vmax.xlane.f32.xlu0 %v4890
        %v4892 = vpop.xlane.xlu0 %4891
        %v4893 = vmax.f32 %v4851, %v4852
        %4894 = vmax.xlane.f32.xlu0 %v4893
        %v4895 = vpop.xlane.xlu0 %4894
        %v4896 = vmax.f32 %v4853, %v4854
        %4897 = vmax.xlane.f32.xlu0 %v4896
        %v4898 = vpop.xlane.xlu0 %4897
        %v4899 = vmax.f32 %v4855, %v4856
        %4900 = vmax.xlane.f32.xlu0 %v4899
        %v4901 = vpop.xlane.xlu0 %4900
        %v4902 = vmax.f32 %v4857, %v4858
        %4903 = vmax.xlane.f32.xlu0 %v4902
        %v4904 = vpop.xlane.xlu0 %4903
        %v4905 = vmax.f32 %v4859, %v4860
        %4906 = vmax.xlane.f32.xlu0 %v4905
        %v4907 = vpop.xlane.xlu0 %4906
        %v4908 = vmax.f32 %v4861, %v4862
        %4909 = vmax.xlane.f32.xlu0 %v4908
        %v4910 = vpop.xlane.xlu0 %4909
        %v4911 = vsub.f32 %v4831, %v4865
        %v4912 = vsub.f32 %v4832, %v4865
        %v4913 = vsub.f32 %v4833, %v4868
        %v4914 = vsub.f32 %v4834, %v4868
        %v4915 = vsub.f32 %v4835, %v4871
        %v4916 = vsub.f32 %v4836, %v4871
        %v4917 = vsub.f32 %v4837, %v4874
        %v4918 = vsub.f32 %v4838, %v4874
        %v4919 = vsub.f32 %v4839, %v4877
        %v4920 = vsub.f32 %v4840, %v4877
        %v4921 = vsub.f32 %v4841, %v4880
        %v4922 = vsub.f32 %v4842, %v4880
        %v4923 = vsub.f32 %v4843, %v4883
        %v4924 = vsub.f32 %v4844, %v4883
        %v4925 = vsub.f32 %v4845, %v4886
        %v4926 = vsub.f32 %v4846, %v4886
        %v4927 = vsub.f32 %v4847, %v4889
        %v4928 = vsub.f32 %v4848, %v4889
        %v4929 = vsub.f32 %v4849, %v4892
        %v4930 = vsub.f32 %v4850, %v4892
        %v4931 = vsub.f32 %v4851, %v4895
        %v4932 = vsub.f32 %v4852, %v4895
        %v4933 = vsub.f32 %v4853, %v4898
        %v4934 = vsub.f32 %v4854, %v4898
        %v4935 = vsub.f32 %v4855, %v4901
        %v4936 = vsub.f32 %v4856, %v4901
        %v4937 = vsub.f32 %v4857, %v4904
        %v4938 = vsub.f32 %v4858, %v4904
        %v4939 = vsub.f32 %v4859, %v4907
        %v4940 = vsub.f32 %v4860, %v4907
        %v4941 = vsub.f32 %v4861, %v4910
        %v4942 = vsub.f32 %v4862, %v4910
        %v4943 = vmul.f32 %v4911, 1.442695
        %v4944 = vpow.pop %v4943
        %v4945 = vmul.f32 %v4912, 1.442695
        %v4946 = vpow.pop %v4945
        %v4947 = vmul.f32 %v4913, 1.442695
        %v4948 = vpow.pop %v4947
        %v4949 = vmul.f32 %v4914, 1.442695
        %v4950 = vpow.pop %v4949
        %v4951 = vmul.f32 %v4915, 1.442695
        %v4952 = vpow.pop %v4951
        %v4953 = vmul.f32 %v4916, 1.442695
        %v4954 = vpow.pop %v4953
        %v4955 = vmul.f32 %v4917, 1.442695
        %v4956 = vpow.pop %v4955
        %v4957 = vmul.f32 %v4918, 1.442695
        %v4958 = vpow.pop %v4957
        %v4959 = vmul.f32 %v4919, 1.442695
        %v4960 = vpow.pop %v4959
        %v4961 = vmul.f32 %v4920, 1.442695
        %v4962 = vpow.pop %v4961
        %v4963 = vmul.f32 %v4921, 1.442695
        %v4964 = vpow.pop %v4963
        %v4965 = vmul.f32 %v4922, 1.442695
        %v4966 = vpow.pop %v4965
        %v4967 = vmul.f32 %v4923, 1.442695
        %v4968 = vpow.pop %v4967
        %v4969 = vmul.f32 %v4924, 1.442695
        %v4970 = vpow.pop %v4969
        %v4971 = vmul.f32 %v4925, 1.442695
        %v4972 = vpow.pop %v4971
        %v4973 = vmul.f32 %v4926, 1.442695
        %v4974 = vpow.pop %v4973
        %v4975 = vmul.f32 %v4927, 1.442695
        %v4976 = vpow.pop %v4975
        %v4977 = vmul.f32 %v4928, 1.442695
        %v4978 = vpow.pop %v4977
        %v4979 = vmul.f32 %v4929, 1.442695
        %v4980 = vpow.pop %v4979
        %v4981 = vmul.f32 %v4930, 1.442695
        %v4982 = vpow.pop %v4981
        %v4983 = vmul.f32 %v4931, 1.442695
        %v4984 = vpow.pop %v4983
        %v4985 = vmul.f32 %v4932, 1.442695
        %v4986 = vpow.pop %v4985
        %v4987 = vmul.f32 %v4933, 1.442695
        %v4988 = vpow.pop %v4987
        %v4989 = vmul.f32 %v4934, 1.442695
        %v4990 = vpow.pop %v4989
        %v4991 = vmul.f32 %v4935, 1.442695
        %v4992 = vpow.pop %v4991
        %v4993 = vmul.f32 %v4936, 1.442695
        %v4994 = vpow.pop %v4993
        %v4995 = vmul.f32 %v4937, 1.442695
        %v4996 = vpow.pop %v4995
        %v4997 = vmul.f32 %v4938, 1.442695
        %v4998 = vpow.pop %v4997
        %v4999 = vmul.f32 %v4939, 1.442695
        %v5000 = vpow.pop %v4999
        %v5001 = vmul.f32 %v4940, 1.442695
        %v5002 = vpow.pop %v5001
        %v5003 = vmul.f32 %v4941, 1.442695
        %v5004 = vpow.pop %v5003
        %v5005 = vmul.f32 %v4942, 1.442695
        %v5006 = vpow.pop %v5005
        %v5007 = vadd.f32 %v4944, %v4946
        %5008 = vadd.xlane.f32.xlu0 %v5007
        %v5009 = vpop.xlane.xlu0 %5008
        %v5010 = vadd.f32 %v4948, %v4950
        %5011 = vadd.xlane.f32.xlu0 %v5010
        %v5012 = vpop.xlane.xlu0 %5011
        %v5013 = vadd.f32 %v4952, %v4954
        %5014 = vadd.xlane.f32.xlu0 %v5013
        %v5015 = vpop.xlane.xlu0 %5014
        %v5016 = vadd.f32 %v4956, %v4958
        %5017 = vadd.xlane.f32.xlu0 %v5016
        %v5018 = vpop.xlane.xlu0 %5017
        %v5019 = vadd.f32 %v4960, %v4962
        %5020 = vadd.xlane.f32.xlu0 %v5019
        %v5021 = vpop.xlane.xlu0 %5020
        %v5022 = vadd.f32 %v4964, %v4966
        %5023 = vadd.xlane.f32.xlu0 %v5022
        %v5024 = vpop.xlane.xlu0 %5023
        %v5025 = vadd.f32 %v4968, %v4970
        %5026 = vadd.xlane.f32.xlu0 %v5025
        %v5027 = vpop.xlane.xlu0 %5026
        %v5028 = vadd.f32 %v4972, %v4974
        %5029 = vadd.xlane.f32.xlu0 %v5028
        %v5030 = vpop.xlane.xlu0 %5029
        %v5031 = vadd.f32 %v4976, %v4978
        %5032 = vadd.xlane.f32.xlu0 %v5031
        %v5033 = vpop.xlane.xlu0 %5032
        %v5034 = vadd.f32 %v4980, %v4982
        %5035 = vadd.xlane.f32.xlu0 %v5034
        %v5036 = vpop.xlane.xlu0 %5035
        %v5037 = vadd.f32 %v4984, %v4986
        %5038 = vadd.xlane.f32.xlu0 %v5037
        %v5039 = vpop.xlane.xlu0 %5038
        %v5040 = vadd.f32 %v4988, %v4990
        %5041 = vadd.xlane.f32.xlu0 %v5040
        %v5042 = vpop.xlane.xlu0 %5041
        %v5043 = vadd.f32 %v4992, %v4994
        %5044 = vadd.xlane.f32.xlu0 %v5043
        %v5045 = vpop.xlane.xlu0 %5044
        %v5046 = vadd.f32 %v4996, %v4998
        %5047 = vadd.xlane.f32.xlu0 %v5046
        %v5048 = vpop.xlane.xlu0 %5047
        %v5049 = vadd.f32 %v5000, %v5002
        %5050 = vadd.xlane.f32.xlu0 %v5049
        %v5051 = vpop.xlane.xlu0 %5050
        %v5052 = vadd.f32 %v5004, %v5006
        %5053 = vadd.xlane.f32.xlu0 %v5052
        %v5054 = vpop.xlane.xlu0 %5053
        %v5055 = vrcp.pop %v5009
        %v5056 = vrcp.pop %v5012
        %v5057 = vrcp.pop %v5015
        %v5058 = vrcp.pop %v5018
        %v5059 = vrcp.pop %v5021
        %v5060 = vrcp.pop %v5024
        %v5061 = vrcp.pop %v5027
        %v5062 = vrcp.pop %v5030
        %v5063 = vrcp.pop %v5033
        %v5064 = vrcp.pop %v5036
        %v5065 = vrcp.pop %v5039
        %v5066 = vrcp.pop %v5042
        %v5067 = vrcp.pop %v5045
        %v5068 = vrcp.pop %v5048
        %v5069 = vrcp.pop %v5051
        %v5070 = vrcp.pop %v5054
        %v5071 = vmul.f32 %v4944, %v5055
        %v5072 = vmul.f32 %v4946, %v5055
        %v5073 = vmul.f32 %v4948, %v5056
        %v5074 = vmul.f32 %v4950, %v5056
        %v5075 = vmul.f32 %v4952, %v5057
        %v5076 = vmul.f32 %v4954, %v5057
        %v5077 = vmul.f32 %v4956, %v5058
        %v5078 = vmul.f32 %v4958, %v5058
        %v5079 = vmul.f32 %v4960, %v5059
        %v5080 = vmul.f32 %v4962, %v5059
        %v5081 = vmul.f32 %v4964, %v5060
        %v5082 = vmul.f32 %v4966, %v5060
        %v5083 = vmul.f32 %v4968, %v5061
        %v5084 = vmul.f32 %v4970, %v5061
        %v5085 = vmul.f32 %v4972, %v5062
        %v5086 = vmul.f32 %v4974, %v5062
        %v5087 = vmul.f32 %v4976, %v5063
        %v5088 = vmul.f32 %v4978, %v5063
        %v5089 = vmul.f32 %v4980, %v5064
        %v5090 = vmul.f32 %v4982, %v5064
        %v5091 = vmul.f32 %v4984, %v5065
        %v5092 = vmul.f32 %v4986, %v5065
        %v5093 = vmul.f32 %v4988, %v5066
        %v5094 = vmul.f32 %v4990, %v5066
        %v5095 = vmul.f32 %v4992, %v5067
        %v5096 = vmul.f32 %v4994, %v5067
        %v5097 = vmul.f32 %v4996, %v5068
        %v5098 = vmul.f32 %v4998, %v5068
        %v5099 = vmul.f32 %v5000, %v5069
        %v5100 = vmul.f32 %v5002, %v5069
        %v5101 = vmul.f32 %v5004, %v5070
        %v5102 = vmul.f32 %v5006, %v5070
        %v5103 = vpack.c.bf16 %v5073, %v5071
        %v5104 = vpack.c.bf16 %v5074, %v5072
        %v5105 = vpack.c.bf16 %v5077, %v5075
        %v5106 = vpack.c.bf16 %v5078, %v5076
        %v5107 = vpack.c.bf16 %v5081, %v5079
        %v5108 = vpack.c.bf16 %v5082, %v5080
        %v5109 = vpack.c.bf16 %v5085, %v5083
        %v5110 = vpack.c.bf16 %v5086, %v5084
        %v5111 = vpack.c.bf16 %v5089, %v5087
        %v5112 = vpack.c.bf16 %v5090, %v5088
        %v5113 = vpack.c.bf16 %v5093, %v5091
        %v5114 = vpack.c.bf16 %v5094, %v5092
        %v5115 = vpack.c.bf16 %v5097, %v5095
        %v5116 = vpack.c.bf16 %v5098, %v5096
        %v5117 = vpack.c.bf16 %v5101, %v5099
        %v5118 = vpack.c.bf16 %v5102, %v5100
        %5119 = vmatprep.subr.bf16.mxu0 0
        %5120 = vmatpush1.bf16.msra.mxu0 %v1402
        %5121 = vmatprep.subr.bf16.mxu0 0
        %5122 = vmatpush1.bf16.msra.mxu0 %v1404
        %5123 = vmatprep.subr.bf16.mxu0 0
        %5124 = vmatpush1.bf16.msra.mxu0 %v1406
        %5125 = vmatprep.subr.bf16.mxu0 0
        %5126 = vmatpush1.bf16.msra.mxu0 %v1408
        %5127 = vmatprep.subr.bf16.mxu0 0
        %5128 = vmatpush1.bf16.msra.mxu0 %v1410
        %5129 = vmatprep.subr.bf16.mxu0 0
        %5130 = vmatpush1.bf16.msra.mxu0 %v1412
        %5131 = vmatprep.subr.bf16.mxu0 0
        %5132 = vmatpush1.bf16.msra.mxu0 %v1414
        %5133 = vmatprep.subr.bf16.mxu0 0
        %5134 = vmatpush1.bf16.msra.mxu0 %v1416
        %5135 = vmatprep.subr.bf16.mxu0 0
        %5136 = vmatpush1.bf16.msra.mxu0 %v1418
        %5137 = vmatprep.subr.bf16.mxu0 0
        %5138 = vmatpush1.bf16.msra.mxu0 %v1420
        %5139 = vmatprep.subr.bf16.mxu0 0
        %5140 = vmatpush1.bf16.msra.mxu0 %v1422
        %5141 = vmatprep.subr.bf16.mxu0 0
        %5142 = vmatpush1.bf16.msra.mxu0 %v1424
        %5143 = vmatprep.subr.bf16.mxu0 0
        %5144 = vmatpush1.bf16.msra.mxu0 %v1426
        %5145 = vmatprep.subr.bf16.mxu0 0
        %5146 = vmatpush1.bf16.msra.mxu0 %v1428
        %5147 = vmatprep.subr.bf16.mxu0 0
        %5148 = vmatpush1.bf16.msra.mxu0 %v1430
        %5149 = vmatprep.subr.bf16.mxu0 0
        %5150 = vmatpush1.bf16.msra.mxu0 %v1432
        %5151 = vmatprep.mubr.bf16.mxu0 %v5104
        %5152 = vmatmul.mubr.bf16.gmra.mrb[0].mxu0 %v5103
        %v5153 = vpop.f32.mrb[0].mxu0
        %v5154 = vadd.f32 0.0, %v5153
        %v5155 = vpop.f32.mrb[0].mxu0
        %v5156 = vpop.f32.mrb[0].mxu0
        %v5157 = vadd.f32 0.0, %v5156
        %v5158 = vpop.f32.mrb[0].mxu0
        %5159 = vmatprep.mubr.bf16.mxu0 %v5106
        %5160 = vmatmul.mubr.bf16.gmra.mrb[0].mxu0 %v5105
        %v5161 = vpop.f32.mrb[0].mxu0
        %v5162 = vadd.f32 0.0, %v5161
        %v5163 = vpop.f32.mrb[0].mxu0
        %v5164 = vpop.f32.mrb[0].mxu0
        %v5165 = vadd.f32 0.0, %v5164
        %v5166 = vpop.f32.mrb[0].mxu0
        %5167 = vmatprep.mubr.bf16.mxu0 %v5108
        %5168 = vmatmul.mubr.bf16.gmra.mrb[0].mxu0 %v5107
        %v5169 = vpop.f32.mrb[0].mxu0
        %v5170 = vadd.f32 0.0, %v5169
        %v5171 = vpop.f32.mrb[0].mxu0
        %v5172 = vpop.f32.mrb[0].mxu0
        %v5173 = vadd.f32 0.0, %v5172
        %v5174 = vpop.f32.mrb[0].mxu0
        %5175 = vmatprep.mubr.bf16.mxu0 %v5110
        %5176 = vmatmul.mubr.bf16.gmra.mrb[0].mxu0 %v5109
        %v5177 = vpop.f32.mrb[0].mxu0
        %v5178 = vadd.f32 0.0, %v5177
        %v5179 = vpop.f32.mrb[0].mxu0
        %v5180 = vpop.f32.mrb[0].mxu0
        %v5181 = vadd.f32 0.0, %v5180
        %v5182 = vpop.f32.mrb[0].mxu0
        %5183 = vmatprep.mubr.bf16.mxu0 %v5112
        %5184 = vmatmul.mubr.bf16.gmra.mrb[0].mxu0 %v5111
        %v5185 = vpop.f32.mrb[0].mxu0
        %v5186 = vadd.f32 0.0, %v5185
        %v5187 = vpop.f32.mrb[0].mxu0
        %v5188 = vpop.f32.mrb[0].mxu0
        %v5189 = vadd.f32 0.0, %v5188
        %v5190 = vpop.f32.mrb[0].mxu0
        %5191 = vmatprep.mubr.bf16.mxu0 %v5114
        %5192 = vmatmul.mubr.bf16.gmra.mrb[0].mxu0 %v5113
        %v5193 = vpop.f32.mrb[0].mxu0
        %v5194 = vadd.f32 0.0, %v5193
        %v5195 = vpop.f32.mrb[0].mxu0
        %v5196 = vpop.f32.mrb[0].mxu0
        %v5197 = vadd.f32 0.0, %v5196
        %v5198 = vpop.f32.mrb[0].mxu0
        %5199 = vmatprep.mubr.bf16.mxu0 %v5116
        %5200 = vmatmul.mubr.bf16.gmra.mrb[0].mxu0 %v5115
        %v5201 = vpop.f32.mrb[0].mxu0
        %v5202 = vadd.f32 0.0, %v5201
        %v5203 = vpop.f32.mrb[0].mxu0
        %v5204 = vpop.f32.mrb[0].mxu0
        %v5205 = vadd.f32 0.0, %v5204
        %v5206 = vpop.f32.mrb[0].mxu0
        %5207 = vmatprep.mubr.bf16.mxu0 %v5118
        %5208 = vmatmul.mubr.bf16.gmra.mrb[0].mxu0 %v5117
        %v5209 = vpop.f32.mrb[0].mxu0
        %v5210 = vadd.f32 0.0, %v5209
        %v5211 = vpop.f32.mrb[0].mxu0
        %v5212 = vpop.f32.mrb[0].mxu0
        %v5213 = vadd.f32 0.0, %v5212
        %v5214 = vpop.f32.mrb[0].mxu0
        %5215 = vdwg.mxu0
        %5216 = vst.msk [vmem:[%s409 + $0x8] sm:$0xff] %vm1661, %v5154
        %5217 = vst.msk [vmem:[%s409 + $0x18] sm:$0xff] %vm1661, %v5157
        %5218 = vst.msk [vmem:[%s409 + $0x28] sm:$0xff] %vm1661, %v5162
        %5219 = vst.msk [vmem:[%s409 + $0x38] sm:$0xff] %vm1661, %v5165
        %5220 = vst.msk [vmem:[%s409 + $0x48] sm:$0xff] %vm1661, %v5170
        %5221 = vst.msk [vmem:[%s409 + $0x58] sm:$0xff] %vm1661, %v5173
        %5222 = vst.msk [vmem:[%s409 + $0x68] sm:$0xff] %vm1661, %v5178
        %5223 = vst.msk [vmem:[%s409 + $0x78] sm:$0xff] %vm1661, %v5181
        %5224 = vst.msk [vmem:[%s409 + $0x88] sm:$0xff] %vm1661, %v5186
        %5225 = vst.msk [vmem:[%s409 + $0x98] sm:$0xff] %vm1661, %v5189
        %5226 = vst.msk [vmem:[%s409 + $0xa8] sm:$0xff] %vm1661, %v5194
        %5227 = vst.msk [vmem:[%s409 + $0xb8] sm:$0xff] %vm1661, %v5197
        %5228 = vst.msk [vmem:[%s409 + $0xc8] sm:$0xff] %vm1661, %v5202
        %5229 = vst.msk [vmem:[%s409 + $0xd8] sm:$0xff] %vm1661, %v5205
        %5230 = vst.msk [vmem:[%s409 + $0xe8] sm:$0xff] %vm1661, %v5210
        %5231 = vst.msk [vmem:[%s409 + $0xf8] sm:$0xff] %vm1661, %v5213
        %v5232 = vlaneseq
        %v5233 = vshrl.u32 %v5232, 7
        %v5234 = vsub.s32 3, %v5233
        %v5235 = vrot.slane %v467, %v5234
        %5237 = vrot.lane.b32.xlu0 %v5235, 64
        %v5238 = vpop.permute.xlu0 %5237
        %v5240 = vadd.f32 %v780, %v5238
        %v5241 = vadd.f32 %v784, %v5238
        %v5242 = vadd.f32 %v790, %v5238
        %v5243 = vadd.f32 %v794, %v5238
        %v5244 = vadd.f32 %v800, %v5238
        %v5245 = vadd.f32 %v804, %v5238
        %v5246 = vadd.f32 %v810, %v5238
        %v5247 = vadd.f32 %v814, %v5238
        %v5248 = vadd.f32 %v820, %v5238
        %v5249 = vadd.f32 %v824, %v5238
        %v5250 = vadd.f32 %v830, %v5238
        %v5251 = vadd.f32 %v834, %v5238
        %v5252 = vadd.f32 %v840, %v5238
        %v5253 = vadd.f32 %v844, %v5238
        %v5254 = vadd.f32 %v850, %v5238
        %v5255 = vadd.f32 %v854, %v5238
        %v5256 = vpack.c.bf16 %v5241, %v5240
        %v5257 = vpack.c.bf16 %v5243, %v5242
        %v5258 = vpack.c.bf16 %v5245, %v5244
        %v5259 = vpack.c.bf16 %v5247, %v5246
        %v5260 = vpack.c.bf16 %v5249, %v5248
        %v5261 = vpack.c.bf16 %v5251, %v5250
        %v5262 = vpack.c.bf16 %v5253, %v5252
        %v5263 = vpack.c.bf16 %v5255, %v5254
        %v5264 = vlaneseq
        %v5265 = vshrl.u32 %v5264, 7
        %v5266 = vsub.s32 3, %v5265
        %v5267 = vrot.slane %v468, %v5266
        %5269 = vrot.lane.b32.xlu0 %v5267, 64
        %v5270 = vpop.permute.xlu0 %5269
        %v5272 = vadd.f32 %v780, %v5270
        %v5273 = vadd.f32 %v784, %v5270
        %v5274 = vadd.f32 %v790, %v5270
        %v5275 = vadd.f32 %v794, %v5270
        %v5276 = vadd.f32 %v800, %v5270
        %v5277 = vadd.f32 %v804, %v5270
        %v5278 = vadd.f32 %v810, %v5270
        %v5279 = vadd.f32 %v814, %v5270
        %v5280 = vadd.f32 %v820, %v5270
        %v5281 = vadd.f32 %v824, %v5270
        %v5282 = vadd.f32 %v830, %v5270
        %v5283 = vadd.f32 %v834, %v5270
        %v5284 = vadd.f32 %v840, %v5270
        %v5285 = vadd.f32 %v844, %v5270
        %v5286 = vadd.f32 %v850, %v5270
        %v5287 = vadd.f32 %v854, %v5270
        %v5288 = vpack.c.bf16 %v5273, %v5272
        %v5289 = vpack.c.bf16 %v5275, %v5274
        %v5290 = vpack.c.bf16 %v5277, %v5276
        %v5291 = vpack.c.bf16 %v5279, %v5278
        %v5292 = vpack.c.bf16 %v5281, %v5280
        %v5293 = vpack.c.bf16 %v5283, %v5282
        %v5294 = vpack.c.bf16 %v5285, %v5284
        %v5295 = vpack.c.bf16 %v5287, %v5286
        %5304 = vrot.lane.b32.xlu0 %v5288, 64
        %v5305 = vpop.permute.xlu0 %5304
        %5306 = vrot.lane.b32.xlu0 %v5289, 64
        %v5307 = vpop.permute.xlu0 %5306
        %5308 = vrot.lane.b32.xlu0 %v5290, 64
        %v5309 = vpop.permute.xlu0 %5308
        %5310 = vrot.lane.b32.xlu0 %v5291, 64
        %v5311 = vpop.permute.xlu0 %5310
        %5312 = vrot.lane.b32.xlu0 %v5292, 64
        %v5313 = vpop.permute.xlu0 %5312
        %5314 = vrot.lane.b32.xlu0 %v5293, 64
        %v5315 = vpop.permute.xlu0 %5314
        %5316 = vrot.lane.b32.xlu0 %v5294, 64
        %v5317 = vpop.permute.xlu0 %5316
        %5318 = vrot.lane.b32.xlu0 %v5295, 64
        %v5319 = vpop.permute.xlu0 %5318
        %v5321 = vsel %vm1661, %v5305, 0
        %v5324 = vsel %vm1661, %v5307, 0
        %v5327 = vsel %vm1661, %v5309, 0
        %v5330 = vsel %vm1661, %v5311, 0
        %v5333 = vsel %vm1661, %v5313, 0
        %v5336 = vsel %vm1661, %v5315, 0
        %v5339 = vsel %vm1661, %v5317, 0
        %v5342 = vsel %vm1661, %v5319, 0
        %5344 = vmatprep.subr.bf16.mxu0 0
        %5345 = vmatpush1.bf16.xpose.msra.mxu0 %v1687
        %5346 = vmatprep.subr.bf16.mxu0 0
        %5347 = vmatpush1.bf16.xpose.msra.mxu0 %v1690
        %5348 = vmatprep.subr.bf16.mxu0 0
        %5349 = vmatpush1.bf16.xpose.msra.mxu0 %v1693
        %5350 = vmatprep.subr.bf16.mxu0 0
        %5351 = vmatpush1.bf16.xpose.msra.mxu0 %v1696
        %5352 = vmatprep.subr.bf16.mxu0 0
        %5353 = vmatpush1.bf16.xpose.msra.mxu0 %v1699
        %5354 = vmatprep.subr.bf16.mxu0 0
        %5355 = vmatpush1.bf16.xpose.msra.mxu0 %v1702
        %5356 = vmatprep.subr.bf16.mxu0 0
        %5357 = vmatpush1.bf16.xpose.msra.mxu0 %v1705
        %5358 = vmatprep.subr.bf16.mxu0 0
        %5359 = vmatpush1.bf16.xpose.msra.mxu0 %v1708
        %5360 = vmatprep.subr.bf16.mxu0 0
        %5361 = vmatpush1.bf16.xpose.msra.mxu0 %v1711
        %5362 = vmatprep.subr.bf16.mxu0 0
        %5363 = vmatpush1.bf16.xpose.msra.mxu0 %v1714
        %5364 = vmatprep.subr.bf16.mxu0 0
        %5365 = vmatpush1.bf16.xpose.msra.mxu0 %v1717
        %5366 = vmatprep.subr.bf16.mxu0 0
        %5367 = vmatpush1.bf16.xpose.msra.mxu0 %v1720
        %5368 = vmatprep.subr.bf16.mxu0 0
        %5369 = vmatpush1.bf16.xpose.msra.mxu0 %v1723
        %5370 = vmatprep.subr.bf16.mxu0 0
        %5371 = vmatpush1.bf16.xpose.msra.mxu0 %v1726
        %5372 = vmatprep.subr.bf16.mxu0 0
        %5373 = vmatpush1.bf16.xpose.msra.mxu0 %v1729
        %5374 = vmatprep.subr.bf16.mxu0 0
        %5375 = vmatpush1.bf16.xpose.msra.mxu0 %v1732
        %5376 = vmatprep.mubr.bf16.mxu0 0
        %5377 = vmatmul.mubr.bf16.gmra.mrb[0].mxu0 %v5321
        %v5378 = vpop.f32.mrb[0].mxu0
        %v5379 = vadd.f32 0.0, %v5378
        %v5380 = vpop.f32.mrb[0].mxu0
        %v5381 = vadd.f32 0.0, %v5380
        %v5382 = vpop.f32.mrb[0].mxu0
        %v5383 = vadd.f32 0.0, %v5382
        %v5384 = vpop.f32.mrb[0].mxu0
        %v5385 = vadd.f32 0.0, %v5384
        %5386 = vmatprep.mubr.bf16.mxu0 0
        %5387 = vmatmul.mubr.bf16.gmra.mrb[0].mxu0 %v5324
        %v5388 = vpop.f32.mrb[0].mxu0
        %v5389 = vadd.f32 0.0, %v5388
        %v5390 = vpop.f32.mrb[0].mxu0
        %v5391 = vadd.f32 0.0, %v5390
        %v5392 = vpop.f32.mrb[0].mxu0
        %v5393 = vadd.f32 0.0, %v5392
        %v5394 = vpop.f32.mrb[0].mxu0
        %v5395 = vadd.f32 0.0, %v5394
        %5396 = vmatprep.mubr.bf16.mxu0 0
        %5397 = vmatmul.mubr.bf16.gmra.mrb[0].mxu0 %v5327
        %v5398 = vpop.f32.mrb[0].mxu0
        %v5399 = vadd.f32 0.0, %v5398
        %v5400 = vpop.f32.mrb[0].mxu0
        %v5401 = vadd.f32 0.0, %v5400
        %v5402 = vpop.f32.mrb[0].mxu0
        %v5403 = vadd.f32 0.0, %v5402
        %v5404 = vpop.f32.mrb[0].mxu0
        %v5405 = vadd.f32 0.0, %v5404
        %5406 = vmatprep.mubr.bf16.mxu0 0
        %5407 = vmatmul.mubr.bf16.gmra.mrb[0].mxu0 %v5330
        %v5408 = vpop.f32.mrb[0].mxu0
        %v5409 = vadd.f32 0.0, %v5408
        %v5410 = vpop.f32.mrb[0].mxu0
        %v5411 = vadd.f32 0.0, %v5410
        %v5412 = vpop.f32.mrb[0].mxu0
        %v5413 = vadd.f32 0.0, %v5412
        %v5414 = vpop.f32.mrb[0].mxu0
        %v5415 = vadd.f32 0.0, %v5414
        %5416 = vmatprep.mubr.bf16.mxu0 0
        %5417 = vmatmul.mubr.bf16.gmra.mrb[0].mxu0 %v5333
        %v5418 = vpop.f32.mrb[0].mxu0
        %v5419 = vadd.f32 0.0, %v5418
        %v5420 = vpop.f32.mrb[0].mxu0
        %v5421 = vadd.f32 0.0, %v5420
        %v5422 = vpop.f32.mrb[0].mxu0
        %v5423 = vadd.f32 0.0, %v5422
        %v5424 = vpop.f32.mrb[0].mxu0
        %v5425 = vadd.f32 0.0, %v5424
        %5426 = vmatprep.mubr.bf16.mxu0 0
        %5427 = vmatmul.mubr.bf16.gmra.mrb[0].mxu0 %v5336
        %v5428 = vpop.f32.mrb[0].mxu0
        %v5429 = vadd.f32 0.0, %v5428
        %v5430 = vpop.f32.mrb[0].mxu0
        %v5431 = vadd.f32 0.0, %v5430
        %v5432 = vpop.f32.mrb[0].mxu0
        %v5433 = vadd.f32 0.0, %v5432
        %v5434 = vpop.f32.mrb[0].mxu0
        %v5435 = vadd.f32 0.0, %v5434
        %5436 = vmatprep.mubr.bf16.mxu0 0
        %5437 = vmatmul.mubr.bf16.gmra.mrb[0].mxu0 %v5339
        %v5438 = vpop.f32.mrb[0].mxu0
        %v5439 = vadd.f32 0.0, %v5438
        %v5440 = vpop.f32.mrb[0].mxu0
        %v5441 = vadd.f32 0.0, %v5440
        %v5442 = vpop.f32.mrb[0].mxu0
        %v5443 = vadd.f32 0.0, %v5442
        %v5444 = vpop.f32.mrb[0].mxu0
        %v5445 = vadd.f32 0.0, %v5444
        %5446 = vmatprep.mubr.bf16.mxu0 0
        %5447 = vmatmul.mubr.bf16.gmra.mrb[0].mxu0 %v5342
        %v5448 = vpop.f32.mrb[0].mxu0
        %v5449 = vadd.f32 0.0, %v5448
        %v5450 = vpop.f32.mrb[0].mxu0
        %v5451 = vadd.f32 0.0, %v5450
        %v5452 = vpop.f32.mrb[0].mxu0
        %v5453 = vadd.f32 0.0, %v5452
        %v5454 = vpop.f32.mrb[0].mxu0
        %v5455 = vadd.f32 0.0, %v5454
        %5456 = vdwg.mxu0
        %5457 = vmatprep.subr.bf16.mxu0 0
        %5458 = vmatpush1.bf16.xpose.msra.mxu0 %v1735
        %5459 = vmatprep.subr.bf16.mxu0 0
        %5460 = vmatpush1.bf16.xpose.msra.mxu0 %v1738
        %5461 = vmatprep.subr.bf16.mxu0 0
        %5462 = vmatpush1.bf16.xpose.msra.mxu0 %v1741
        %5463 = vmatprep.subr.bf16.mxu0 0
        %5464 = vmatpush1.bf16.xpose.msra.mxu0 %v1744
        %5465 = vmatprep.subr.bf16.mxu0 0
        %5466 = vmatpush1.bf16.xpose.msra.mxu0 %v1747
        %5467 = vmatprep.subr.bf16.mxu0 0
        %5468 = vmatpush1.bf16.xpose.msra.mxu0 %v1750
        %5469 = vmatprep.subr.bf16.mxu0 0
        %5470 = vmatpush1.bf16.xpose.msra.mxu0 %v1753
        %5471 = vmatprep.subr.bf16.mxu0 0
        %5472 = vmatpush1.bf16.xpose.msra.mxu0 %v1756
        %5473 = vmatprep.subr.bf16.mxu0 0
        %5474 = vmatpush1.bf16.xpose.msra.mxu0 0
        %5475 = vmatprep.subr.bf16.mxu0 0
        %5476 = vmatpush1.bf16.xpose.msra.mxu0 0
        %5477 = vmatprep.subr.bf16.mxu0 0
        %5478 = vmatpush1.bf16.xpose.msra.mxu0 0
        %5479 = vmatprep.subr.bf16.mxu0 0
        %5480 = vmatpush1.bf16.xpose.msra.mxu0 0
        %5481 = vmatprep.subr.bf16.mxu0 0
        %5482 = vmatpush1.bf16.xpose.msra.mxu0 0
        %5483 = vmatprep.subr.bf16.mxu0 0
        %5484 = vmatpush1.bf16.xpose.msra.mxu0 0
        %5485 = vmatprep.subr.bf16.mxu0 0
        %5486 = vmatpush1.bf16.xpose.msra.mxu0 0
        %5487 = vmatprep.subr.bf16.mxu0 0
        %5488 = vmatpush1.bf16.xpose.msra.mxu0 0
        %5489 = vmatprep.mubr.bf16.mxu0 0
        %5490 = vmatmul.mubr.bf16.gmra.mrb[0].mxu0 %v5321
        %v5491 = vpop.f32.mrb[0].mxu0
        %v5492 = vadd.f32 0.0, %v5491
        %v5493 = vpop.f32.mrb[0].mxu0
        %v5494 = vpop.f32.mrb[0].mxu0
        %v5495 = vadd.f32 0.0, %v5494
        %v5496 = vpop.f32.mrb[0].mxu0
        %5497 = vmatprep.mubr.bf16.mxu0 0
        %5498 = vmatmul.mubr.bf16.gmra.mrb[0].mxu0 %v5324
        %v5499 = vpop.f32.mrb[0].mxu0
        %v5500 = vadd.f32 0.0, %v5499
        %v5501 = vpop.f32.mrb[0].mxu0
        %v5502 = vpop.f32.mrb[0].mxu0
        %v5503 = vadd.f32 0.0, %v5502
        %v5504 = vpop.f32.mrb[0].mxu0
        %5505 = vmatprep.mubr.bf16.mxu0 0
        %5506 = vmatmul.mubr.bf16.gmra.mrb[0].mxu0 %v5327
        %v5507 = vpop.f32.mrb[0].mxu0
        %v5508 = vadd.f32 0.0, %v5507
        %v5509 = vpop.f32.mrb[0].mxu0
        %v5510 = vpop.f32.mrb[0].mxu0
        %v5511 = vadd.f32 0.0, %v5510
        %v5512 = vpop.f32.mrb[0].mxu0
        %5513 = vmatprep.mubr.bf16.mxu0 0
        %5514 = vmatmul.mubr.bf16.gmra.mrb[0].mxu0 %v5330
        %v5515 = vpop.f32.mrb[0].mxu0
        %v5516 = vadd.f32 0.0, %v5515
        %v5517 = vpop.f32.mrb[0].mxu0
        %v5518 = vpop.f32.mrb[0].mxu0
        %v5519 = vadd.f32 0.0, %v5518
        %v5520 = vpop.f32.mrb[0].mxu0
        %5521 = vmatprep.mubr.bf16.mxu0 0
        %5522 = vmatmul.mubr.bf16.gmra.mrb[0].mxu0 %v5333
        %v5523 = vpop.f32.mrb[0].mxu0
        %v5524 = vadd.f32 0.0, %v5523
        %v5525 = vpop.f32.mrb[0].mxu0
        %v5526 = vpop.f32.mrb[0].mxu0
        %v5527 = vadd.f32 0.0, %v5526
        %v5528 = vpop.f32.mrb[0].mxu0
        %5529 = vmatprep.mubr.bf16.mxu0 0
        %5530 = vmatmul.mubr.bf16.gmra.mrb[0].mxu0 %v5336
        %v5531 = vpop.f32.mrb[0].mxu0
        %v5532 = vadd.f32 0.0, %v5531
        %v5533 = vpop.f32.mrb[0].mxu0
        %v5534 = vpop.f32.mrb[0].mxu0
        %v5535 = vadd.f32 0.0, %v5534
        %v5536 = vpop.f32.mrb[0].mxu0
        %5537 = vmatprep.mubr.bf16.mxu0 0
        %5538 = vmatmul.mubr.bf16.gmra.mrb[0].mxu0 %v5339
        %v5539 = vpop.f32.mrb[0].mxu0
        %v5540 = vadd.f32 0.0, %v5539
        %v5541 = vpop.f32.mrb[0].mxu0
        %v5542 = vpop.f32.mrb[0].mxu0
        %v5543 = vadd.f32 0.0, %v5542
        %v5544 = vpop.f32.mrb[0].mxu0
        %5545 = vmatprep.mubr.bf16.mxu0 0
        %5546 = vmatmul.mubr.bf16.gmra.mrb[0].mxu0 %v5342
        %v5547 = vpop.f32.mrb[0].mxu0
        %v5548 = vadd.f32 0.0, %v5547
        %v5549 = vpop.f32.mrb[0].mxu0
        %v5550 = vpop.f32.mrb[0].mxu0
        %v5551 = vadd.f32 0.0, %v5550
        %v5552 = vpop.f32.mrb[0].mxu0
        %5553 = vdwg.mxu0
        %5555 = vrot.lane.b32.xlu0 %v5379, 256
        %v5556 = vpop.permute.xlu0 %5555
        %5558 = vrot.lane.b32.xlu0 %v5381, 256
        %v5559 = vpop.permute.xlu0 %5558
        %5561 = vrot.lane.b32.xlu0 %v5492, 256
        %v5562 = vpop.permute.xlu0 %5561
        %v5563 = vsel %vm1981, %v5559, %v5562
        %v5564 = vsel %vm1981, %v5556, %v5559
        %s5566 = sor.u32 256, 8
        %5567 = vrot.lane.b32.xlu0 %v5383, %s5566
        %v5568 = vpop.permute.xlu0 %5567
        %s5570 = sor.u32 256, 8
        %5571 = vrot.lane.b32.xlu0 %v5385, %s5570
        %v5572 = vpop.permute.xlu0 %5571
        %s5574 = sor.u32 256, 8
        %5575 = vrot.lane.b32.xlu0 %v5495, %s5574
        %v5576 = vpop.permute.xlu0 %5575
        %v5577 = vsel %vm1997, %v5572, %v5576
        %v5578 = vsel %vm1997, %v5568, %v5572
        %s5580 = sor.u32 256, 16
        %5581 = vrot.lane.b32.xlu0 %v5389, %s5580
        %v5582 = vpop.permute.xlu0 %5581
        %s5584 = sor.u32 256, 16
        %5585 = vrot.lane.b32.xlu0 %v5391, %s5584
        %v5586 = vpop.permute.xlu0 %5585
        %s5588 = sor.u32 256, 16
        %5589 = vrot.lane.b32.xlu0 %v5500, %s5588
        %v5590 = vpop.permute.xlu0 %5589
        %v5591 = vsel %vm2013, %v5586, %v5590
        %v5592 = vsel %vm2013, %v5582, %v5586
        %s5594 = sor.u32 256, 24
        %5595 = vrot.lane.b32.xlu0 %v5393, %s5594
        %v5596 = vpop.permute.xlu0 %5595
        %s5598 = sor.u32 256, 24
        %5599 = vrot.lane.b32.xlu0 %v5395, %s5598
        %v5600 = vpop.permute.xlu0 %5599
        %s5602 = sor.u32 256, 24
        %5603 = vrot.lane.b32.xlu0 %v5503, %s5602
        %v5604 = vpop.permute.xlu0 %5603
        %v5605 = vsel %vm2029, %v5600, %v5604
        %v5606 = vsel %vm2029, %v5596, %v5600
        %s5608 = sor.u32 256, 32
        %5609 = vrot.lane.b32.xlu0 %v5399, %s5608
        %v5610 = vpop.permute.xlu0 %5609
        %s5612 = sor.u32 256, 32
        %5613 = vrot.lane.b32.xlu0 %v5401, %s5612
        %v5614 = vpop.permute.xlu0 %5613
        %s5616 = sor.u32 256, 32
        %5617 = vrot.lane.b32.xlu0 %v5508, %s5616
        %v5618 = vpop.permute.xlu0 %5617
        %v5619 = vsel %vm2045, %v5614, %v5618
        %v5620 = vsel %vm2045, %v5610, %v5614
        %s5622 = sor.u32 256, 40
        %5623 = vrot.lane.b32.xlu0 %v5403, %s5622
        %v5624 = vpop.permute.xlu0 %5623
        %s5626 = sor.u32 256, 40
        %5627 = vrot.lane.b32.xlu0 %v5405, %s5626
        %v5628 = vpop.permute.xlu0 %5627
        %s5630 = sor.u32 256, 40
        %5631 = vrot.lane.b32.xlu0 %v5511, %s5630
        %v5632 = vpop.permute.xlu0 %5631
        %v5633 = vsel %vm2061, %v5628, %v5632
        %v5634 = vsel %vm2061, %v5624, %v5628
        %s5636 = sor.u32 256, 48
        %5637 = vrot.lane.b32.xlu0 %v5409, %s5636
        %v5638 = vpop.permute.xlu0 %5637
        %s5640 = sor.u32 256, 48
        %5641 = vrot.lane.b32.xlu0 %v5411, %s5640
        %v5642 = vpop.permute.xlu0 %5641
        %s5644 = sor.u32 256, 48
        %5645 = vrot.lane.b32.xlu0 %v5516, %s5644
        %v5646 = vpop.permute.xlu0 %5645
        %v5647 = vsel %vm2077, %v5642, %v5646
        %v5648 = vsel %vm2077, %v5638, %v5642
        %s5650 = sor.u32 256, 56
        %5651 = vrot.lane.b32.xlu0 %v5413, %s5650
        %v5652 = vpop.permute.xlu0 %5651
        %s5654 = sor.u32 256, 56
        %5655 = vrot.lane.b32.xlu0 %v5415, %s5654
        %v5656 = vpop.permute.xlu0 %5655
        %s5658 = sor.u32 256, 56
        %5659 = vrot.lane.b32.xlu0 %v5519, %s5658
        %v5660 = vpop.permute.xlu0 %5659
        %v5661 = vsel %vm2093, %v5656, %v5660
        %v5662 = vsel %vm2093, %v5652, %v5656
        %s5664 = sor.u32 256, 64
        %5665 = vrot.lane.b32.xlu0 %v5419, %s5664
        %v5666 = vpop.permute.xlu0 %5665
        %s5668 = sor.u32 256, 64
        %5669 = vrot.lane.b32.xlu0 %v5421, %s5668
        %v5670 = vpop.permute.xlu0 %5669
        %s5672 = sor.u32 256, 64
        %5673 = vrot.lane.b32.xlu0 %v5524, %s5672
        %v5674 = vpop.permute.xlu0 %5673
        %v5675 = vsel %vm2109, %v5670, %v5674
        %v5676 = vsel %vm2109, %v5666, %v5670
        %s5678 = sor.u32 256, 72
        %5679 = vrot.lane.b32.xlu0 %v5423, %s5678
        %v5680 = vpop.permute.xlu0 %5679
        %s5682 = sor.u32 256, 72
        %5683 = vrot.lane.b32.xlu0 %v5425, %s5682
        %v5684 = vpop.permute.xlu0 %5683
        %s5686 = sor.u32 256, 72
        %5687 = vrot.lane.b32.xlu0 %v5527, %s5686
        %v5688 = vpop.permute.xlu0 %5687
        %v5689 = vsel %vm2125, %v5684, %v5688
        %v5690 = vsel %vm2125, %v5680, %v5684
        %s5692 = sor.u32 256, 80
        %5693 = vrot.lane.b32.xlu0 %v5429, %s5692
        %v5694 = vpop.permute.xlu0 %5693
        %s5696 = sor.u32 256, 80
        %5697 = vrot.lane.b32.xlu0 %v5431, %s5696
        %v5698 = vpop.permute.xlu0 %5697
        %s5700 = sor.u32 256, 80
        %5701 = vrot.lane.b32.xlu0 %v5532, %s5700
        %v5702 = vpop.permute.xlu0 %5701
        %v5703 = vsel %vm2141, %v5698, %v5702
        %v5704 = vsel %vm2141, %v5694, %v5698
        %s5706 = sor.u32 256, 88
        %5707 = vrot.lane.b32.xlu0 %v5433, %s5706
        %v5708 = vpop.permute.xlu0 %5707
        %s5710 = sor.u32 256, 88
        %5711 = vrot.lane.b32.xlu0 %v5435, %s5710
        %v5712 = vpop.permute.xlu0 %5711
        %s5714 = sor.u32 256, 88
        %5715 = vrot.lane.b32.xlu0 %v5535, %s5714
        %v5716 = vpop.permute.xlu0 %5715
        %v5717 = vsel %vm2157, %v5712, %v5716
        %v5718 = vsel %vm2157, %v5708, %v5712
        %s5720 = sor.u32 256, 96
        %5721 = vrot.lane.b32.xlu0 %v5439, %s5720
        %v5722 = vpop.permute.xlu0 %5721
        %s5724 = sor.u32 256, 96
        %5725 = vrot.lane.b32.xlu0 %v5441, %s5724
        %v5726 = vpop.permute.xlu0 %5725
        %s5728 = sor.u32 256, 96
        %5729 = vrot.lane.b32.xlu0 %v5540, %s5728
        %v5730 = vpop.permute.xlu0 %5729
        %v5731 = vsel %vm2173, %v5726, %v5730
        %v5732 = vsel %vm2173, %v5722, %v5726
        %s5734 = sor.u32 256, 104
        %5735 = vrot.lane.b32.xlu0 %v5443, %s5734
        %v5736 = vpop.permute.xlu0 %5735
        %s5738 = sor.u32 256, 104
        %5739 = vrot.lane.b32.xlu0 %v5445, %s5738
        %v5740 = vpop.permute.xlu0 %5739
        %s5742 = sor.u32 256, 104
        %5743 = vrot.lane.b32.xlu0 %v5543, %s5742
        %v5744 = vpop.permute.xlu0 %5743
        %v5745 = vsel %vm2189, %v5740, %v5744
        %v5746 = vsel %vm2189, %v5736, %v5740
        %s5748 = sor.u32 256, 112
        %5749 = vrot.lane.b32.xlu0 %v5449, %s5748
        %v5750 = vpop.permute.xlu0 %5749
        %s5752 = sor.u32 256, 112
        %5753 = vrot.lane.b32.xlu0 %v5451, %s5752
        %v5754 = vpop.permute.xlu0 %5753
        %s5756 = sor.u32 256, 112
        %5757 = vrot.lane.b32.xlu0 %v5548, %s5756
        %v5758 = vpop.permute.xlu0 %5757
        %v5759 = vsel %vm2205, %v5754, %v5758
        %v5760 = vsel %vm2205, %v5750, %v5754
        %s5762 = sor.u32 256, 120
        %5763 = vrot.lane.b32.xlu0 %v5453, %s5762
        %v5764 = vpop.permute.xlu0 %5763
        %s5766 = sor.u32 256, 120
        %5767 = vrot.lane.b32.xlu0 %v5455, %s5766
        %v5768 = vpop.permute.xlu0 %5767
        %s5770 = sor.u32 256, 120
        %5771 = vrot.lane.b32.xlu0 %v5551, %s5770
        %v5772 = vpop.permute.xlu0 %5771
        %v5773 = vsel %vm2221, %v5768, %v5772
        %v5774 = vsel %vm2221, %v5764, %v5768
        %5783 = vrot.lane.b32.xlu0 %v5256, 64
        %v5784 = vpop.permute.xlu0 %5783
        %5785 = vrot.lane.b32.xlu0 %v5257, 64
        %v5786 = vpop.permute.xlu0 %5785
        %5787 = vrot.lane.b32.xlu0 %v5258, 64
        %v5788 = vpop.permute.xlu0 %5787
        %5789 = vrot.lane.b32.xlu0 %v5259, 64
        %v5790 = vpop.permute.xlu0 %5789
        %5791 = vrot.lane.b32.xlu0 %v5260, 64
        %v5792 = vpop.permute.xlu0 %5791
        %5793 = vrot.lane.b32.xlu0 %v5261, 64
        %v5794 = vpop.permute.xlu0 %5793
        %5795 = vrot.lane.b32.xlu0 %v5262, 64
        %v5796 = vpop.permute.xlu0 %5795
        %5797 = vrot.lane.b32.xlu0 %v5263, 64
        %v5798 = vpop.permute.xlu0 %5797
        %5799 = vrot.lane.b32.xlu0 %v985, 64
        %v5800 = vpop.permute.xlu0 %5799
        %5801 = vrot.lane.b32.xlu0 %v987, 64
        %v5802 = vpop.permute.xlu0 %5801
        %5803 = vrot.lane.b32.xlu0 %v989, 64
        %v5804 = vpop.permute.xlu0 %5803
        %5805 = vrot.lane.b32.xlu0 %v991, 64
        %v5806 = vpop.permute.xlu0 %5805
        %5807 = vrot.lane.b32.xlu0 %v993, 64
        %v5808 = vpop.permute.xlu0 %5807
        %5809 = vrot.lane.b32.xlu0 %v995, 64
        %v5810 = vpop.permute.xlu0 %5809
        %5811 = vrot.lane.b32.xlu0 %v997, 64
        %v5812 = vpop.permute.xlu0 %5811
        %5813 = vrot.lane.b32.xlu0 %v999, 64
        %v5814 = vpop.permute.xlu0 %5813
        %5815 = vrot.lane.b32.xlu0 %v1001, 64
        %v5816 = vpop.permute.xlu0 %5815
        %5817 = vrot.lane.b32.xlu0 %v1003, 64
        %v5818 = vpop.permute.xlu0 %5817
        %5819 = vrot.lane.b32.xlu0 %v1005, 64
        %v5820 = vpop.permute.xlu0 %5819
        %5821 = vrot.lane.b32.xlu0 %v1007, 64
        %v5822 = vpop.permute.xlu0 %5821
        %5823 = vrot.lane.b32.xlu0 %v1009, 64
        %v5824 = vpop.permute.xlu0 %5823
        %5825 = vrot.lane.b32.xlu0 %v1011, 64
        %v5826 = vpop.permute.xlu0 %5825
        %5827 = vrot.lane.b32.xlu0 %v1013, 64
        %v5828 = vpop.permute.xlu0 %5827
        %5829 = vrot.lane.b32.xlu0 %v1015, 64
        %v5830 = vpop.permute.xlu0 %5829
        %v5832 = vsel %vm1661, %v5784, 0
        %v5835 = vsel %vm1661, %v5786, 0
        %v5838 = vsel %vm1661, %v5788, 0
        %v5841 = vsel %vm1661, %v5790, 0
        %v5844 = vsel %vm1661, %v5792, 0
        %v5847 = vsel %vm1661, %v5794, 0
        %v5850 = vsel %vm1661, %v5796, 0
        %v5853 = vsel %vm1661, %v5798, 0
        %v5856 = vsel %vm1661, %v5800, 0
        %v5859 = vsel %vm1661, %v5802, 0
        %v5862 = vsel %vm1661, %v5804, 0
        %v5865 = vsel %vm1661, %v5806, 0
        %v5868 = vsel %vm1661, %v5808, 0
        %v5871 = vsel %vm1661, %v5810, 0
        %v5874 = vsel %vm1661, %v5812, 0
        %v5877 = vsel %vm1661, %v5814, 0
        %v5880 = vsel %vm1661, %v5816, 0
        %v5883 = vsel %vm1661, %v5818, 0
        %v5886 = vsel %vm1661, %v5820, 0
        %v5889 = vsel %vm1661, %v5822, 0
        %v5892 = vsel %vm1661, %v5824, 0
        %v5895 = vsel %vm1661, %v5826, 0
        %v5898 = vsel %vm1661, %v5828, 0
        %v5901 = vsel %vm1661, %v5830, 0
        %5903 = vmatprep.subr.bf16.mxu0 0
        %5904 = vmatpush1.bf16.xpose.msra.mxu0 %v5856
        %5905 = vmatprep.subr.bf16.mxu0 0
        %5906 = vmatpush1.bf16.xpose.msra.mxu0 %v5859
        %5907 = vmatprep.subr.bf16.mxu0 0
        %5908 = vmatpush1.bf16.xpose.msra.mxu0 %v5862
        %5909 = vmatprep.subr.bf16.mxu0 0
        %5910 = vmatpush1.bf16.xpose.msra.mxu0 %v5865
        %5911 = vmatprep.subr.bf16.mxu0 0
        %5912 = vmatpush1.bf16.xpose.msra.mxu0 %v5868
        %5913 = vmatprep.subr.bf16.mxu0 0
        %5914 = vmatpush1.bf16.xpose.msra.mxu0 %v5871
        %5915 = vmatprep.subr.bf16.mxu0 0
        %5916 = vmatpush1.bf16.xpose.msra.mxu0 %v5874
        %5917 = vmatprep.subr.bf16.mxu0 0
        %5918 = vmatpush1.bf16.xpose.msra.mxu0 %v5877
        %5919 = vmatprep.subr.bf16.mxu0 0
        %5920 = vmatpush1.bf16.xpose.msra.mxu0 %v5880
        %5921 = vmatprep.subr.bf16.mxu0 0
        %5922 = vmatpush1.bf16.xpose.msra.mxu0 %v5883
        %5923 = vmatprep.subr.bf16.mxu0 0
        %5924 = vmatpush1.bf16.xpose.msra.mxu0 %v5886
        %5925 = vmatprep.subr.bf16.mxu0 0
        %5926 = vmatpush1.bf16.xpose.msra.mxu0 %v5889
        %5927 = vmatprep.subr.bf16.mxu0 0
        %5928 = vmatpush1.bf16.xpose.msra.mxu0 %v5892
        %5929 = vmatprep.subr.bf16.mxu0 0
        %5930 = vmatpush1.bf16.xpose.msra.mxu0 %v5895
        %5931 = vmatprep.subr.bf16.mxu0 0
        %5932 = vmatpush1.bf16.xpose.msra.mxu0 %v5898
        %5933 = vmatprep.subr.bf16.mxu0 0
        %5934 = vmatpush1.bf16.xpose.msra.mxu0 %v5901
        %5935 = vmatprep.mubr.bf16.mxu0 0
        %5936 = vmatmul.mubr.bf16.gmra.mrb[0].mxu0 %v5832
        %v5937 = vpop.f32.mrb[0].mxu0
        %v5938 = vadd.f32 %v5564, %v5937
        %v5939 = vpop.f32.mrb[0].mxu0
        %v5940 = vadd.f32 %v5563, %v5939
        %v5941 = vpop.f32.mrb[0].mxu0
        %v5942 = vadd.f32 %v5578, %v5941
        %v5943 = vpop.f32.mrb[0].mxu0
        %v5944 = vadd.f32 %v5577, %v5943
        %5945 = vmatprep.mubr.bf16.mxu0 0
        %5946 = vmatmul.mubr.bf16.gmra.mrb[0].mxu0 %v5835
        %v5947 = vpop.f32.mrb[0].mxu0
        %v5948 = vadd.f32 %v5592, %v5947
        %v5949 = vpop.f32.mrb[0].mxu0
        %v5950 = vadd.f32 %v5591, %v5949
        %v5951 = vpop.f32.mrb[0].mxu0
        %v5952 = vadd.f32 %v5606, %v5951
        %v5953 = vpop.f32.mrb[0].mxu0
        %v5954 = vadd.f32 %v5605, %v5953
        %5955 = vmatprep.mubr.bf16.mxu0 0
        %5956 = vmatmul.mubr.bf16.gmra.mrb[0].mxu0 %v5838
        %v5957 = vpop.f32.mrb[0].mxu0
        %v5958 = vadd.f32 %v5620, %v5957
        %v5959 = vpop.f32.mrb[0].mxu0
        %v5960 = vadd.f32 %v5619, %v5959
        %v5961 = vpop.f32.mrb[0].mxu0
        %v5962 = vadd.f32 %v5634, %v5961
        %v5963 = vpop.f32.mrb[0].mxu0
        %v5964 = vadd.f32 %v5633, %v5963
        %5965 = vmatprep.mubr.bf16.mxu0 0
        %5966 = vmatmul.mubr.bf16.gmra.mrb[0].mxu0 %v5841
        %v5967 = vpop.f32.mrb[0].mxu0
        %v5968 = vadd.f32 %v5648, %v5967
        %v5969 = vpop.f32.mrb[0].mxu0
        %v5970 = vadd.f32 %v5647, %v5969
        %v5971 = vpop.f32.mrb[0].mxu0
        %v5972 = vadd.f32 %v5662, %v5971
        %v5973 = vpop.f32.mrb[0].mxu0
        %v5974 = vadd.f32 %v5661, %v5973
        %5975 = vmatprep.mubr.bf16.mxu0 0
        %5976 = vmatmul.mubr.bf16.gmra.mrb[0].mxu0 %v5844
        %v5977 = vpop.f32.mrb[0].mxu0
        %v5978 = vadd.f32 %v5676, %v5977
        %v5979 = vpop.f32.mrb[0].mxu0
        %v5980 = vadd.f32 %v5675, %v5979
        %v5981 = vpop.f32.mrb[0].mxu0
        %v5982 = vadd.f32 %v5690, %v5981
        %v5983 = vpop.f32.mrb[0].mxu0
        %v5984 = vadd.f32 %v5689, %v5983
        %5985 = vmatprep.mubr.bf16.mxu0 0
        %5986 = vmatmul.mubr.bf16.gmra.mrb[0].mxu0 %v5847
        %v5987 = vpop.f32.mrb[0].mxu0
        %v5988 = vadd.f32 %v5704, %v5987
        %v5989 = vpop.f32.mrb[0].mxu0
        %v5990 = vadd.f32 %v5703, %v5989
        %v5991 = vpop.f32.mrb[0].mxu0
        %v5992 = vadd.f32 %v5718, %v5991
        %v5993 = vpop.f32.mrb[0].mxu0
        %v5994 = vadd.f32 %v5717, %v5993
        %5995 = vmatprep.mubr.bf16.mxu0 0
        %5996 = vmatmul.mubr.bf16.gmra.mrb[0].mxu0 %v5850
        %v5997 = vpop.f32.mrb[0].mxu0
        %v5998 = vadd.f32 %v5732, %v5997
        %v5999 = vpop.f32.mrb[0].mxu0
        %v6000 = vadd.f32 %v5731, %v5999
        %v6001 = vpop.f32.mrb[0].mxu0
        %v6002 = vadd.f32 %v5746, %v6001
        %v6003 = vpop.f32.mrb[0].mxu0
        %v6004 = vadd.f32 %v5745, %v6003
        %6005 = vmatprep.mubr.bf16.mxu0 0
        %6006 = vmatmul.mubr.bf16.gmra.mrb[0].mxu0 %v5853
        %v6007 = vpop.f32.mrb[0].mxu0
        %v6008 = vadd.f32 %v5760, %v6007
        %v6009 = vpop.f32.mrb[0].mxu0
        %v6010 = vadd.f32 %v5759, %v6009
        %v6011 = vpop.f32.mrb[0].mxu0
        %v6012 = vadd.f32 %v5774, %v6011
        %v6013 = vpop.f32.mrb[0].mxu0
        %v6014 = vadd.f32 %v5773, %v6013
        %6015 = vdwg.mxu0
        %v6016 = vsel %vm2418, -1e+30, %v5938
        %v6017 = vsel %vm2419, -1e+30, %v5940
        %v6018 = vsel %vm2418, -1e+30, %v5942
        %v6019 = vsel %vm2419, -1e+30, %v5944
        %v6020 = vsel %vm2418, -1e+30, %v5948
        %v6021 = vsel %vm2419, -1e+30, %v5950
        %v6022 = vsel %vm2418, -1e+30, %v5952
        %v6023 = vsel %vm2419, -1e+30, %v5954
        %v6024 = vsel %vm2418, -1e+30, %v5958
        %v6025 = vsel %vm2419, -1e+30, %v5960
        %v6026 = vsel %vm2418, -1e+30, %v5962
        %v6027 = vsel %vm2419, -1e+30, %v5964
        %v6028 = vsel %vm2418, -1e+30, %v5968
        %v6029 = vsel %vm2419, -1e+30, %v5970
        %v6030 = vsel %vm2418, -1e+30, %v5972
        %v6031 = vsel %vm2419, -1e+30, %v5974
        %v6032 = vsel %vm2418, -1e+30, %v5978
        %v6033 = vsel %vm2419, -1e+30, %v5980
        %v6034 = vsel %vm2418, -1e+30, %v5982
        %v6035 = vsel %vm2419, -1e+30, %v5984
        %v6036 = vsel %vm2418, -1e+30, %v5988
        %v6037 = vsel %vm2419, -1e+30, %v5990
        %v6038 = vsel %vm2418, -1e+30, %v5992
        %v6039 = vsel %vm2419, -1e+30, %v5994
        %v6040 = vsel %vm2418, -1e+30, %v5998
        %v6041 = vsel %vm2419, -1e+30, %v6000
        %v6042 = vsel %vm2418, -1e+30, %v6002
        %v6043 = vsel %vm2419, -1e+30, %v6004
        %v6044 = vsel %vm2418, -1e+30, %v6008
        %v6045 = vsel %vm2419, -1e+30, %v6010
        %v6046 = vsel %vm2418, -1e+30, %v6012
        %v6047 = vsel %vm2419, -1e+30, %v6014
        %v6048 = vmax.f32 %v6016, %v6017
        %6049 = vmax.xlane.f32.xlu0 %v6048
        %v6050 = vpop.xlane.xlu0 %6049
        %v6051 = vmax.f32 %v6018, %v6019
        %6052 = vmax.xlane.f32.xlu0 %v6051
        %v6053 = vpop.xlane.xlu0 %6052
        %v6054 = vmax.f32 %v6020, %v6021
        %6055 = vmax.xlane.f32.xlu0 %v6054
        %v6056 = vpop.xlane.xlu0 %6055
        %v6057 = vmax.f32 %v6022, %v6023
        %6058 = vmax.xlane.f32.xlu0 %v6057
        %v6059 = vpop.xlane.xlu0 %6058
        %v6060 = vmax.f32 %v6024, %v6025
        %6061 = vmax.xlane.f32.xlu0 %v6060
        %v6062 = vpop.xlane.xlu0 %6061
        %v6063 = vmax.f32 %v6026, %v6027
        %6064 = vmax.xlane.f32.xlu0 %v6063
        %v6065 = vpop.xlane.xlu0 %6064
        %v6066 = vmax.f32 %v6028, %v6029
        %6067 = vmax.xlane.f32.xlu0 %v6066
        %v6068 = vpop.xlane.xlu0 %6067
        %v6069 = vmax.f32 %v6030, %v6031
        %6070 = vmax.xlane.f32.xlu0 %v6069
        %v6071 = vpop.xlane.xlu0 %6070
        %v6072 = vmax.f32 %v6032, %v6033
        %6073 = vmax.xlane.f32.xlu0 %v6072
        %v6074 = vpop.xlane.xlu0 %6073
        %v6075 = vmax.f32 %v6034, %v6035
        %6076 = vmax.xlane.f32.xlu0 %v6075
        %v6077 = vpop.xlane.xlu0 %6076
        %v6078 = vmax.f32 %v6036, %v6037
        %6079 = vmax.xlane.f32.xlu0 %v6078
        %v6080 = vpop.xlane.xlu0 %6079
        %v6081 = vmax.f32 %v6038, %v6039
        %6082 = vmax.xlane.f32.xlu0 %v6081
        %v6083 = vpop.xlane.xlu0 %6082
        %v6084 = vmax.f32 %v6040, %v6041
        %6085 = vmax.xlane.f32.xlu0 %v6084
        %v6086 = vpop.xlane.xlu0 %6085
        %v6087 = vmax.f32 %v6042, %v6043
        %6088 = vmax.xlane.f32.xlu0 %v6087
        %v6089 = vpop.xlane.xlu0 %6088
        %v6090 = vmax.f32 %v6044, %v6045
        %6091 = vmax.xlane.f32.xlu0 %v6090
        %v6092 = vpop.xlane.xlu0 %6091
        %v6093 = vmax.f32 %v6046, %v6047
        %6094 = vmax.xlane.f32.xlu0 %v6093
        %v6095 = vpop.xlane.xlu0 %6094
        %v6096 = vsub.f32 %v6016, %v6050
        %v6097 = vsub.f32 %v6017, %v6050
        %v6098 = vsub.f32 %v6018, %v6053
        %v6099 = vsub.f32 %v6019, %v6053
        %v6100 = vsub.f32 %v6020, %v6056
        %v6101 = vsub.f32 %v6021, %v6056
        %v6102 = vsub.f32 %v6022, %v6059
        %v6103 = vsub.f32 %v6023, %v6059
        %v6104 = vsub.f32 %v6024, %v6062
        %v6105 = vsub.f32 %v6025, %v6062
        %v6106 = vsub.f32 %v6026, %v6065
        %v6107 = vsub.f32 %v6027, %v6065
        %v6108 = vsub.f32 %v6028, %v6068
        %v6109 = vsub.f32 %v6029, %v6068
        %v6110 = vsub.f32 %v6030, %v6071
        %v6111 = vsub.f32 %v6031, %v6071
        %v6112 = vsub.f32 %v6032, %v6074
        %v6113 = vsub.f32 %v6033, %v6074
        %v6114 = vsub.f32 %v6034, %v6077
        %v6115 = vsub.f32 %v6035, %v6077
        %v6116 = vsub.f32 %v6036, %v6080
        %v6117 = vsub.f32 %v6037, %v6080
        %v6118 = vsub.f32 %v6038, %v6083
        %v6119 = vsub.f32 %v6039, %v6083
        %v6120 = vsub.f32 %v6040, %v6086
        %v6121 = vsub.f32 %v6041, %v6086
        %v6122 = vsub.f32 %v6042, %v6089
        %v6123 = vsub.f32 %v6043, %v6089
        %v6124 = vsub.f32 %v6044, %v6092
        %v6125 = vsub.f32 %v6045, %v6092
        %v6126 = vsub.f32 %v6046, %v6095
        %v6127 = vsub.f32 %v6047, %v6095
        %v6128 = vmul.f32 %v6096, 1.442695
        %v6129 = vpow.pop %v6128
        %v6130 = vmul.f32 %v6097, 1.442695
        %v6131 = vpow.pop %v6130
        %v6132 = vmul.f32 %v6098, 1.442695
        %v6133 = vpow.pop %v6132
        %v6134 = vmul.f32 %v6099, 1.442695
        %v6135 = vpow.pop %v6134
        %v6136 = vmul.f32 %v6100, 1.442695
        %v6137 = vpow.pop %v6136
        %v6138 = vmul.f32 %v6101, 1.442695
        %v6139 = vpow.pop %v6138
        %v6140 = vmul.f32 %v6102, 1.442695
        %v6141 = vpow.pop %v6140
        %v6142 = vmul.f32 %v6103, 1.442695
        %v6143 = vpow.pop %v6142
        %v6144 = vmul.f32 %v6104, 1.442695
        %v6145 = vpow.pop %v6144
        %v6146 = vmul.f32 %v6105, 1.442695
        %v6147 = vpow.pop %v6146
        %v6148 = vmul.f32 %v6106, 1.442695
        %v6149 = vpow.pop %v6148
        %v6150 = vmul.f32 %v6107, 1.442695
        %v6151 = vpow.pop %v6150
        %v6152 = vmul.f32 %v6108, 1.442695
        %v6153 = vpow.pop %v6152
        %v6154 = vmul.f32 %v6109, 1.442695
        %v6155 = vpow.pop %v6154
        %v6156 = vmul.f32 %v6110, 1.442695
        %v6157 = vpow.pop %v6156
        %v6158 = vmul.f32 %v6111, 1.442695
        %v6159 = vpow.pop %v6158
        %v6160 = vmul.f32 %v6112, 1.442695
        %v6161 = vpow.pop %v6160
        %v6162 = vmul.f32 %v6113, 1.442695
        %v6163 = vpow.pop %v6162
        %v6164 = vmul.f32 %v6114, 1.442695
        %v6165 = vpow.pop %v6164
        %v6166 = vmul.f32 %v6115, 1.442695
        %v6167 = vpow.pop %v6166
        %v6168 = vmul.f32 %v6116, 1.442695
        %v6169 = vpow.pop %v6168
        %v6170 = vmul.f32 %v6117, 1.442695
        %v6171 = vpow.pop %v6170
        %v6172 = vmul.f32 %v6118, 1.442695
        %v6173 = vpow.pop %v6172
        %v6174 = vmul.f32 %v6119, 1.442695
        %v6175 = vpow.pop %v6174
        %v6176 = vmul.f32 %v6120, 1.442695
        %v6177 = vpow.pop %v6176
        %v6178 = vmul.f32 %v6121, 1.442695
        %v6179 = vpow.pop %v6178
        %v6180 = vmul.f32 %v6122, 1.442695
        %v6181 = vpow.pop %v6180
        %v6182 = vmul.f32 %v6123, 1.442695
        %v6183 = vpow.pop %v6182
        %v6184 = vmul.f32 %v6124, 1.442695
        %v6185 = vpow.pop %v6184
        %v6186 = vmul.f32 %v6125, 1.442695
        %v6187 = vpow.pop %v6186
        %v6188 = vmul.f32 %v6126, 1.442695
        %v6189 = vpow.pop %v6188
        %v6190 = vmul.f32 %v6127, 1.442695
        %v6191 = vpow.pop %v6190
        %v6192 = vadd.f32 %v6129, %v6131
        %6193 = vadd.xlane.f32.xlu0 %v6192
        %v6194 = vpop.xlane.xlu0 %6193
        %v6195 = vadd.f32 %v6133, %v6135
        %6196 = vadd.xlane.f32.xlu0 %v6195
        %v6197 = vpop.xlane.xlu0 %6196
        %v6198 = vadd.f32 %v6137, %v6139
        %6199 = vadd.xlane.f32.xlu0 %v6198
        %v6200 = vpop.xlane.xlu0 %6199
        %v6201 = vadd.f32 %v6141, %v6143
        %6202 = vadd.xlane.f32.xlu0 %v6201
        %v6203 = vpop.xlane.xlu0 %6202
        %v6204 = vadd.f32 %v6145, %v6147
        %6205 = vadd.xlane.f32.xlu0 %v6204
        %v6206 = vpop.xlane.xlu0 %6205
        %v6207 = vadd.f32 %v6149, %v6151
        %6208 = vadd.xlane.f32.xlu0 %v6207
        %v6209 = vpop.xlane.xlu0 %6208
        %v6210 = vadd.f32 %v6153, %v6155
        %6211 = vadd.xlane.f32.xlu0 %v6210
        %v6212 = vpop.xlane.xlu0 %6211
        %v6213 = vadd.f32 %v6157, %v6159
        %6214 = vadd.xlane.f32.xlu0 %v6213
        %v6215 = vpop.xlane.xlu0 %6214
        %v6216 = vadd.f32 %v6161, %v6163
        %6217 = vadd.xlane.f32.xlu0 %v6216
        %v6218 = vpop.xlane.xlu0 %6217
        %v6219 = vadd.f32 %v6165, %v6167
        %6220 = vadd.xlane.f32.xlu0 %v6219
        %v6221 = vpop.xlane.xlu0 %6220
        %v6222 = vadd.f32 %v6169, %v6171
        %6223 = vadd.xlane.f32.xlu0 %v6222
        %v6224 = vpop.xlane.xlu0 %6223
        %v6225 = vadd.f32 %v6173, %v6175
        %6226 = vadd.xlane.f32.xlu0 %v6225
        %v6227 = vpop.xlane.xlu0 %6226
        %v6228 = vadd.f32 %v6177, %v6179
        %6229 = vadd.xlane.f32.xlu0 %v6228
        %v6230 = vpop.xlane.xlu0 %6229
        %v6231 = vadd.f32 %v6181, %v6183
        %6232 = vadd.xlane.f32.xlu0 %v6231
        %v6233 = vpop.xlane.xlu0 %6232
        %v6234 = vadd.f32 %v6185, %v6187
        %6235 = vadd.xlane.f32.xlu0 %v6234
        %v6236 = vpop.xlane.xlu0 %6235
        %v6237 = vadd.f32 %v6189, %v6191
        %6238 = vadd.xlane.f32.xlu0 %v6237
        %v6239 = vpop.xlane.xlu0 %6238
        %v6240 = vrcp.pop %v6194
        %v6241 = vrcp.pop %v6197
        %v6242 = vrcp.pop %v6200
        %v6243 = vrcp.pop %v6203
        %v6244 = vrcp.pop %v6206
        %v6245 = vrcp.pop %v6209
        %v6246 = vrcp.pop %v6212
        %v6247 = vrcp.pop %v6215
        %v6248 = vrcp.pop %v6218
        %v6249 = vrcp.pop %v6221
        %v6250 = vrcp.pop %v6224
        %v6251 = vrcp.pop %v6227
        %v6252 = vrcp.pop %v6230
        %v6253 = vrcp.pop %v6233
        %v6254 = vrcp.pop %v6236
        %v6255 = vrcp.pop %v6239
        %v6256 = vmul.f32 %v6129, %v6240
        %v6257 = vmul.f32 %v6131, %v6240
        %v6258 = vmul.f32 %v6133, %v6241
        %v6259 = vmul.f32 %v6135, %v6241
        %v6260 = vmul.f32 %v6137, %v6242
        %v6261 = vmul.f32 %v6139, %v6242
        %v6262 = vmul.f32 %v6141, %v6243
        %v6263 = vmul.f32 %v6143, %v6243
        %v6264 = vmul.f32 %v6145, %v6244
        %v6265 = vmul.f32 %v6147, %v6244
        %v6266 = vmul.f32 %v6149, %v6245
        %v6267 = vmul.f32 %v6151, %v6245
        %v6268 = vmul.f32 %v6153, %v6246
        %v6269 = vmul.f32 %v6155, %v6246
        %v6270 = vmul.f32 %v6157, %v6247
        %v6271 = vmul.f32 %v6159, %v6247
        %v6272 = vmul.f32 %v6161, %v6248
        %v6273 = vmul.f32 %v6163, %v6248
        %v6274 = vmul.f32 %v6165, %v6249
        %v6275 = vmul.f32 %v6167, %v6249
        %v6276 = vmul.f32 %v6169, %v6250
        %v6277 = vmul.f32 %v6171, %v6250
        %v6278 = vmul.f32 %v6173, %v6251
        %v6279 = vmul.f32 %v6175, %v6251
        %v6280 = vmul.f32 %v6177, %v6252
        %v6281 = vmul.f32 %v6179, %v6252
        %v6282 = vmul.f32 %v6181, %v6253
        %v6283 = vmul.f32 %v6183, %v6253
        %v6284 = vmul.f32 %v6185, %v6254
        %v6285 = vmul.f32 %v6187, %v6254
        %v6286 = vmul.f32 %v6189, %v6255
        %v6287 = vmul.f32 %v6191, %v6255
        %v6288 = vpack.c.bf16 %v6258, %v6256
        %v6289 = vpack.c.bf16 %v6259, %v6257
        %v6290 = vpack.c.bf16 %v6262, %v6260
        %v6291 = vpack.c.bf16 %v6263, %v6261
        %v6292 = vpack.c.bf16 %v6266, %v6264
        %v6293 = vpack.c.bf16 %v6267, %v6265
        %v6294 = vpack.c.bf16 %v6270, %v6268
        %v6295 = vpack.c.bf16 %v6271, %v6269
        %v6296 = vpack.c.bf16 %v6274, %v6272
        %v6297 = vpack.c.bf16 %v6275, %v6273
        %v6298 = vpack.c.bf16 %v6278, %v6276
        %v6299 = vpack.c.bf16 %v6279, %v6277
        %v6300 = vpack.c.bf16 %v6282, %v6280
        %v6301 = vpack.c.bf16 %v6283, %v6281
        %v6302 = vpack.c.bf16 %v6286, %v6284
        %v6303 = vpack.c.bf16 %v6287, %v6285
        %6320 = vrot.lane.b32.xlu0 %v1402, 64
        %v6321 = vpop.permute.xlu0 %6320
        %6322 = vrot.lane.b32.xlu0 %v1404, 64
        %v6323 = vpop.permute.xlu0 %6322
        %6324 = vrot.lane.b32.xlu0 %v1406, 64
        %v6325 = vpop.permute.xlu0 %6324
        %6326 = vrot.lane.b32.xlu0 %v1408, 64
        %v6327 = vpop.permute.xlu0 %6326
        %6328 = vrot.lane.b32.xlu0 %v1410, 64
        %v6329 = vpop.permute.xlu0 %6328
        %6330 = vrot.lane.b32.xlu0 %v1412, 64
        %v6331 = vpop.permute.xlu0 %6330
        %6332 = vrot.lane.b32.xlu0 %v1414, 64
        %v6333 = vpop.permute.xlu0 %6332
        %6334 = vrot.lane.b32.xlu0 %v1416, 64
        %v6335 = vpop.permute.xlu0 %6334
        %6336 = vrot.lane.b32.xlu0 %v1418, 64
        %v6337 = vpop.permute.xlu0 %6336
        %6338 = vrot.lane.b32.xlu0 %v1420, 64
        %v6339 = vpop.permute.xlu0 %6338
        %6340 = vrot.lane.b32.xlu0 %v1422, 64
        %v6341 = vpop.permute.xlu0 %6340
        %6342 = vrot.lane.b32.xlu0 %v1424, 64
        %v6343 = vpop.permute.xlu0 %6342
        %6344 = vrot.lane.b32.xlu0 %v1426, 64
        %v6345 = vpop.permute.xlu0 %6344
        %6346 = vrot.lane.b32.xlu0 %v1428, 64
        %v6347 = vpop.permute.xlu0 %6346
        %6348 = vrot.lane.b32.xlu0 %v1430, 64
        %v6349 = vpop.permute.xlu0 %6348
        %6350 = vrot.lane.b32.xlu0 %v1432, 64
        %v6351 = vpop.permute.xlu0 %6350
        %6368 = vmatprep.subr.bf16.mxu0 0
        %6369 = vmatpush1.bf16.msra.mxu0 %v6321
        %6370 = vmatprep.subr.bf16.mxu0 0
        %6371 = vmatpush1.bf16.msra.mxu0 %v6323
        %6372 = vmatprep.subr.bf16.mxu0 0
        %6373 = vmatpush1.bf16.msra.mxu0 %v6325
        %6374 = vmatprep.subr.bf16.mxu0 0
        %6375 = vmatpush1.bf16.msra.mxu0 %v6327
        %6376 = vmatprep.subr.bf16.mxu0 0
        %6377 = vmatpush1.bf16.msra.mxu0 %v6329
        %6378 = vmatprep.subr.bf16.mxu0 0
        %6379 = vmatpush1.bf16.msra.mxu0 %v6331
        %6380 = vmatprep.subr.bf16.mxu0 0
        %6381 = vmatpush1.bf16.msra.mxu0 %v6333
        %6382 = vmatprep.subr.bf16.mxu0 0
        %6383 = vmatpush1.bf16.msra.mxu0 %v6335
        %6384 = vmatprep.subr.bf16.mxu0 0
        %6385 = vmatpush1.bf16.msra.mxu0 %v6337
        %6386 = vmatprep.subr.bf16.mxu0 0
        %6387 = vmatpush1.bf16.msra.mxu0 %v6339
        %6388 = vmatprep.subr.bf16.mxu0 0
        %6389 = vmatpush1.bf16.msra.mxu0 %v6341
        %6390 = vmatprep.subr.bf16.mxu0 0
        %6391 = vmatpush1.bf16.msra.mxu0 %v6343
        %6392 = vmatprep.subr.bf16.mxu0 0
        %6393 = vmatpush1.bf16.msra.mxu0 %v6345
        %6394 = vmatprep.subr.bf16.mxu0 0
        %6395 = vmatpush1.bf16.msra.mxu0 %v6347
        %6396 = vmatprep.subr.bf16.mxu0 0
        %6397 = vmatpush1.bf16.msra.mxu0 %v6349
        %6398 = vmatprep.subr.bf16.mxu0 0
        %6399 = vmatpush1.bf16.msra.mxu0 %v6351
        %6400 = vmatprep.mubr.bf16.mxu0 %v6289
        %6401 = vmatmul.mubr.bf16.gmra.mrb[0].mxu0 %v6288
        %v6402 = vpop.f32.mrb[0].mxu0
        %v6403 = vadd.f32 0.0, %v6402
        %v6404 = vpop.f32.mrb[0].mxu0
        %v6405 = vpop.f32.mrb[0].mxu0
        %v6406 = vadd.f32 0.0, %v6405
        %v6407 = vpop.f32.mrb[0].mxu0
        %6408 = vmatprep.mubr.bf16.mxu0 %v6291
        %6409 = vmatmul.mubr.bf16.gmra.mrb[0].mxu0 %v6290
        %v6410 = vpop.f32.mrb[0].mxu0
        %v6411 = vadd.f32 0.0, %v6410
        %v6412 = vpop.f32.mrb[0].mxu0
        %v6413 = vpop.f32.mrb[0].mxu0
        %v6414 = vadd.f32 0.0, %v6413
        %v6415 = vpop.f32.mrb[0].mxu0
        %6416 = vmatprep.mubr.bf16.mxu0 %v6293
        %6417 = vmatmul.mubr.bf16.gmra.mrb[0].mxu0 %v6292
        %v6418 = vpop.f32.mrb[0].mxu0
        %v6419 = vadd.f32 0.0, %v6418
        %v6420 = vpop.f32.mrb[0].mxu0
        %v6421 = vpop.f32.mrb[0].mxu0
        %v6422 = vadd.f32 0.0, %v6421
        %v6423 = vpop.f32.mrb[0].mxu0
        %6424 = vmatprep.mubr.bf16.mxu0 %v6295
        %6425 = vmatmul.mubr.bf16.gmra.mrb[0].mxu0 %v6294
        %v6426 = vpop.f32.mrb[0].mxu0
        %v6427 = vadd.f32 0.0, %v6426
        %v6428 = vpop.f32.mrb[0].mxu0
        %v6429 = vpop.f32.mrb[0].mxu0
        %v6430 = vadd.f32 0.0, %v6429
        %v6431 = vpop.f32.mrb[0].mxu0
        %6432 = vmatprep.mubr.bf16.mxu0 %v6297
        %6433 = vmatmul.mubr.bf16.gmra.mrb[0].mxu0 %v6296
        %v6434 = vpop.f32.mrb[0].mxu0
        %v6435 = vadd.f32 0.0, %v6434
        %v6436 = vpop.f32.mrb[0].mxu0
        %v6437 = vpop.f32.mrb[0].mxu0
        %v6438 = vadd.f32 0.0, %v6437
        %v6439 = vpop.f32.mrb[0].mxu0
        %6440 = vmatprep.mubr.bf16.mxu0 %v6299
        %6441 = vmatmul.mubr.bf16.gmra.mrb[0].mxu0 %v6298
        %v6442 = vpop.f32.mrb[0].mxu0
        %v6443 = vadd.f32 0.0, %v6442
        %v6444 = vpop.f32.mrb[0].mxu0
        %v6445 = vpop.f32.mrb[0].mxu0
        %v6446 = vadd.f32 0.0, %v6445
        %v6447 = vpop.f32.mrb[0].mxu0
        %6448 = vmatprep.mubr.bf16.mxu0 %v6301
        %6449 = vmatmul.mubr.bf16.gmra.mrb[0].mxu0 %v6300
        %v6450 = vpop.f32.mrb[0].mxu0
        %v6451 = vadd.f32 0.0, %v6450
        %v6452 = vpop.f32.mrb[0].mxu0
        %v6453 = vpop.f32.mrb[0].mxu0
        %v6454 = vadd.f32 0.0, %v6453
        %v6455 = vpop.f32.mrb[0].mxu0
        %6456 = vmatprep.mubr.bf16.mxu0 %v6303
        %6457 = vmatmul.mubr.bf16.gmra.mrb[0].mxu0 %v6302
        %v6458 = vpop.f32.mrb[0].mxu0
        %v6459 = vadd.f32 0.0, %v6458
        %v6460 = vpop.f32.mrb[0].mxu0
        %v6461 = vpop.f32.mrb[0].mxu0
        %v6462 = vadd.f32 0.0, %v6461
        %v6463 = vpop.f32.mrb[0].mxu0
        %6464 = vdwg.mxu0
        %6481 = vrot.lane.b32.xlu0 %v6403, 64
        %v6482 = vpop.permute.xlu0 %6481
        %6483 = vrot.lane.b32.xlu0 %v6406, 64
        %v6484 = vpop.permute.xlu0 %6483
        %6485 = vrot.lane.b32.xlu0 %v6411, 64
        %v6486 = vpop.permute.xlu0 %6485
        %6487 = vrot.lane.b32.xlu0 %v6414, 64
        %v6488 = vpop.permute.xlu0 %6487
        %6489 = vrot.lane.b32.xlu0 %v6419, 64
        %v6490 = vpop.permute.xlu0 %6489
        %6491 = vrot.lane.b32.xlu0 %v6422, 64
        %v6492 = vpop.permute.xlu0 %6491
        %6493 = vrot.lane.b32.xlu0 %v6427, 64
        %v6494 = vpop.permute.xlu0 %6493
        %6495 = vrot.lane.b32.xlu0 %v6430, 64
        %v6496 = vpop.permute.xlu0 %6495
        %6497 = vrot.lane.b32.xlu0 %v6435, 64
        %v6498 = vpop.permute.xlu0 %6497
        %6499 = vrot.lane.b32.xlu0 %v6438, 64
        %v6500 = vpop.permute.xlu0 %6499
        %6501 = vrot.lane.b32.xlu0 %v6443, 64
        %v6502 = vpop.permute.xlu0 %6501
        %6503 = vrot.lane.b32.xlu0 %v6446, 64
        %v6504 = vpop.permute.xlu0 %6503
        %6505 = vrot.lane.b32.xlu0 %v6451, 64
        %v6506 = vpop.permute.xlu0 %6505
        %6507 = vrot.lane.b32.xlu0 %v6454, 64
        %v6508 = vpop.permute.xlu0 %6507
        %6509 = vrot.lane.b32.xlu0 %v6459, 64
        %v6510 = vpop.permute.xlu0 %6509
        %6511 = vrot.lane.b32.xlu0 %v6462, 64
        %v6512 = vpop.permute.xlu0 %6511
        %6529 = vst.msk [vmem:[%s409 + $0x8] sm:$0xff] %vm4118, %v6482
        %6530 = vst.msk [vmem:[%s409 + $0x18] sm:$0xff] %vm4118, %v6484
        %6531 = vst.msk [vmem:[%s409 + $0x28] sm:$0xff] %vm4118, %v6486
        %6532 = vst.msk [vmem:[%s409 + $0x38] sm:$0xff] %vm4118, %v6488
        %6533 = vst.msk [vmem:[%s409 + $0x48] sm:$0xff] %vm4118, %v6490
        %6534 = vst.msk [vmem:[%s409 + $0x58] sm:$0xff] %vm4118, %v6492
        %6535 = vst.msk [vmem:[%s409 + $0x68] sm:$0xff] %vm4118, %v6494
        %6536 = vst.msk [vmem:[%s409 + $0x78] sm:$0xff] %vm4118, %v6496
        %6537 = vst.msk [vmem:[%s409 + $0x88] sm:$0xff] %vm4118, %v6498
        %6538 = vst.msk [vmem:[%s409 + $0x98] sm:$0xff] %vm4118, %v6500
        %6539 = vst.msk [vmem:[%s409 + $0xa8] sm:$0xff] %vm4118, %v6502
        %6540 = vst.msk [vmem:[%s409 + $0xb8] sm:$0xff] %vm4118, %v6504
        %6541 = vst.msk [vmem:[%s409 + $0xc8] sm:$0xff] %vm4118, %v6506
        %6542 = vst.msk [vmem:[%s409 + $0xd8] sm:$0xff] %vm4118, %v6508
        %6543 = vst.msk [vmem:[%s409 + $0xe8] sm:$0xff] %vm4118, %v6510
        %6544 = vst.msk [vmem:[%s409 + $0xf8] sm:$0xff] %vm4118, %v6512
        %s6545 = sand.u32 %s235, 1
        %s6546 = scalar_lea.sflag [#allocation4], %s6545
        %s6547 = sand.u32 %s235, 1
        %s6548 = smul.addr %s6547, 256
        %s6549 = scalar_lea.vmem [#allocation8], %s6548
        // Predicated region
        $region65: #{tpu_custom_call.1} parent=51 // pred_check
          %p6550 = pneg %p245
        $region66: #{tpu_custom_call.1} parent=51 // pred_check_branch
          %6552 = sbr.rel (%p6550) target = $region68
        $region67: #{tpu_custom_call.1} parent=51 // pred_region
          %s6553 = smul.u32 16, %s33
          %s6555 = ssub.s32 4096, 4096
          %6556 = vsyncadd %s6546, %s6555
          %s6557 = smul.addr %s6553, 2
          %s6558 = smul.addr %s32, 64
          %s6559 = sadd.s32 %s6557, %s6558
          %s6560 = smul.addr %s6559, 128
          %s6561 = scalar_lea.hbm %s8, %s6560
          %s6562 = sshll.u32 %s6549, 4
          %s6563 = int_to_ptr.vmem [resolvable:$true] %s6562
          %6568 = dma.vmem_to_hbm [thread:$0]  %s6563, 4096, %s6561, %s6546, 256, 256, 16
        $region68: #{tpu_custom_call.1} parent=51 // pred_fallthru
          _
      $region52: #{tpu_custom_call.1} parent=5 // pred_fallthru
        _
      %p6569 = scmp.le.s32.totalorder 2, %s23
      // Predicated region
      $region69: #{tpu_custom_call.1} parent=5 // pred_check
        %p6570 = pneg %p6569
      $region70: #{tpu_custom_call.1} parent=5 // pred_check_branch
        %6572 = sbr.rel (%p6570) target = $region72
      $region71: #{tpu_custom_call.1} parent=5 // pred_region
        %s6573 = ssub.s32 %s23, 2
        // Predicated region
        $region73: #{tpu_custom_call.1} parent=71 // pred_check
          %p6574 = pneg %p251
        $region74: #{tpu_custom_call.1} parent=71 // pred_check_branch
          %6576 = sbr.rel (%p6574) target = $region76
        $region75: #{tpu_custom_call.1} parent=71 // pred_region
          %s6577 = sand.u32 %s236, 1
          %s6578 = scalar_lea.sflag [#allocation4], %s6577
          %s6579 = sand.u32 %s236, 1
          %s6580 = smul.addr %s6579, 256
          %s6581 = scalar_lea.vmem [#allocation8], %s6580
          %6582 = dma.done %s6578, 4096
        $region76: #{tpu_custom_call.1} parent=71 // pred_fallthru
          _
      $region72: #{tpu_custom_call.1} parent=5 // pred_fallthru
        _
    $region6: #{tpu_custom_call.1} parent=1 // loop_footer
      %s27 = sadd.s32 1, %s23
    $region7: #{tpu_custom_call.1} parent=1 // loop_footer_branch
      %22 = sbr.rel target = $region3
    $region8: #{tpu_custom_call.1} parent=1 // loop_exit
      _
    %6583 = vsyncpa [#allocation3], 1
    %s6584 = scalar_lea.sflag [#allocation3], 1
    %6585 = vsyncpa %s6584, 1
    %6586 = vsyncpa [#allocation6], 1
    %s6587 = scalar_lea.sflag [#allocation6], 1
    %6588 = vsyncpa %s6587, 1
    %6589 = vsyncpa [#allocation4], 1
    %s6590 = scalar_lea.sflag [#allocation4], 1
    %6591 = vsyncpa %s6590, 1

</llo_original>
